<compile_context>
chip_gen: v5e
topology: v5e:2x2
jax: 0.10.0
libtpu: 0.0.40
codegen_flags: <defaults>
</compile_context>

<pallas_src>
import functools

import jax
import jax.numpy as jnp
from jax import lax
from jax.experimental import pallas as pl
from jax.experimental.pallas import tpu as pltpu

NEG_SLOPE = 0.01                      # nn.LeakyReLU default
BN_EPS = 1e-5                         # nn.BatchNorm2d default
VMEM_LIMIT_BYTES = 48 * 1024 * 1024   # explicit scoped-VMEM budget (safe on v7x's 64 MiB)
_CONV_TILE_BUDGET = 20 * 1024 * 1024  # per-grid-step VMEM budget for the conv kernel
_ELTW_TILE_BUDGET = 16 * 1024 * 1024  # per-grid-step VMEM budget for the affine kernel


# ---------------------------------------------------------------------------
# Kernel A/B: tiled dilated conv (im2col -> single MXU dot) with fused epilogues
# ---------------------------------------------------------------------------
def _conv_bn_stats_kernel(xm_ref, xh_ref, w_ref, b_ref, sc_ref, sh_ref,
                          y_ref, sum_ref, sq_ref, *,
                          TH, H, W, Wp, C_in, C_out, K, dil, pad,
                          input_affine, out_lrelu, compute_dtype):
    # xm_ref : (1, TH,   Wp, C_in)   main tile  (padded rows [i*TH, (i+1)*TH))
    # xh_ref : (1, halo, Wp, C_in)   halo rows  (padded rows [(i+1)*TH, (i+1)*TH + halo))
    # w_ref  : (K*K*C_in, C_out)     im2col-ordered weights (resident)
    # b_ref  : (1, C_out)
    # sc/sh  : (1, C_in)             upstream BN affine (only used when input_affine)
    # y_ref  : (1, TH, W, C_out)
    # sum/sq : (1, 1, C_out)         per-image channel stats, accumulated over H tiles
    i = pl.program_id(1)
    halo = (K - 1) * dil

    @pl.when(i == 0)
    def _init_stats():
        sum_ref[...] = jnp.zeros_like(sum_ref)
        sq_ref[...] = jnp.zeros_like(sq_ref)

    # Stitch main tile + dilation halo: padded rows [i*TH, i*TH + TH + halo).
    x = jnp.concatenate([xm_ref[0], xh_ref[0]], axis=0)        # (TH+halo, Wp, C_in)

    if input_affine:
        # Fused upstream BatchNorm affine + LeakyReLU on this conv's input; masked so the
        # spatial zero-padding of the conv stays exactly zero.
        z = (x.astype(jnp.float32) * sc_ref[...].reshape(1, 1, C_in)
             + sh_ref[...].reshape(1, 1, C_in))
        z = jnp.where(z >= 0, z, NEG_SLOPE * z)
        rows = i * TH + lax.broadcasted_iota(jnp.int32, (TH + halo, Wp, C_in), 0)
        cols = lax.broadcasted_iota(jnp.int32, (TH + halo, Wp, C_in), 1)
        valid = ((rows >= pad) & (rows < pad + H) &
                 (cols >= pad) & (cols < pad + W))
        x = jnp.where(valid, z, 0.0)

    x = x.astype(compute_dtype)

    # im2col: one (TH*W, K*K*C_in) x (K*K*C_in, C_out) dot instead of 9 thin dots.
    taps = []
    for kh in range(K):
        for kw in range(K):
            t = x[kh * dil:kh * dil + TH, kw * dil:kw * dil + W, :]
            taps.append(t.reshape(TH * W, C_in))
    patch = jnp.concatenate(taps, axis=-1)                      # (TH*W, K*K*C_in)

    acc = jnp.dot(patch, w_ref[...].astype(compute_dtype),
                  preferred_element_type=jnp.float32)           # (TH*W, C_out) f32
    acc = acc + b_ref[...].astype(jnp.float32)                  # (1, C_out) broadcasts
    if out_lrelu:
        acc = jnp.where(acc >= 0, acc, NEG_SLOPE * acc)

    # Fused BatchNorm batch statistics of the exact value written out.
    sum_ref[...] += jnp.sum(acc, axis=0, keepdims=True).reshape(1, 1, C_out)
    sq_ref[...] += jnp.sum(acc * acc, axis=0, keepdims=True).reshape(1, 1, C_out)

    y_ref[...] = acc.reshape(1, TH, W, C_out).astype(y_ref.dtype)


def _pick_conv_tile_h(H, W, Wp, c_in, c_out, k, dil, budget_bytes=_CONV_TILE_BUDGET):
    halo = (k - 1) * dil
    cands = [d for d in range(halo, H + 1, halo) if H % d == 0]
    assert cands, f"H={H} must be a multiple of the halo size {halo}"

    def est(th):
        in_blocks = (th + 2 * halo) * Wp * c_in * 4     # main + halo, ~double buffered
        out_block = th * W * c_out * 4
        patch = th * W * (k * k * c_in) * 4
        acc = th * W * c_out * 4
        wts = k * k * c_in * c_out * 4
        return 2 * (in_blocks + out_block) + patch + acc + wts

    fitting = [t for t in cands if est(t) <= budget_bytes] or [cands[0]]
    multi = [t for t in fitting if H // t >= 2]          # keep >=2 tiles for pipelining
    return max(multi) if multi else max(fitting)


def dilated_conv_fused(xp, w_mat, b, *, H, W, K, dil, pad, C_in, C_out,
                       input_affine=None, out_lrelu=False,
                       compute_dtype=jnp.float32, out_dtype=jnp.float32):
    """'Same' dilated conv over a pre-padded NHWC input, with fused bias, optional fused
    input BN-affine + LeakyReLU (masked at the padding), optional fused output LeakyReLU,
    and fused per-image BN batch statistics (channel sum / sum of squares)."""
    N, Hp, Wp, _ = xp.shape
    assert Hp == H + 2 * pad and Wp == W + 2 * pad
    assert pad == (K - 1) * dil // 2, "kernel assumes a 'same' dilated conv"
    halo = (K - 1) * dil

    tile_h = _pick_conv_tile_h(H, W, Wp, C_in, C_out, K, dil)
    n_h_tiles = H // tile_h
    halo_stride = tile_h // halo          # main tile i ends at halo-block (i+1)*halo_stride

    b2 = b.reshape(1, C_out).astype(jnp.float32)
    if input_affine is not None:
        sc, sh = input_affine
    else:
        sc = jnp.ones((C_in,), jnp.float32)
        sh = jnp.zeros((C_in,), jnp.float32)
    sc2 = sc.reshape(1, C_in).astype(jnp.float32)
    sh2 = sh.reshape(1, C_in).astype(jnp.float32)

    kernel = functools.partial(
        _conv_bn_stats_kernel, TH=tile_h, H=H, W=W, Wp=Wp, C_in=C_in, C_out=C_out,
        K=K, dil=dil, pad=pad, input_affine=input_affine is not None,
        out_lrelu=out_lrelu, compute_dtype=compute_dtype)

    y, ch_sum, ch_sq = pl.pallas_call(
        kernel,
        out_shape=(jax.ShapeDtypeStruct((N, H, W, C_out), out_dtype),
                   jax.ShapeDtypeStruct((N, 1, C_out), jnp.float32),
                   jax.ShapeDtypeStruct((N, 1, C_out), jnp.float32)),
        grid_spec=pltpu.PrefetchScalarGridSpec(
            num_scalar_prefetch=0,
            grid=(N, n_h_tiles),
            in_specs=[
                # main tile: padded rows [i*tile_h, (i+1)*tile_h)
                pl.BlockSpec((1, tile_h, Wp, C_in), lambda n, i: (n, i, 0, 0)),
                # dilation halo: padded rows [(i+1)*tile_h, (i+1)*tile_h + halo)
                pl.BlockSpec((1, halo, Wp, C_in),
                             lambda n, i: (n, (i + 1) * halo_stride, 0, 0)),
                pl.BlockSpec((K * K * C_in, C_out), lambda n, i: (0, 0)),  # weights resident
                pl.BlockSpec((1, C_out), lambda n, i: (0, 0)),
                pl.BlockSpec((1, C_in), lambda n, i: (0, 0)),
                pl.BlockSpec((1, C_in), lambda n, i: (0, 0)),
            ],
            out_specs=[
                pl.BlockSpec((1, tile_h, W, C_out), lambda n, i: (n, i, 0, 0)),
                pl.BlockSpec((1, 1, C_out), lambda n, i: (n, 0, 0)),
                pl.BlockSpec((1, 1, C_out), lambda n, i: (n, 0, 0)),
            ],
        ),
        compiler_params=pltpu.CompilerParams(
            # stats accumulate along the H-tile axis -> "arbitrary"; batch axis is parallel.
            dimension_semantics=("parallel", "arbitrary"),
            vmem_limit_bytes=VMEM_LIMIT_BYTES),
    )(xp, xp, w_mat, b2, sc2, sh2)
    return y, ch_sum, ch_sq


# ---------------------------------------------------------------------------
# Kernel C: tiled elementwise BatchNorm affine (no activation after it in Bridge)
# ---------------------------------------------------------------------------
def _bn_affine_kernel(y_ref, sc_ref, sh_ref, o_ref):
    C = sc_ref.shape[-1]
    y = y_ref[...].astype(jnp.float32)
    z = y * sc_ref[...].reshape(1, 1, 1, C) + sh_ref[...].reshape(1, 1, 1, C)
    o_ref[...] = z.astype(o_ref.dtype)


def bn_affine(y_nhwc, scale, shift):
    N, H, W, C = y_nhwc.shape
    cands = [d for d in range(1, H + 1) if H % d == 0]
    fitting = [d for d in cands if 4 * d * W * C * 4 <= _ELTW_TILE_BUDGET] or [1]
    multi = [d for d in fitting if H // d >= 2]
    tile_h = max(multi) if multi else max(fitting)
    n_h_tiles = H // tile_h
    return pl.pallas_call(
        _bn_affine_kernel,
        out_shape=jax.ShapeDtypeStruct((N, H, W, C), jnp.float32),
        grid_spec=pltpu.PrefetchScalarGridSpec(
            num_scalar_prefetch=0,
            grid=(N, n_h_tiles),
            in_specs=[
                pl.BlockSpec((1, tile_h, W, C), lambda n, i: (n, i, 0, 0)),
                pl.BlockSpec((1, C), lambda n, i: (0, 0)),
                pl.BlockSpec((1, C), lambda n, i: (0, 0)),
            ],
            out_specs=pl.BlockSpec((1, tile_h, W, C), lambda n, i: (n, i, 0, 0)),
        ),
        compiler_params=pltpu.CompilerParams(
            dimension_semantics=("parallel", "parallel"),
            vmem_limit_bytes=VMEM_LIMIT_BYTES),
    )(y_nhwc, scale.reshape(1, C).astype(jnp.float32),
      shift.reshape(1, C).astype(jnp.float32))


# ---------------------------------------------------------------------------
# Full Bridge forward
# ---------------------------------------------------------------------------
def bridge_forward(x_nchw, params, *, pad=2, dil=2, compute_dtype=jnp.float32):
    """Bridge.forward. NCHW in / NCHW out (PyTorch convention); NHWC inside the kernels.
    Use compute_dtype=jnp.bfloat16 at production sizes on v6e/v7x (MXU speed + halved
    activation traffic); f32 is kept for the small correctness test."""
    w1, b1, g1, be1, w2, b2, g2, be2 = params   # conv OIHW weights, BN gamma/beta
    N, C_in, H, W = x_nchw.shape
    C_mid, C_out = w1.shape[0], w2.shape[0]
    K = w1.shape[2]
    cnt = jnp.float32(N * H * W)

    # Layout plumbing outside the hot kernels: NCHW -> NHWC and spatial zero padding.
    # TODO(synk): fold the input transpose/pad and the final NHWC->NCHW transpose into the
    # conv / affine kernels to drop two more full HBM passes.
    x = jnp.transpose(x_nchw, (0, 2, 3, 1))
    xp = jnp.pad(x, ((0, 0), (pad, pad), (pad, pad), (0, 0)))

    # Conv weights: OIHW -> (KH*KW*Cin, Cout), matching the im2col tap ordering.
    w1m = jnp.transpose(w1, (2, 3, 1, 0)).reshape(K * K * C_in, C_mid)
    w2m = jnp.transpose(w2, (2, 3, 1, 0)).reshape(K * K * C_mid, C_out)

    # --- conv1 + bias, with fused BN1 batch statistics ---
    y1, s1, sq1 = dilated_conv_fused(
        xp, w1m, b1, H=H, W=W, K=K, dil=dil, pad=pad, C_in=C_in, C_out=C_mid,
        input_affine=None, out_lrelu=False, compute_dtype=compute_dtype)
    mean1 = jnp.sum(s1, axis=(0, 1)) / cnt
    var1 = jnp.sum(sq1, axis=(0, 1)) / cnt - mean1 * mean1   # biased var (train-mode BN)
    scale1 = g1 / jnp.sqrt(var1 + BN_EPS)
    shift1 = be1 - mean1 * scale1

    # --- BN1 affine + LeakyReLU fused into conv2's input window (masked at the padding),
    #     conv2 + bias + LeakyReLU, with fused BN2 batch statistics ---
    y1p = jnp.pad(y1, ((0, 0), (pad, pad), (pad, pad), (0, 0)))
    y2, s2, sq2 = dilated_conv_fused(
        y1p, w2m, b2, H=H, W=W, K=K, dil=dil, pad=pad, C_in=C_mid, C_out=C_out,
        input_affine=(scale1, shift1), out_lrelu=True, compute_dtype=compute_dtype)
    mean2 = jnp.sum(s2, axis=(0, 1)) / cnt
    var2 = jnp.sum(sq2, axis=(0, 1)) / cnt - mean2 * mean2
    scale2 = g2 / jnp.sqrt(var2 + BN_EPS)
    shift2 = be2 - mean2 * scale2

    # --- final BN2 affine ---
    out = bn_affine(y2, scale2, shift2)
    return jnp.transpose(out, (0, 3, 1, 2))      # NHWC -> NCHW


# ---------------------------------------------------------------------------
# Pure-JAX reference (for correctness check)
# ---------------------------------------------------------------------------
def reference_forward(x, params, *, pad=2, dil=2):
    w1, b1, g1, be1, w2, b2, g2, be2 = params
    dn = ('NCHW', 'OIHW', 'NCHW')

    def bn(y, g, b):
        mean = y.mean(axis=(0, 2, 3))
        var = y.var(axis=(0, 2, 3))
        yn = (y - mean[None, :, None, None]) / jnp.sqrt(var[None, :, None, None] + BN_EPS)
        return yn * g[None, :, None, None] + b[None, :, None, None]

    def lrelu(y):
        return jnp.where(y >= 0, y, NEG_SLOPE * y)

    y = lax.conv_general_dilated(x, w1, (1, 1), [(pad, pad), (pad, pad)],
                                 rhs_dilation=(dil, dil), dimension_numbers=dn)
    y = y + b1[None, :, None, None]
    y = lrelu(bn(y, g1, be1))
    y = lax.conv_general_dilated(y, w2, (1, 1), [(pad, pad), (pad, pad)],
                                 rhs_dilation=(dil, dil), dimension_numbers=dn)
    y = y + b2[None, :, None, None]
    y = lrelu(y)
    return bn(y, g2, be2)


if __name__ == "__main__":
    N, C_in, C_mid, C_out, H, W = 2, 4, 8, 8, 16, 16
    keys = jax.random.split(jax.random.PRNGKey(0), 9)

    # Deterministic synthetic parameters (PyTorch shapes: Conv OIHW, BN gamma/beta).
    w1 = 0.1 * jax.random.normal(keys[0], (C_mid, C_in, 3, 3), jnp.float32)
    b1 = 0.1 * jax.random.normal(keys[1], (C_mid,), jnp.float32)
    g1 = 1.0 + 0.1 * jax.random.normal(keys[2], (C_mid,), jnp.float32)
    be1 = 0.1 * jax.random.normal(keys[3], (C_mid,), jnp.float32)
    w2 = 0.1 * jax.random.normal(keys[4], (C_out, C_mid, 3, 3), jnp.float32)
    b2 = 0.1 * jax.random.normal(keys[5], (C_out,), jnp.float32)
    g2 = 1.0 + 0.1 * jax.random.normal(keys[6], (C_out,), jnp.float32)
    be2 = 0.1 * jax.random.normal(keys[7], (C_out,), jnp.float32)
    params = (w1, b1, g1, be1, w2, b2, g2, be2)

    x = jax.random.normal(keys[8], (N, C_in, H, W), jnp.float32)

    fwd = jax.jit(bridge_forward)
    out = jax.block_until_ready(fwd(x, params))
    ref = jax.block_until_ready(reference_forward(x, params))

    assert out.shape == (N, C_out, H, W)
    max_err = float(jnp.max(jnp.abs(out - ref)))
    assert jnp.allclose(out, ref, atol=2e-3, rtol=2e-3), max_err

    print("KERNEL_OK")
</pallas_src>

<mosaic_0001>
module attributes {stable_mosaic.version = 11 : i64} {
  func.func @_conv_bn_stats_kernel(%arg0: i32, %arg1: i32, %arg2: memref<1x8x20x4xf32, #tpu.memory_space<vmem>>, %arg3: memref<1x4x20x4xf32, #tpu.memory_space<vmem>>, %arg4: memref<36x8xf32, #tpu.memory_space<vmem>>, %arg5: memref<1x8xf32, #tpu.memory_space<vmem>>, %arg6: memref<1x4xf32, #tpu.memory_space<vmem>>, %arg7: memref<1x4xf32, #tpu.memory_space<vmem>>, %arg8: memref<1x8x16x8xf32, #tpu.memory_space<vmem>>, %arg9: memref<1x1x8xf32, #tpu.memory_space<vmem>>, %arg10: memref<1x1x8xf32, #tpu.memory_space<vmem>>) attributes {dimension_semantics = [#tpu.dimension_semantics<parallel>, #tpu.dimension_semantics<arbitrary>], iteration_bounds = array<i64: 2, 2>, scalar_prefetch = 0 : i64, scratch_operands = 0 : i64, tpu.core_type = #tpu.core_type<tc>, window_params = [{transform_indices = @transform_0, window_bounds = array<i64: 1, 8, 20, 4>}, {transform_indices = @transform_1, window_bounds = array<i64: 1, 4, 20, 4>}, {pipeline_mode = #tpu.pipeline_mode<synchronous>, transform_indices = @transform_2, window_bounds = array<i64: 36, 8>}, {pipeline_mode = #tpu.pipeline_mode<synchronous>, transform_indices = @transform_3, window_bounds = array<i64: 1, 8>}, {pipeline_mode = #tpu.pipeline_mode<synchronous>, transform_indices = @transform_4, window_bounds = array<i64: 1, 4>}, {pipeline_mode = #tpu.pipeline_mode<synchronous>, transform_indices = @transform_5, window_bounds = array<i64: 1, 4>}, {transform_indices = @transform_6, window_bounds = array<i64: 1, 8, 16, 8>}, {transform_indices = @transform_7, window_bounds = array<i64: 1, 1, 8>}, {transform_indices = @transform_8, window_bounds = array<i64: 1, 1, 8>}]} {
    %c0_i32 = arith.constant 0 : i32
    %0 = arith.cmpi eq, %arg1, %c0_i32 : i32
    %1 = arith.extui %0 : i1 to i32
    %c0_i32_0 = arith.constant 0 : i32
    %2 = arith.cmpi ne, %1, %c0_i32_0 : i32
    scf.if %2 {
      %cst_30 = arith.constant 0.000000e+00 : f32
      %47 = vector.broadcast %cst_30 : f32 to vector<1x1x8xf32>
      %c0_31 = arith.constant 0 : index
      %c0_32 = arith.constant 0 : index
      %c0_33 = arith.constant 0 : index
      %48 = vector.load %arg9[%c0_31, %c0_32, %c0_33] : memref<1x1x8xf32, #tpu.memory_space<vmem>>, vector<1x1x8xf32>
      tpu.vector_store %arg9[%c0_31, %c0_32, %c0_33], %47 {strides = array<i32>} : memref<1x1x8xf32, #tpu.memory_space<vmem>>, vector<1x1x8xf32>,
      %cst_34 = arith.constant 0.000000e+00 : f32
      %49 = vector.broadcast %cst_34 : f32 to vector<1x1x8xf32>
      %c0_35 = arith.constant 0 : index
      %c0_36 = arith.constant 0 : index
      %c0_37 = arith.constant 0 : index
      %50 = vector.load %arg10[%c0_35, %c0_36, %c0_37] : memref<1x1x8xf32, #tpu.memory_space<vmem>>, vector<1x1x8xf32>
      tpu.vector_store %arg10[%c0_35, %c0_36, %c0_37], %49 {strides = array<i32>} : memref<1x1x8xf32, #tpu.memory_space<vmem>>, vector<1x1x8xf32>,
    } else {
    }
    %c0 = arith.constant 0 : index
    %c0_1 = arith.constant 0 : index
    %c0_2 = arith.constant 0 : index
    %c0_3 = arith.constant 0 : index
    %3 = vector.load %arg2[%c0, %c0_1, %c0_2, %c0_3] : memref<1x8x20x4xf32, #tpu.memory_space<vmem>>, vector<1x8x20x4xf32>
    %4 = vector.shape_cast %3 : vector<1x8x20x4xf32> to vector<8x20x4xf32>
    %c0_4 = arith.constant 0 : index
    %c0_5 = arith.constant 0 : index
    %c0_6 = arith.constant 0 : index
    %c0_7 = arith.constant 0 : index
    %5 = vector.load %arg3[%c0_4, %c0_5, %c0_6, %c0_7] : memref<1x4x20x4xf32, #tpu.memory_space<vmem>>, vector<1x4x20x4xf32>
    %6 = vector.shape_cast %5 : vector<1x4x20x4xf32> to vector<4x20x4xf32>
    %7 = tpu.concatenate %4, %6 in 0 : vector<8x20x4xf32>, vector<4x20x4xf32> -> vector<12x20x4xf32>
    %8 = vector.extract_strided_slice %7 {offsets = [0, 0, 0], sizes = [8, 16, 4], strides = [1, 1, 1]} : vector<12x20x4xf32> to vector<8x16x4xf32>
    %9 = vector.shape_cast %8 : vector<8x16x4xf32> to vector<128x4xf32>
    %10 = vector.extract_strided_slice %7 {offsets = [0, 2, 0], sizes = [8, 16, 4], strides = [1, 1, 1]} : vector<12x20x4xf32> to vector<8x16x4xf32>
    %11 = vector.shape_cast %10 : vector<8x16x4xf32> to vector<128x4xf32>
    %12 = vector.extract_strided_slice %7 {offsets = [0, 4, 0], sizes = [8, 16, 4], strides = [1, 1, 1]} : vector<12x20x4xf32> to vector<8x16x4xf32>
    %13 = vector.shape_cast %12 : vector<8x16x4xf32> to vector<128x4xf32>
    %14 = vector.extract_strided_slice %7 {offsets = [2, 0, 0], sizes = [8, 16, 4], strides = [1, 1, 1]} : vector<12x20x4xf32> to vector<8x16x4xf32>
    %15 = vector.shape_cast %14 : vector<8x16x4xf32> to vector<128x4xf32>
    %16 = vector.extract_strided_slice %7 {offsets = [2, 2, 0], sizes = [8, 16, 4], strides = [1, 1, 1]} : vector<12x20x4xf32> to vector<8x16x4xf32>
    %17 = vector.shape_cast %16 : vector<8x16x4xf32> to vector<128x4xf32>
    %18 = vector.extract_strided_slice %7 {offsets = [2, 4, 0], sizes = [8, 16, 4], strides = [1, 1, 1]} : vector<12x20x4xf32> to vector<8x16x4xf32>
    %19 = vector.shape_cast %18 : vector<8x16x4xf32> to vector<128x4xf32>
    %20 = vector.extract_strided_slice %7 {offsets = [4, 0, 0], sizes = [8, 16, 4], strides = [1, 1, 1]} : vector<12x20x4xf32> to vector<8x16x4xf32>
    %21 = vector.shape_cast %20 : vector<8x16x4xf32> to vector<128x4xf32>
    %22 = vector.extract_strided_slice %7 {offsets = [4, 2, 0], sizes = [8, 16, 4], strides = [1, 1, 1]} : vector<12x20x4xf32> to vector<8x16x4xf32>
    %23 = vector.shape_cast %22 : vector<8x16x4xf32> to vector<128x4xf32>
    %24 = vector.extract_strided_slice %7 {offsets = [4, 4, 0], sizes = [8, 16, 4], strides = [1, 1, 1]} : vector<12x20x4xf32> to vector<8x16x4xf32>
    %25 = vector.shape_cast %24 : vector<8x16x4xf32> to vector<128x4xf32>
    %26 = tpu.concatenate %9, %11, %13, %15, %17, %19, %21, %23, %25 in 1 : vector<128x4xf32>, vector<128x4xf32>, vector<128x4xf32>, vector<128x4xf32>, vector<128x4xf32>, vector<128x4xf32>, vector<128x4xf32>, vector<128x4xf32>, vector<128x4xf32> -> vector<128x36xf32>
    %c0_8 = arith.constant 0 : index
    %c0_9 = arith.constant 0 : index
    %27 = vector.load %arg4[%c0_8, %c0_9] : memref<36x8xf32, #tpu.memory_space<vmem>>, vector<36x8xf32>
    %cst = arith.constant dense<0.000000e+00> : vector<128x8xf32>
    %28 = tpu.matmul %26, %27, %cst {dimension_numbers = #tpu.dot_dimension_numbers<[1], [0], [0], [1], [0, 0, 1, 1], [], []>} : vector<128x36xf32>, vector<36x8xf32>, vector<128x8xf32> -> vector<128x8xf32>
    %c0_10 = arith.constant 0 : index
    %c0_11 = arith.constant 0 : index
    %29 = vector.load %arg5[%c0_10, %c0_11] : memref<1x8xf32, #tpu.memory_space<vmem>>, vector<1x8xf32>
    %30 = vector.broadcast %29 : vector<1x8xf32> to vector<128x8xf32>
    %31 = arith.addf %28, %30 : vector<128x8xf32>
    %c0_12 = arith.constant 0 : index
    %c0_13 = arith.constant 0 : index
    %c0_14 = arith.constant 0 : index
    %32 = vector.load %arg9[%c0_12, %c0_13, %c0_14] : memref<1x1x8xf32, #tpu.memory_space<vmem>>, vector<1x1x8xf32>
    %cst_15 = arith.constant dense<0.000000e+00> : vector<8xf32>
    %33 = vector.multi_reduction <add>, %31, %cst_15 [0] : vector<128x8xf32> to vector<8xf32>
    %34 = vector.shape_cast %33 : vector<8xf32> to vector<1x8xf32>
    %35 = vector.shape_cast %34 : vector<1x8xf32> to vector<1x1x8xf32>
    %36 = arith.addf %32, %35 : vector<1x1x8xf32>
    %c0_16 = arith.constant 0 : index
    %c0_17 = arith.constant 0 : index
    %c0_18 = arith.constant 0 : index
    %37 = vector.load %arg9[%c0_16, %c0_17, %c0_18] : memref<1x1x8xf32, #tpu.memory_space<vmem>>, vector<1x1x8xf32>
    tpu.vector_store %arg9[%c0_16, %c0_17, %c0_18], %36 {strides = array<i32>} : memref<1x1x8xf32, #tpu.memory_space<vmem>>, vector<1x1x8xf32>,
    %c0_19 = arith.constant 0 : index
    %c0_20 = arith.constant 0 : index
    %c0_21 = arith.constant 0 : index
    %38 = vector.load %arg10[%c0_19, %c0_20, %c0_21] : memref<1x1x8xf32, #tpu.memory_space<vmem>>, vector<1x1x8xf32>
    %39 = arith.mulf %31, %31 : vector<128x8xf32>
    %cst_22 = arith.constant dense<0.000000e+00> : vector<8xf32>
    %40 = vector.multi_reduction <add>, %39, %cst_22 [0] : vector<128x8xf32> to vector<8xf32>
    %41 = vector.shape_cast %40 : vector<8xf32> to vector<1x8xf32>
    %42 = vector.shape_cast %41 : vector<1x8xf32> to vector<1x1x8xf32>
    %43 = arith.addf %38, %42 : vector<1x1x8xf32>
    %c0_23 = arith.constant 0 : index
    %c0_24 = arith.constant 0 : index
    %c0_25 = arith.constant 0 : index
    %44 = vector.load %arg10[%c0_23, %c0_24, %c0_25] : memref<1x1x8xf32, #tpu.memory_space<vmem>>, vector<1x1x8xf32>
    tpu.vector_store %arg10[%c0_23, %c0_24, %c0_25], %43 {strides = array<i32>} : memref<1x1x8xf32, #tpu.memory_space<vmem>>, vector<1x1x8xf32>,
    %45 = vector.shape_cast %31 : vector<128x8xf32> to vector<1x8x16x8xf32>
    %c0_26 = arith.constant 0 : index
    %c0_27 = arith.constant 0 : index
    %c0_28 = arith.constant 0 : index
    %c0_29 = arith.constant 0 : index
    %46 = vector.load %arg8[%c0_26, %c0_27, %c0_28, %c0_29] : memref<1x8x16x8xf32, #tpu.memory_space<vmem>>, vector<1x8x16x8xf32>
    tpu.vector_store %arg8[%c0_26, %c0_27, %c0_28, %c0_29], %45 {strides = array<i32>} : memref<1x8x16x8xf32, #tpu.memory_space<vmem>>, vector<1x8x16x8xf32>,
    return
  }
  func.func @transform_0(%arg0: i32, %arg1: i32) -> (i32, i32, i32, i32) {
    %c0_i32 = arith.constant 0 : i32
    %c0_i32_0 = arith.constant 0 : i32
    %c0_i32_1 = arith.constant 0 : i32
    return %arg0, %arg1, %c0_i32, %c0_i32_0 : i32, i32, i32, i32
  }
  func.func @transform_1(%arg0: i32, %arg1: i32) -> (i32, i32, i32, i32) {
    %c1_i32 = arith.constant 1 : i32
    %0 = arith.addi %arg1, %c1_i32 : i32
    %c2_i32 = arith.constant 2 : i32
    %1 = arith.muli %0, %c2_i32 : i32
    %c0_i32 = arith.constant 0 : i32
    %c0_i32_0 = arith.constant 0 : i32
    %c0_i32_1 = arith.constant 0 : i32
    return %arg0, %1, %c0_i32, %c0_i32_0 : i32, i32, i32, i32
  }
  func.func @transform_2(%arg0: i32, %arg1: i32) -> (i32, i32) {
    %c0_i32 = arith.constant 0 : i32
    %c0_i32_0 = arith.constant 0 : i32
    %c0_i32_1 = arith.constant 0 : i32
    return %c0_i32, %c0_i32_0 : i32, i32
  }
  func.func @transform_3(%arg0: i32, %arg1: i32) -> (i32, i32) {
    %c0_i32 = arith.constant 0 : i32
    %c0_i32_0 = arith.constant 0 : i32
    %c0_i32_1 = arith.constant 0 : i32
    return %c0_i32, %c0_i32_0 : i32, i32
  }
  func.func @transform_4(%arg0: i32, %arg1: i32) -> (i32, i32) {
    %c0_i32 = arith.constant 0 : i32
    %c0_i32_0 = arith.constant 0 : i32
    %c0_i32_1 = arith.constant 0 : i32
    return %c0_i32, %c0_i32_0 : i32, i32
  }
  func.func @transform_5(%arg0: i32, %arg1: i32) -> (i32, i32) {
    %c0_i32 = arith.constant 0 : i32
    %c0_i32_0 = arith.constant 0 : i32
    %c0_i32_1 = arith.constant 0 : i32
    return %c0_i32, %c0_i32_0 : i32, i32
  }
  func.func @transform_6(%arg0: i32, %arg1: i32) -> (i32, i32, i32, i32) {
    %c0_i32 = arith.constant 0 : i32
    %c0_i32_0 = arith.constant 0 : i32
    %c0_i32_1 = arith.constant 0 : i32
    return %arg0, %arg1, %c0_i32, %c0_i32_0 : i32, i32, i32, i32
  }
  func.func @transform_7(%arg0: i32, %arg1: i32) -> (i32, i32, i32) {
    %c0_i32 = arith.constant 0 : i32
    %c0_i32_0 = arith.constant 0 : i32
    %c0_i32_1 = arith.constant 0 : i32
    return %arg0, %c0_i32, %c0_i32_0 : i32, i32, i32
  }
  func.func @transform_8(%arg0: i32, %arg1: i32) -> (i32, i32, i32) {
    %c0_i32 = arith.constant 0 : i32
    %c0_i32_0 = arith.constant 0 : i32
    %c0_i32_1 = arith.constant 0 : i32
    return %arg0, %c0_i32, %c0_i32_0 : i32, i32, i32
  }
}

module attributes {stable_mosaic.version = 11 : i64} {
  func.func @_bn_affine_kernel(%arg0: i32, %arg1: i32, %arg2: memref<1x8x16x8xf32, #tpu.memory_space<vmem>>, %arg3: memref<1x8xf32, #tpu.memory_space<vmem>>, %arg4: memref<1x8xf32, #tpu.memory_space<vmem>>, %arg5: memref<1x8x16x8xf32, #tpu.memory_space<vmem>>) attributes {dimension_semantics = [#tpu.dimension_semantics<parallel>, #tpu.dimension_semantics<parallel>], iteration_bounds = array<i64: 2, 2>, scalar_prefetch = 0 : i64, scratch_operands = 0 : i64, tpu.core_type = #tpu.core_type<tc>, window_params = [{transform_indices = @transform_0, window_bounds = array<i64: 1, 8, 16, 8>}, {pipeline_mode = #tpu.pipeline_mode<synchronous>, transform_indices = @transform_1, window_bounds = array<i64: 1, 8>}, {pipeline_mode = #tpu.pipeline_mode<synchronous>, transform_indices = @transform_2, window_bounds = array<i64: 1, 8>}, {transform_indices = @transform_3, window_bounds = array<i64: 1, 8, 16, 8>}]} {
    %c0 = arith.constant 0 : index
    %c0_0 = arith.constant 0 : index
    %c0_1 = arith.constant 0 : index
    %c0_2 = arith.constant 0 : index
    %0 = vector.load %arg2[%c0, %c0_0, %c0_1, %c0_2] : memref<1x8x16x8xf32, #tpu.memory_space<vmem>>, vector<1x8x16x8xf32>
    %c0_3 = arith.constant 0 : index
    %c0_4 = arith.constant 0 : index
    %1 = vector.load %arg3[%c0_3, %c0_4] : memref<1x8xf32, #tpu.memory_space<vmem>>, vector<1x8xf32>
    %2 = vector.shape_cast %1 : vector<1x8xf32> to vector<1x1x1x8xf32>
    %3 = vector.broadcast %2 : vector<1x1x1x8xf32> to vector<1x8x16x8xf32>
    %4 = arith.mulf %0, %3 : vector<1x8x16x8xf32>
    %c0_5 = arith.constant 0 : index
    %c0_6 = arith.constant 0 : index
    %5 = vector.load %arg4[%c0_5, %c0_6] : memref<1x8xf32, #tpu.memory_space<vmem>>, vector<1x8xf32>
    %6 = vector.shape_cast %5 : vector<1x8xf32> to vector<1x1x1x8xf32>
    %7 = vector.broadcast %6 : vector<1x1x1x8xf32> to vector<1x8x16x8xf32>
    %8 = arith.addf %4, %7 : vector<1x8x16x8xf32>
    %c0_7 = arith.constant 0 : index
    %c0_8 = arith.constant 0 : index
    %c0_9 = arith.constant 0 : index
    %c0_10 = arith.constant 0 : index
    %9 = vector.load %arg5[%c0_7, %c0_8, %c0_9, %c0_10] : memref<1x8x16x8xf32, #tpu.memory_space<vmem>>, vector<1x8x16x8xf32>
    tpu.vector_store %arg5[%c0_7, %c0_8, %c0_9, %c0_10], %8 {strides = array<i32>} : memref<1x8x16x8xf32, #tpu.memory_space<vmem>>, vector<1x8x16x8xf32>,
    return
  }
  func.func @transform_0(%arg0: i32, %arg1: i32) -> (i32, i32, i32, i32) {
    %c0_i32 = arith.constant 0 : i32
    %c0_i32_0 = arith.constant 0 : i32
    %c0_i32_1 = arith.constant 0 : i32
    return %arg0, %arg1, %c0_i32, %c0_i32_0 : i32, i32, i32, i32
  }
  func.func @transform_1(%arg0: i32, %arg1: i32) -> (i32, i32) {
    %c0_i32 = arith.constant 0 : i32
    %c0_i32_0 = arith.constant 0 : i32
    %c0_i32_1 = arith.constant 0 : i32
    return %c0_i32, %c0_i32_0 : i32, i32
  }
  func.func @transform_2(%arg0: i32, %arg1: i32) -> (i32, i32) {
    %c0_i32 = arith.constant 0 : i32
    %c0_i32_0 = arith.constant 0 : i32
    %c0_i32_1 = arith.constant 0 : i32
    return %c0_i32, %c0_i32_0 : i32, i32
  }
  func.func @transform_3(%arg0: i32, %arg1: i32) -> (i32, i32, i32, i32) {
    %c0_i32 = arith.constant 0 : i32
    %c0_i32_0 = arith.constant 0 : i32
    %c0_i32_1 = arith.constant 0 : i32
    return %arg0, %arg1, %c0_i32, %c0_i32_0 : i32, i32, i32, i32
  }
}

module attributes {stable_mosaic.version = 11 : i64} {
  func.func @_conv_bn_stats_kernel(%arg0: i32, %arg1: i32, %arg2: memref<1x8x20x8xf32, #tpu.memory_space<vmem>>, %arg3: memref<1x4x20x8xf32, #tpu.memory_space<vmem>>, %arg4: memref<72x8xf32, #tpu.memory_space<vmem>>, %arg5: memref<1x8xf32, #tpu.memory_space<vmem>>, %arg6: memref<1x8xf32, #tpu.memory_space<vmem>>, %arg7: memref<1x8xf32, #tpu.memory_space<vmem>>, %arg8: memref<1x8x16x8xf32, #tpu.memory_space<vmem>>, %arg9: memref<1x1x8xf32, #tpu.memory_space<vmem>>, %arg10: memref<1x1x8xf32, #tpu.memory_space<vmem>>) attributes {dimension_semantics = [#tpu.dimension_semantics<parallel>, #tpu.dimension_semantics<arbitrary>], iteration_bounds = array<i64: 2, 2>, scalar_prefetch = 0 : i64, scratch_operands = 0 : i64, tpu.core_type = #tpu.core_type<tc>, window_params = [{transform_indices = @transform_0, window_bounds = array<i64: 1, 8, 20, 8>}, {transform_indices = @transform_1, window_bounds = array<i64: 1, 4, 20, 8>}, {pipeline_mode = #tpu.pipeline_mode<synchronous>, transform_indices = @transform_2, window_bounds = array<i64: 72, 8>}, {pipeline_mode = #tpu.pipeline_mode<synchronous>, transform_indices = @transform_3, window_bounds = array<i64: 1, 8>}, {pipeline_mode = #tpu.pipeline_mode<synchronous>, transform_indices = @transform_4, window_bounds = array<i64: 1, 8>}, {pipeline_mode = #tpu.pipeline_mode<synchronous>, transform_indices = @transform_5, window_bounds = array<i64: 1, 8>}, {transform_indices = @transform_6, window_bounds = array<i64: 1, 8, 16, 8>}, {transform_indices = @transform_7, window_bounds = array<i64: 1, 1, 8>}, {transform_indices = @transform_8, window_bounds = array<i64: 1, 1, 8>}]} {
    %c0_i32 = arith.constant 0 : i32
    %0 = arith.cmpi eq, %arg1, %c0_i32 : i32
    %1 = arith.extui %0 : i1 to i32
    %c0_i32_0 = arith.constant 0 : i32
    %2 = arith.cmpi ne, %1, %c0_i32_0 : i32
    scf.if %2 {
      %cst_41 = arith.constant 0.000000e+00 : f32
      %83 = vector.broadcast %cst_41 : f32 to vector<1x1x8xf32>
      %c0_42 = arith.constant 0 : index
      %c0_43 = arith.constant 0 : index
      %c0_44 = arith.constant 0 : index
      %84 = vector.load %arg9[%c0_42, %c0_43, %c0_44] : memref<1x1x8xf32, #tpu.memory_space<vmem>>, vector<1x1x8xf32>
      tpu.vector_store %arg9[%c0_42, %c0_43, %c0_44], %83 {strides = array<i32>} : memref<1x1x8xf32, #tpu.memory_space<vmem>>, vector<1x1x8xf32>,
      %cst_45 = arith.constant 0.000000e+00 : f32
      %85 = vector.broadcast %cst_45 : f32 to vector<1x1x8xf32>
      %c0_46 = arith.constant 0 : index
      %c0_47 = arith.constant 0 : index
      %c0_48 = arith.constant 0 : index
      %86 = vector.load %arg10[%c0_46, %c0_47, %c0_48] : memref<1x1x8xf32, #tpu.memory_space<vmem>>, vector<1x1x8xf32>
      tpu.vector_store %arg10[%c0_46, %c0_47, %c0_48], %85 {strides = array<i32>} : memref<1x1x8xf32, #tpu.memory_space<vmem>>, vector<1x1x8xf32>,
    } else {
    }
    %c0 = arith.constant 0 : index
    %c0_1 = arith.constant 0 : index
    %c0_2 = arith.constant 0 : index
    %c0_3 = arith.constant 0 : index
    %3 = vector.load %arg2[%c0, %c0_1, %c0_2, %c0_3] : memref<1x8x20x8xf32, #tpu.memory_space<vmem>>, vector<1x8x20x8xf32>
    %4 = vector.shape_cast %3 : vector<1x8x20x8xf32> to vector<8x20x8xf32>
    %c0_4 = arith.constant 0 : index
    %c0_5 = arith.constant 0 : index
    %c0_6 = arith.constant 0 : index
    %c0_7 = arith.constant 0 : index
    %5 = vector.load %arg3[%c0_4, %c0_5, %c0_6, %c0_7] : memref<1x4x20x8xf32, #tpu.memory_space<vmem>>, vector<1x4x20x8xf32>
    %6 = vector.shape_cast %5 : vector<1x4x20x8xf32> to vector<4x20x8xf32>
    %7 = tpu.concatenate %4, %6 in 0 : vector<8x20x8xf32>, vector<4x20x8xf32> -> vector<12x20x8xf32>
    %c0_8 = arith.constant 0 : index
    %c0_9 = arith.constant 0 : index
    %8 = vector.load %arg6[%c0_8, %c0_9] : memref<1x8xf32, #tpu.memory_space<vmem>>, vector<1x8xf32>
    %9 = vector.shape_cast %8 : vector<1x8xf32> to vector<1x1x8xf32>
    %10 = vector.broadcast %9 : vector<1x1x8xf32> to vector<12x20x8xf32>
    %11 = arith.mulf %7, %10 : vector<12x20x8xf32>
    %c0_10 = arith.constant 0 : index
    %c0_11 = arith.constant 0 : index
    %12 = vector.load %arg7[%c0_10, %c0_11] : memref<1x8xf32, #tpu.memory_space<vmem>>, vector<1x8xf32>
    %13 = vector.shape_cast %12 : vector<1x8xf32> to vector<1x1x8xf32>
    %14 = vector.broadcast %13 : vector<1x1x8xf32> to vector<12x20x8xf32>
    %15 = arith.addf %11, %14 : vector<12x20x8xf32>
    %cst = arith.constant 0.000000e+00 : f32
    %16 = vector.broadcast %cst : f32 to vector<12x20x8xf32>
    %17 = arith.cmpf oge, %15, %16 : vector<12x20x8xf32>
    %cst_12 = arith.constant 0.00999999977 : f32
    %18 = vector.broadcast %cst_12 : f32 to vector<12x20x8xf32>
    %19 = arith.mulf %18, %15 : vector<12x20x8xf32>
    %20 = arith.select %17, %15, %19 : vector<12x20x8xi1>, vector<12x20x8xf32>
    %c8_i32 = arith.constant 8 : i32
    %21 = arith.muli %arg1, %c8_i32 : i32
    %22 = tpu.iota {dimensions = array<i32: 0>} : vector<12x20x8xi32>
    %23 = vector.broadcast %21 : i32 to vector<12x20x8xi32>
    %24 = arith.addi %23, %22 : vector<12x20x8xi32>
    %25 = tpu.iota {dimensions = array<i32: 1>} : vector<12x20x8xi32>
    %c2_i32 = arith.constant 2 : i32
    %26 = vector.broadcast %c2_i32 : i32 to vector<12x20x8xi32>
    %27 = arith.cmpi sge, %24, %26 : vector<12x20x8xi32>
    %c18_i32 = arith.constant 18 : i32
    %28 = vector.broadcast %c18_i32 : i32 to vector<12x20x8xi32>
    %29 = arith.cmpi slt, %24, %28 : vector<12x20x8xi32>
    %30 = arith.andi %27, %29 : vector<12x20x8xi1>
    %c2_i32_13 = arith.constant 2 : i32
    %31 = vector.broadcast %c2_i32_13 : i32 to vector<12x20x8xi32>
    %32 = arith.cmpi sge, %25, %31 : vector<12x20x8xi32>
    %33 = arith.andi %30, %32 : vector<12x20x8xi1>
    %c18_i32_14 = arith.constant 18 : i32
    %34 = vector.broadcast %c18_i32_14 : i32 to vector<12x20x8xi32>
    %35 = arith.cmpi slt, %25, %34 : vector<12x20x8xi32>
    %36 = arith.andi %33, %35 : vector<12x20x8xi1>
    %cst_15 = arith.constant 0.000000e+00 : f32
    %37 = vector.broadcast %cst_15 : f32 to vector<12x20x8xf32>
    %38 = arith.select %36, %20, %37 : vector<12x20x8xi1>, vector<12x20x8xf32>
    %39 = vector.extract_strided_slice %38 {offsets = [0, 0, 0], sizes = [8, 16, 8], strides = [1, 1, 1]} : vector<12x20x8xf32> to vector<8x16x8xf32>
    %40 = vector.shape_cast %39 : vector<8x16x8xf32> to vector<128x8xf32>
    %41 = vector.extract_strided_slice %38 {offsets = [0, 2, 0], sizes = [8, 16, 8], strides = [1, 1, 1]} : vector<12x20x8xf32> to vector<8x16x8xf32>
    %42 = vector.shape_cast %41 : vector<8x16x8xf32> to vector<128x8xf32>
    %43 = vector.extract_strided_slice %38 {offsets = [0, 4, 0], sizes = [8, 16, 8], strides = [1, 1, 1]} : vector<12x20x8xf32> to vector<8x16x8xf32>
    %44 = vector.shape_cast %43 : vector<8x16x8xf32> to vector<128x8xf32>
    %45 = vector.extract_strided_slice %38 {offsets = [2, 0, 0], sizes = [8, 16, 8], strides = [1, 1, 1]} : vector<12x20x8xf32> to vector<8x16x8xf32>
    %46 = vector.shape_cast %45 : vector<8x16x8xf32> to vector<128x8xf32>
    %47 = vector.extract_strided_slice %38 {offsets = [2, 2, 0], sizes = [8, 16, 8], strides = [1, 1, 1]} : vector<12x20x8xf32> to vector<8x16x8xf32>
    %48 = vector.shape_cast %47 : vector<8x16x8xf32> to vector<128x8xf32>
    %49 = vector.extract_strided_slice %38 {offsets = [2, 4, 0], sizes = [8, 16, 8], strides = [1, 1, 1]} : vector<12x20x8xf32> to vector<8x16x8xf32>
    %50 = vector.shape_cast %49 : vector<8x16x8xf32> to vector<128x8xf32>
    %51 = vector.extract_strided_slice %38 {offsets = [4, 0, 0], sizes = [8, 16, 8], strides = [1, 1, 1]} : vector<12x20x8xf32> to vector<8x16x8xf32>
    %52 = vector.shape_cast %51 : vector<8x16x8xf32> to vector<128x8xf32>
    %53 = vector.extract_strided_slice %38 {offsets = [4, 2, 0], sizes = [8, 16, 8], strides = [1, 1, 1]} : vector<12x20x8xf32> to vector<8x16x8xf32>
    %54 = vector.shape_cast %53 : vector<8x16x8xf32> to vector<128x8xf32>
    %55 = vector.extract_strided_slice %38 {offsets = [4, 4, 0], sizes = [8, 16, 8], strides = [1, 1, 1]} : vector<12x20x8xf32> to vector<8x16x8xf32>
    %56 = vector.shape_cast %55 : vector<8x16x8xf32> to vector<128x8xf32>
    %57 = tpu.concatenate %40, %42, %44, %46, %48, %50, %52, %54, %56 in 1 : vector<128x8xf32>, vector<128x8xf32>, vector<128x8xf32>, vector<128x8xf32>, vector<128x8xf32>, vector<128x8xf32>, vector<128x8xf32>, vector<128x8xf32>, vector<128x8xf32> -> vector<128x72xf32>
    %c0_16 = arith.constant 0 : index
    %c0_17 = arith.constant 0 : index
    %58 = vector.load %arg4[%c0_16, %c0_17] : memref<72x8xf32, #tpu.memory_space<vmem>>, vector<72x8xf32>
    %cst_18 = arith.constant dense<0.000000e+00> : vector<128x8xf32>
    %59 = tpu.matmul %57, %58, %cst_18 {dimension_numbers = #tpu.dot_dimension_numbers<[1], [0], [0], [1], [0, 0, 1, 1], [], []>} : vector<128x72xf32>, vector<72x8xf32>, vector<128x8xf32> -> vector<128x8xf32>
    %c0_19 = arith.constant 0 : index
    %c0_20 = arith.constant 0 : index
    %60 = vector.load %arg5[%c0_19, %c0_20] : memref<1x8xf32, #tpu.memory_space<vmem>>, vector<1x8xf32>
    %61 = vector.broadcast %60 : vector<1x8xf32> to vector<128x8xf32>
    %62 = arith.addf %59, %61 : vector<128x8xf32>
    %cst_21 = arith.constant 0.000000e+00 : f32
    %63 = vector.broadcast %cst_21 : f32 to vector<128x8xf32>
    %64 = arith.cmpf oge, %62, %63 : vector<128x8xf32>
    %cst_22 = arith.constant 0.00999999977 : f32
    %65 = vector.broadcast %cst_22 : f32 to vector<128x8xf32>
    %66 = arith.mulf %65, %62 : vector<128x8xf32>
    %67 = arith.select %64, %62, %66 : vector<128x8xi1>, vector<128x8xf32>
    %c0_23 = arith.constant 0 : index
    %c0_24 = arith.constant 0 : index
    %c0_25 = arith.constant 0 : index
    %68 = vector.load %arg9[%c0_23, %c0_24, %c0_25] : memref<1x1x8xf32, #tpu.memory_space<vmem>>, vector<1x1x8xf32>
    %cst_26 = arith.constant dense<0.000000e+00> : vector<8xf32>
    %69 = vector.multi_reduction <add>, %67, %cst_26 [0] : vector<128x8xf32> to vector<8xf32>
    %70 = vector.shape_cast %69 : vector<8xf32> to vector<1x8xf32>
    %71 = vector.shape_cast %70 : vector<1x8xf32> to vector<1x1x8xf32>
    %72 = arith.addf %68, %71 : vector<1x1x8xf32>
    %c0_27 = arith.constant 0 : index
    %c0_28 = arith.constant 0 : index
    %c0_29 = arith.constant 0 : index
    %73 = vector.load %arg9[%c0_27, %c0_28, %c0_29] : memref<1x1x8xf32, #tpu.memory_space<vmem>>, vector<1x1x8xf32>
    tpu.vector_store %arg9[%c0_27, %c0_28, %c0_29], %72 {strides = array<i32>} : memref<1x1x8xf32, #tpu.memory_space<vmem>>, vector<1x1x8xf32>,
    %c0_30 = arith.constant 0 : index
    %c0_31 = arith.constant 0 : index
    %c0_32 = arith.constant 0 : index
    %74 = vector.load %arg10[%c0_30, %c0_31, %c0_32] : memref<1x1x8xf32, #tpu.memory_space<vmem>>, vector<1x1x8xf32>
    %75 = arith.mulf %67, %67 : vector<128x8xf32>
    %cst_33 = arith.constant dense<0.000000e+00> : vector<8xf32>
    %76 = vector.multi_reduction <add>, %75, %cst_33 [0] : vector<128x8xf32> to vector<8xf32>
    %77 = vector.shape_cast %76 : vector<8xf32> to vector<1x8xf32>
    %78 = vector.shape_cast %77 : vector<1x8xf32> to vector<1x1x8xf32>
    %79 = arith.addf %74, %78 : vector<1x1x8xf32>
    %c0_34 = arith.constant 0 : index
    %c0_35 = arith.constant 0 : index
    %c0_36 = arith.constant 0 : index
    %80 = vector.load %arg10[%c0_34, %c0_35, %c0_36] : memref<1x1x8xf32, #tpu.memory_space<vmem>>, vector<1x1x8xf32>
    tpu.vector_store %arg10[%c0_34, %c0_35, %c0_36], %79 {strides = array<i32>} : memref<1x1x8xf32, #tpu.memory_space<vmem>>, vector<1x1x8xf32>,
    %81 = vector.shape_cast %67 : vector<128x8xf32> to vector<1x8x16x8xf32>
    %c0_37 = arith.constant 0 : index
    %c0_38 = arith.constant 0 : index
    %c0_39 = arith.constant 0 : index
    %c0_40 = arith.constant 0 : index
    %82 = vector.load %arg8[%c0_37, %c0_38, %c0_39, %c0_40] : memref<1x8x16x8xf32, #tpu.memory_space<vmem>>, vector<1x8x16x8xf32>
    tpu.vector_store %arg8[%c0_37, %c0_38, %c0_39, %c0_40], %81 {strides = array<i32>} : memref<1x8x16x8xf32, #tpu.memory_space<vmem>>, vector<1x8x16x8xf32>,
    return
  }
  func.func @transform_0(%arg0: i32, %arg1: i32) -> (i32, i32, i32, i32) {
    %c0_i32 = arith.constant 0 : i32
    %c0_i32_0 = arith.constant 0 : i32
    %c0_i32_1 = arith.constant 0 : i32
    return %arg0, %arg1, %c0_i32, %c0_i32_0 : i32, i32, i32, i32
  }
  func.func @transform_1(%arg0: i32, %arg1: i32) -> (i32, i32, i32, i32) {
    %c1_i32 = arith.constant 1 : i32
    %0 = arith.addi %arg1, %c1_i32 : i32
    %c2_i32 = arith.constant 2 : i32
    %1 = arith.muli %0, %c2_i32 : i32
    %c0_i32 = arith.constant 0 : i32
    %c0_i32_0 = arith.constant 0 : i32
    %c0_i32_1 = arith.constant 0 : i32
    return %arg0, %1, %c0_i32, %c0_i32_0 : i32, i32, i32, i32
  }
  func.func @transform_2(%arg0: i32, %arg1: i32) -> (i32, i32) {
    %c0_i32 = arith.constant 0 : i32
    %c0_i32_0 = arith.constant 0 : i32
    %c0_i32_1 = arith.constant 0 : i32
    return %c0_i32, %c0_i32_0 : i32, i32
  }
  func.func @transform_3(%arg0: i32, %arg1: i32) -> (i32, i32) {
    %c0_i32 = arith.constant 0 : i32
    %c0_i32_0 = arith.constant 0 : i32
    %c0_i32_1 = arith.constant 0 : i32
    return %c0_i32, %c0_i32_0 : i32, i32
  }
  func.func @transform_4(%arg0: i32, %arg1: i32) -> (i32, i32) {
    %c0_i32 = arith.constant 0 : i32
    %c0_i32_0 = arith.constant 0 : i32
    %c0_i32_1 = arith.constant 0 : i32
    return %c0_i32, %c0_i32_0 : i32, i32
  }
  func.func @transform_5(%arg0: i32, %arg1: i32) -> (i32, i32) {
    %c0_i32 = arith.constant 0 : i32
    %c0_i32_0 = arith.constant 0 : i32
    %c0_i32_1 = arith.constant 0 : i32
    return %c0_i32, %c0_i32_0 : i32, i32
  }
  func.func @transform_6(%arg0: i32, %arg1: i32) -> (i32, i32, i32, i32) {
    %c0_i32 = arith.constant 0 : i32
    %c0_i32_0 = arith.constant 0 : i32
    %c0_i32_1 = arith.constant 0 : i32
    return %arg0, %arg1, %c0_i32, %c0_i32_0 : i32, i32, i32, i32
  }
  func.func @transform_7(%arg0: i32, %arg1: i32) -> (i32, i32, i32) {
    %c0_i32 = arith.constant 0 : i32
    %c0_i32_0 = arith.constant 0 : i32
    %c0_i32_1 = arith.constant 0 : i32
    return %arg0, %c0_i32, %c0_i32_0 : i32, i32, i32
  }
  func.func @transform_8(%arg0: i32, %arg1: i32) -> (i32, i32, i32) {
    %c0_i32 = arith.constant 0 : i32
    %c0_i32_0 = arith.constant 0 : i32
    %c0_i32_1 = arith.constant 0 : i32
    return %arg0, %c0_i32, %c0_i32_0 : i32, i32, i32
  }
}

</mosaic_0001>

<llo_original>
// kernel: bridge_forward.5
$region0: #{bridge_forward.5}
  #allocation0 [shape = 'u32[]', space=smem, size = 0x4, offset = 0x4, fixed_abs, tag = 'smem constant byte address 0x4 - core index']
  #allocation1 [shape = 'u32[72,128]{1,0:T(1,128)}', space=vmem, size = 0x9000, scoped, tag = 'internal scratch']
  %s0 = inlined_call_operand.vmem [shape: f32[2,16,16,8], index: 0, kind: input, shape index: {}]
  %s1 = inlined_call_operand.vmem [shape: f32[1,8], index: 1, kind: input, shape index: {}]
  %s2 = inlined_call_operand.vmem [shape: f32[1,8], index: 2, kind: input, shape index: {}]
  %s3 = inlined_call_operand.vmem [shape: f32[2,16,16,8], index: 3, kind: output, shape index: {}]
  %s4 = sld [smem:[#allocation0]]
  $region45: #{bridge_forward.5} parent=0
    _
  %s6 = ssub.s32 1, %s4
  %s7 = scalar_select 0, %s6, %s4
  loop: start=0, step=1, limit=6
  $region2: #{bridge_forward.5} parent=0 // loop_pre_header
    _
  $region3: #{bridge_forward.5} parent=0 // loop_header
    %s9 = sphi 0, %s13
    %p10 = scmp.ge.s32.totalorder %s9, 6
    %s16 = sphi 0, %s28
    %s17 = sphi 0, %s24
    %s18 = sphi 0, %s16
    %s19 = sphi 0, %s17
    %s20 = sphi 0, %s18
    %s21 = sphi 0, %s19
    %s33 = sphi 0, %s35
    %s36 = sphi 0, %s33
    %s37 = sphi 0, %s36
    %s53 = sphi 0, %s37
    %s57 = sphi 0, %s57
    %s59 = sphi 0, %s57
    %s60 = sphi 0, %s59
    %s74 = sphi 0, %s60
    %s78 = sphi 0, %s78
    %s80 = sphi 0, %s78
    %s81 = sphi 0, %s80
    %s95 = sphi 0, %s81
    %s103 = sphi 0, %s105
    %s106 = sphi 0, %s103
    %s107 = sphi 0, %s106
    %s123 = sphi 0, %s107
  $region4: #{bridge_forward.5} parent=0 // loop_header_branch
    %12 = sbr.rel (%p10) target = $region8
  $region5: #{bridge_forward.5} parent=0 // loop_body
    %s14 = ssub.s32 %s9, 1
    %s15 = ssub.s32 %s9, 2
    %s22 = sadd.s32 1, %s17
    %p23 = scmp.ge.s32.totalorder %s22, 2
    %s24 = scalar_select %p23, 0, %s22
    %s25 = sadd.s32 1, %s16
    %s26 = scalar_select %p23, %s25, %s16
    %p27 = scmp.ge.s32.totalorder %s26, 2
    %s28 = scalar_select %p27, 0, %s26
    %s29 = ssub.s32 %s16, %s28
    %s30 = ssub.s32 %s17, %s24
    %s31 = sor.u32 %s29, %s30
    %p32 = scmp.eq.s32.totalorder %s31, 0
    %s34 = sadd.s32 %s33, 1
    %s35 = scalar_select %p32, %s33, %s34
    %p38 = pneg %p32
    %p39 = scmp.eq.s32.totalorder %s9, 3
    %p40 = por %p38, %p39
    %p41 = scmp.ne.s32.totalorder %s33, %s36
    %p42 = scmp.eq.s32.totalorder %s9, 0
    %p43 = por %p41, %p42
    %p44 = scmp.ne.s32.totalorder %s33, %s36
    %p45 = scmp.eq.s32.totalorder %s14, 3
    %p46 = por %p44, %p45
    %p47 = scmp.ne.s32.totalorder %s36, %s37
    %p48 = scmp.eq.s32.totalorder %s14, 0
    %p49 = por %p47, %p48
    %p50 = scmp.ne.s32.totalorder %s36, %s37
    %p51 = scmp.eq.s32.totalorder %s15, 3
    %p52 = por %p50, %p51
    %p54 = scmp.ne.s32.totalorder %s37, %s53
    %p55 = scmp.eq.s32.totalorder %s15, 0
    %p56 = por %p54, %p55
    %s58 = sadd.s32 %s57, 1
    %p61 = scmp.eq.s32.totalorder %s9, 3
    %p62 = scmp.ne.s32.totalorder %s57, %s59
    %p63 = scmp.eq.s32.totalorder %s9, 0
    %p64 = por %p62, %p63
    %p65 = scmp.ne.s32.totalorder %s57, %s59
    %p66 = scmp.eq.s32.totalorder %s14, 3
    %p67 = por %p65, %p66
    %p68 = scmp.ne.s32.totalorder %s59, %s60
    %p69 = scmp.eq.s32.totalorder %s14, 0
    %p70 = por %p68, %p69
    %p71 = scmp.ne.s32.totalorder %s59, %s60
    %p72 = scmp.eq.s32.totalorder %s15, 3
    %p73 = por %p71, %p72
    %p75 = scmp.ne.s32.totalorder %s60, %s74
    %p76 = scmp.eq.s32.totalorder %s15, 0
    %p77 = por %p75, %p76
    %s79 = sadd.s32 %s78, 1
    %p82 = scmp.eq.s32.totalorder %s9, 3
    %p83 = scmp.ne.s32.totalorder %s78, %s80
    %p84 = scmp.eq.s32.totalorder %s9, 0
    %p85 = por %p83, %p84
    %p86 = scmp.ne.s32.totalorder %s78, %s80
    %p87 = scmp.eq.s32.totalorder %s14, 3
    %p88 = por %p86, %p87
    %p89 = scmp.ne.s32.totalorder %s80, %s81
    %p90 = scmp.eq.s32.totalorder %s14, 0
    %p91 = por %p89, %p90
    %p92 = scmp.ne.s32.totalorder %s80, %s81
    %p93 = scmp.eq.s32.totalorder %s15, 3
    %p94 = por %p92, %p93
    %p96 = scmp.ne.s32.totalorder %s81, %s95
    %p97 = scmp.eq.s32.totalorder %s15, 0
    %p98 = por %p96, %p97
    %s99 = ssub.s32 %s16, %s28
    %s100 = ssub.s32 %s17, %s24
    %s101 = sor.u32 %s99, %s100
    %p102 = scmp.eq.s32.totalorder %s101, 0
    %s104 = sadd.s32 %s103, 1
    %s105 = scalar_select %p102, %s103, %s104
    %p108 = pneg %p102
    %p109 = scmp.eq.s32.totalorder %s9, 3
    %p110 = por %p108, %p109
    %p111 = scmp.ne.s32.totalorder %s103, %s106
    %p112 = scmp.eq.s32.totalorder %s9, 0
    %p113 = por %p111, %p112
    %p114 = scmp.ne.s32.totalorder %s103, %s106
    %p115 = scmp.eq.s32.totalorder %s14, 3
    %p116 = por %p114, %p115
    %p117 = scmp.ne.s32.totalorder %s106, %s107
    %p118 = scmp.eq.s32.totalorder %s14, 0
    %p119 = por %p117, %p118
    %p120 = scmp.ne.s32.totalorder %s106, %s107
    %p121 = scmp.eq.s32.totalorder %s15, 3
    %p122 = por %p120, %p121
    %p124 = scmp.ne.s32.totalorder %s107, %s123
    %p125 = scmp.eq.s32.totalorder %s15, 0
    %p126 = por %p124, %p125
    %p127 = scmp.le.s32.totalorder 1, %s9
    %p128 = scmp.lt.s32.totalorder %s9, 5
    %p129 = pnand %p127, %p128
    %p130 = pneg %p129
    // Predicated region
    $region9: #{bridge_forward.5} parent=5 // pred_check
      _
    $region10: #{bridge_forward.5} parent=5 // pred_check_branch
      %132 = sbr.rel (%p129) target = $region12
    $region11: #{bridge_forward.5} parent=5 // pred_region
      %s133 = ssub.s32 %s9, 1
      // Predicated region
      $region13: #{bridge_forward.5} parent=11 // pred_check
        %p134 = pneg %p70
      $region14: #{bridge_forward.5} parent=11 // pred_check_branch
        %136 = sbr.rel (%p134) target = $region16
      $region15: #{bridge_forward.5} parent=11 // pred_region
        _
      $region16: #{bridge_forward.5} parent=11 // pred_fallthru
        _
      // Predicated region
      $region17: #{bridge_forward.5} parent=11 // pred_check
        %p137 = pneg %p91
      $region18: #{bridge_forward.5} parent=11 // pred_check_branch
        %139 = sbr.rel (%p137) target = $region20
      $region19: #{bridge_forward.5} parent=11 // pred_region
        _
      $region20: #{bridge_forward.5} parent=11 // pred_fallthru
        _
    $region12: #{bridge_forward.5} parent=5 // pred_fallthru
      _
    %p140 = scmp.lt.s32.totalorder %s9, 4
    // Predicated region
    $region21: #{bridge_forward.5} parent=5 // pred_check
      %p141 = pneg %p140
    $region22: #{bridge_forward.5} parent=5 // pred_check_branch
      %143 = sbr.rel (%p141) target = $region24
    $region23: #{bridge_forward.5} parent=5 // pred_region
      // Predicated region
      $region25: #{bridge_forward.5} parent=23 // pred_check
        %p144 = pneg %p43
      $region26: #{bridge_forward.5} parent=23 // pred_check_branch
        %146 = sbr.rel (%p144) target = $region28
      $region27: #{bridge_forward.5} parent=23 // pred_region
        %s147 = smul.u32 8, %s17
        %p148 = scmp.lt.s32.totalorder %s16, 1
        %s149 = scalar_select %p148, %s16, 1
        %p150 = scmp.lt.s32.totalorder %s147, 15
        %s151 = scalar_select %p150, %s147, 15
        %s152 = smul.addr %s151, 2
        %s153 = smul.addr %s149, 32
        %s154 = sadd.s32 %s152, %s153
        %s155 = smul.addr %s154, 8
        %s156 = scalar_lea.vmem %s0, %s155
        %s157 = smul.u32 8, %s17
      $region28: #{bridge_forward.5} parent=23 // pred_fallthru
        _
    $region24: #{bridge_forward.5} parent=5 // pred_fallthru
      _
    %p158 = scmp.le.s32.totalorder 1, %s9
    %p159 = scmp.lt.s32.totalorder %s9, 5
    %p160 = pnand %p158, %p159
    %p161 = pneg %p160
    // Predicated region
    $region29: #{bridge_forward.5} parent=5 // pred_check
      _
    $region30: #{bridge_forward.5} parent=5 // pred_check_branch
      %163 = sbr.rel (%p160) target = $region32
    $region31: #{bridge_forward.5} parent=5 // pred_region
      %s164 = ssub.s32 %s9, 1
      %s165 = smul.u32 8, %s19
      %p166 = scmp.lt.s32.totalorder %s18, 1
      %s167 = scalar_select %p166, %s18, 1
      %p168 = scmp.lt.s32.totalorder %s165, 15
      %s169 = scalar_select %p168, %s165, 15
      %s170 = smul.addr %s169, 2
      %s171 = smul.addr %s167, 32
      %s172 = sadd.s32 %s170, %s171
      %s173 = smul.addr %s172, 8
      %s174 = scalar_lea.vmem %s0, %s173
      %p175 = pneg %p49
      %p176 = pneg %p46
      %p177 = pneg %p70
      %p178 = pneg %p67
      %p179 = pneg %p91
      %p180 = pneg %p88
      %p181 = pneg %p119
      %p182 = pneg %p116
      %s183 = smul.u32 8, %s19
      %p184 = scmp.lt.s32.totalorder %s18, 1
      %s185 = scalar_select %p184, %s18, 1
      %p186 = scmp.lt.s32.totalorder %s183, 15
      %s187 = scalar_select %p186, %s183, 15
      %s188 = smul.addr %s187, 2
      %s189 = smul.addr %s185, 32
      %s190 = sadd.s32 %s188, %s189
      %s191 = smul.addr %s190, 8
      %s192 = scalar_lea.vmem %s3, %s191
      %s193 = smul.u32 8, %s19
      %p194 = scmp.lt.s32.totalorder %s18, 1
      %s195 = scalar_select %p194, %s18, 1
      %p196 = scmp.lt.s32.totalorder %s193, 15
      %s197 = scalar_select %p196, %s193, 15
      %s198 = smul.addr %s197, 2
      %s199 = smul.addr %s195, 32
      %s200 = sadd.s32 %s198, %s199
      %s201 = smul.addr %s200, 8
      %s202 = scalar_lea.vmem %s0, %s201
      %s203 = smul.u32 8, %s19
      %s204 = smul.u32 8, %s19
      %p205 = scmp.lt.s32.totalorder %s18, 1
      %s206 = scalar_select %p205, %s18, 1
      %p207 = scmp.lt.s32.totalorder %s204, 15
      %s208 = scalar_select %p207, %s204, 15
      %s209 = smul.addr %s208, 2
      %s210 = smul.addr %s206, 32
      %s211 = sadd.s32 %s209, %s210
      %s212 = smul.addr %s211, 8
      %s213 = scalar_lea.vmem %s3, %s212
      %s214 = smul.u32 8, %s19
      %v215 = vld [vmem:[%s202] sm:$0xff]
      %v216 = vld [vmem:[%s202 + $0x8] sm:$0xff]
      %v217 = vld [vmem:[%s202 + $0x10] sm:$0xff]
      %v218 = vld [vmem:[%s202 + $0x18] sm:$0xff]
      %v219 = vld [vmem:[%s202 + $0x20] sm:$0xff]
      %v220 = vld [vmem:[%s202 + $0x28] sm:$0xff]
      %v221 = vld [vmem:[%s202 + $0x30] sm:$0xff]
      %v222 = vld [vmem:[%s202 + $0x38] sm:$0xff]
      %v223 = vld [vmem:[%s202 + $0x40] sm:$0xff]
      %v224 = vld [vmem:[%s202 + $0x48] sm:$0xff]
      %v225 = vld [vmem:[%s202 + $0x50] sm:$0xff]
      %v226 = vld [vmem:[%s202 + $0x58] sm:$0xff]
      %v227 = vld [vmem:[%s202 + $0x60] sm:$0xff]
      %v228 = vld [vmem:[%s202 + $0x68] sm:$0xff]
      %v229 = vld [vmem:[%s202 + $0x70] sm:$0xff]
      %v230 = vld [vmem:[%s202 + $0x78] sm:$0xff]
      %v231 = vld [vmem:[%s1] sm:$0x1]
      %v233 = vperm.slane %v231, 0
      %v235 = vmul.f32 %v215, %v233
      %v236 = vmul.f32 %v216, %v233
      %v237 = vmul.f32 %v217, %v233
      %v238 = vmul.f32 %v218, %v233
      %v239 = vmul.f32 %v219, %v233
      %v240 = vmul.f32 %v220, %v233
      %v241 = vmul.f32 %v221, %v233
      %v242 = vmul.f32 %v222, %v233
      %v243 = vmul.f32 %v223, %v233
      %v244 = vmul.f32 %v224, %v233
      %v245 = vmul.f32 %v225, %v233
      %v246 = vmul.f32 %v226, %v233
      %v247 = vmul.f32 %v227, %v233
      %v248 = vmul.f32 %v228, %v233
      %v249 = vmul.f32 %v229, %v233
      %v250 = vmul.f32 %v230, %v233
      %v251 = vld [vmem:[%s2] sm:$0x1]
      %v253 = vperm.slane %v251, 0
      %v255 = vadd.f32 %v235, %v253
      %v256 = vadd.f32 %v236, %v253
      %v257 = vadd.f32 %v237, %v253
      %v258 = vadd.f32 %v238, %v253
      %v259 = vadd.f32 %v239, %v253
      %v260 = vadd.f32 %v240, %v253
      %v261 = vadd.f32 %v241, %v253
      %v262 = vadd.f32 %v242, %v253
      %v263 = vadd.f32 %v243, %v253
      %v264 = vadd.f32 %v244, %v253
      %v265 = vadd.f32 %v245, %v253
      %v266 = vadd.f32 %v246, %v253
      %v267 = vadd.f32 %v247, %v253
      %v268 = vadd.f32 %v248, %v253
      %v269 = vadd.f32 %v249, %v253
      %v270 = vadd.f32 %v250, %v253
      %vm271 = vcmask 64512
      %272 = vst.msk [vmem:[%s213] sm:$0xff] %vm271, %v255
      %273 = vst.msk [vmem:[%s213 + $0x8] sm:$0xff] %vm271, %v256
      %274 = vst.msk [vmem:[%s213 + $0x10] sm:$0xff] %vm271, %v257
      %275 = vst.msk [vmem:[%s213 + $0x18] sm:$0xff] %vm271, %v258
      %276 = vst.msk [vmem:[%s213 + $0x20] sm:$0xff] %vm271, %v259
      %277 = vst.msk [vmem:[%s213 + $0x28] sm:$0xff] %vm271, %v260
      %278 = vst.msk [vmem:[%s213 + $0x30] sm:$0xff] %vm271, %v261
      %279 = vst.msk [vmem:[%s213 + $0x38] sm:$0xff] %vm271, %v262
      %280 = vst.msk [vmem:[%s213 + $0x40] sm:$0xff] %vm271, %v263
      %281 = vst.msk [vmem:[%s213 + $0x48] sm:$0xff] %vm271, %v264
      %282 = vst.msk [vmem:[%s213 + $0x50] sm:$0xff] %vm271, %v265
      %283 = vst.msk [vmem:[%s213 + $0x58] sm:$0xff] %vm271, %v266
      %284 = vst.msk [vmem:[%s213 + $0x60] sm:$0xff] %vm271, %v267
      %285 = vst.msk [vmem:[%s213 + $0x68] sm:$0xff] %vm271, %v268
      %286 = vst.msk [vmem:[%s213 + $0x70] sm:$0xff] %vm271, %v269
      %287 = vst.msk [vmem:[%s213 + $0x78] sm:$0xff] %vm271, %v270
      %s288 = smul.u32 8, %s19
      %p289 = scmp.lt.s32.totalorder %s18, 1
      %s290 = scalar_select %p289, %s18, 1
      %p291 = scmp.lt.s32.totalorder %s288, 15
      %s292 = scalar_select %p291, %s288, 15
      %s293 = smul.addr %s292, 2
      %s294 = smul.addr %s290, 32
      %s295 = sadd.s32 %s293, %s294
      %s296 = smul.addr %s295, 8
      %s297 = scalar_lea.vmem %s3, %s296
      // Predicated region
      $region33: #{bridge_forward.5} parent=31 // pred_check
        %p298 = pneg %p116
      $region34: #{bridge_forward.5} parent=31 // pred_check_branch
        %300 = sbr.rel (%p298) target = $region36
      $region35: #{bridge_forward.5} parent=31 // pred_region
        %s301 = smul.u32 8, %s19
      $region36: #{bridge_forward.5} parent=31 // pred_fallthru
        _
    $region32: #{bridge_forward.5} parent=5 // pred_fallthru
      _
    %p302 = scmp.le.s32.totalorder 2, %s9
    // Predicated region
    $region37: #{bridge_forward.5} parent=5 // pred_check
      %p303 = pneg %p302
    $region38: #{bridge_forward.5} parent=5 // pred_check_branch
      %305 = sbr.rel (%p303) target = $region40
    $region39: #{bridge_forward.5} parent=5 // pred_region
      %s306 = ssub.s32 %s9, 2
      // Predicated region
      $region41: #{bridge_forward.5} parent=39 // pred_check
        %p307 = pneg %p122
      $region42: #{bridge_forward.5} parent=39 // pred_check_branch
        %309 = sbr.rel (%p307) target = $region44
      $region43: #{bridge_forward.5} parent=39 // pred_region
        %s310 = smul.u32 8, %s21
        %p311 = scmp.lt.s32.totalorder %s20, 1
        %s312 = scalar_select %p311, %s20, 1
        %p313 = scmp.lt.s32.totalorder %s310, 15
        %s314 = scalar_select %p313, %s310, 15
        %s315 = smul.addr %s314, 2
        %s316 = smul.addr %s312, 32
        %s317 = sadd.s32 %s315, %s316
        %s318 = smul.addr %s317, 8
        %s319 = scalar_lea.vmem %s3, %s318
      $region44: #{bridge_forward.5} parent=39 // pred_fallthru
        _
    $region40: #{bridge_forward.5} parent=5 // pred_fallthru
      _
  $region6: #{bridge_forward.5} parent=0 // loop_footer
    %s13 = sadd.s32 1, %s9
  $region7: #{bridge_forward.5} parent=0 // loop_footer_branch
    %8 = sbr.rel target = $region3
  $region8: #{bridge_forward.5} parent=0 // loop_exit
    _

// kernel: bridge_forward.3
$region0: #{bridge_forward.3}
  #allocation0 [shape = 'u32[]', space=smem, size = 0x4, offset = 0x4, fixed_abs, tag = 'smem constant byte address 0x4 - core index']
  #allocation1 [shape = 'u32[72,128]{1,0:T(1,128)}', space=vmem, size = 0x9000, scoped, tag = 'internal scratch']
  %s0 = inlined_call_operand.vmem [shape: f32[2,20,20,4], index: 0, kind: input, shape index: {}, may-alias: {0,1}]
  %s1 = inlined_call_operand.vmem [shape: f32[2,20,20,4], index: 1, kind: input, shape index: {}, may-alias: {0,1}]
  %s2 = inlined_call_operand.vmem [shape: f32[36,8], index: 2, kind: input, shape index: {}]
  %s3 = inlined_call_operand.vmem [shape: f32[1,8], index: 3, kind: input, shape index: {}]
  %s4 = inlined_call_operand.vmem [shape: f32[1,4], index: 4, kind: input, shape index: {}]
  %s5 = inlined_call_operand.vmem [shape: f32[1,4], index: 5, kind: input, shape index: {}]
  %s6 = inlined_call_operand.vmem [shape: f32[2,16,16,8], index: 6, kind: output, shape index: {0}]
  %s7 = inlined_call_operand.vmem [shape: f32[2,1,8], index: 7, kind: output, shape index: {1}]
  %s8 = inlined_call_operand.vmem [shape: f32[2,1,8], index: 8, kind: output, shape index: {2}]
  %9 = xla_tuple %s6, %s7, %s8
  %s10 = sld [smem:[#allocation0]]
  $region77: #{bridge_forward.3} parent=0
    _
  %s12 = ssub.s32 1, %s10
  %s13 = scalar_select 0, %s12, %s10
  loop: start=0, step=1, limit=6
  $region2: #{bridge_forward.3} parent=0 // loop_pre_header
    _
  $region3: #{bridge_forward.3} parent=0 // loop_header
    %s15 = sphi 0, %s19
    %p16 = scmp.ge.s32.totalorder %s15, 6
    %s22 = sphi 0, %s34
    %s23 = sphi 0, %s30
    %s24 = sphi 0, %s22
    %s25 = sphi 0, %s23
    %s26 = sphi 0, %s24
    %s27 = sphi 0, %s25
    %s39 = sphi 0, %s41
    %s42 = sphi 0, %s39
    %s43 = sphi 0, %s42
    %s59 = sphi 0, %s43
    %s71 = sphi 0, %s73
    %s74 = sphi 0, %s71
    %s75 = sphi 0, %s74
    %s91 = sphi 0, %s75
    %s95 = sphi 0, %s95
    %s97 = sphi 0, %s95
    %s98 = sphi 0, %s97
    %s112 = sphi 0, %s98
    %s116 = sphi 0, %s116
    %s118 = sphi 0, %s116
    %s119 = sphi 0, %s118
    %s133 = sphi 0, %s119
    %s137 = sphi 0, %s137
    %s139 = sphi 0, %s137
    %s140 = sphi 0, %s139
    %s154 = sphi 0, %s140
    %s158 = sphi 0, %s158
    %s160 = sphi 0, %s158
    %s161 = sphi 0, %s160
    %s175 = sphi 0, %s161
    %s183 = sphi 0, %s185
    %s186 = sphi 0, %s183
    %s187 = sphi 0, %s186
    %s203 = sphi 0, %s187
    %s209 = sphi 0, %s211
    %s212 = sphi 0, %s209
    %s213 = sphi 0, %s212
    %s229 = sphi 0, %s213
    %s235 = sphi 0, %s237
    %s238 = sphi 0, %s235
    %s239 = sphi 0, %s238
    %s255 = sphi 0, %s239
  $region4: #{bridge_forward.3} parent=0 // loop_header_branch
    %18 = sbr.rel (%p16) target = $region8
  $region5: #{bridge_forward.3} parent=0 // loop_body
    %s20 = ssub.s32 %s15, 1
    %s21 = ssub.s32 %s15, 2
    %s28 = sadd.s32 1, %s23
    %p29 = scmp.ge.s32.totalorder %s28, 2
    %s30 = scalar_select %p29, 0, %s28
    %s31 = sadd.s32 1, %s22
    %s32 = scalar_select %p29, %s31, %s22
    %p33 = scmp.ge.s32.totalorder %s32, 2
    %s34 = scalar_select %p33, 0, %s32
    %s35 = ssub.s32 %s22, %s34
    %s36 = ssub.s32 %s23, %s30
    %s37 = sor.u32 %s35, %s36
    %p38 = scmp.eq.s32.totalorder %s37, 0
    %s40 = sadd.s32 %s39, 1
    %s41 = scalar_select %p38, %s39, %s40
    %p44 = pneg %p38
    %p45 = scmp.eq.s32.totalorder %s15, 3
    %p46 = por %p44, %p45
    %p47 = scmp.ne.s32.totalorder %s39, %s42
    %p48 = scmp.eq.s32.totalorder %s15, 0
    %p49 = por %p47, %p48
    %p50 = scmp.ne.s32.totalorder %s39, %s42
    %p51 = scmp.eq.s32.totalorder %s20, 3
    %p52 = por %p50, %p51
    %p53 = scmp.ne.s32.totalorder %s42, %s43
    %p54 = scmp.eq.s32.totalorder %s20, 0
    %p55 = por %p53, %p54
    %p56 = scmp.ne.s32.totalorder %s42, %s43
    %p57 = scmp.eq.s32.totalorder %s21, 3
    %p58 = por %p56, %p57
    %p60 = scmp.ne.s32.totalorder %s43, %s59
    %p61 = scmp.eq.s32.totalorder %s21, 0
    %p62 = por %p60, %p61
    %s63 = sadd.s32 %s23, 1
    %s64 = smul.u32 %s63, 2
    %s65 = sadd.s32 %s30, 1
    %s66 = smul.u32 %s65, 2
    %s67 = ssub.s32 %s22, %s34
    %s68 = ssub.s32 %s64, %s66
    %s69 = sor.u32 %s67, %s68
    %p70 = scmp.eq.s32.totalorder %s69, 0
    %s72 = sadd.s32 %s71, 1
    %s73 = scalar_select %p70, %s71, %s72
    %p76 = pneg %p70
    %p77 = scmp.eq.s32.totalorder %s15, 3
    %p78 = por %p76, %p77
    %p79 = scmp.ne.s32.totalorder %s71, %s74
    %p80 = scmp.eq.s32.totalorder %s15, 0
    %p81 = por %p79, %p80
    %p82 = scmp.ne.s32.totalorder %s71, %s74
    %p83 = scmp.eq.s32.totalorder %s20, 3
    %p84 = por %p82, %p83
    %p85 = scmp.ne.s32.totalorder %s74, %s75
    %p86 = scmp.eq.s32.totalorder %s20, 0
    %p87 = por %p85, %p86
    %p88 = scmp.ne.s32.totalorder %s74, %s75
    %p89 = scmp.eq.s32.totalorder %s21, 3
    %p90 = por %p88, %p89
    %p92 = scmp.ne.s32.totalorder %s75, %s91
    %p93 = scmp.eq.s32.totalorder %s21, 0
    %p94 = por %p92, %p93
    %s96 = sadd.s32 %s95, 1
    %p99 = scmp.eq.s32.totalorder %s15, 3
    %p100 = scmp.ne.s32.totalorder %s95, %s97
    %p101 = scmp.eq.s32.totalorder %s15, 0
    %p102 = por %p100, %p101
    %p103 = scmp.ne.s32.totalorder %s95, %s97
    %p104 = scmp.eq.s32.totalorder %s20, 3
    %p105 = por %p103, %p104
    %p106 = scmp.ne.s32.totalorder %s97, %s98
    %p107 = scmp.eq.s32.totalorder %s20, 0
    %p108 = por %p106, %p107
    %p109 = scmp.ne.s32.totalorder %s97, %s98
    %p110 = scmp.eq.s32.totalorder %s21, 3
    %p111 = por %p109, %p110
    %p113 = scmp.ne.s32.totalorder %s98, %s112
    %p114 = scmp.eq.s32.totalorder %s21, 0
    %p115 = por %p113, %p114
    %s117 = sadd.s32 %s116, 1
    %p120 = scmp.eq.s32.totalorder %s15, 3
    %p121 = scmp.ne.s32.totalorder %s116, %s118
    %p122 = scmp.eq.s32.totalorder %s15, 0
    %p123 = por %p121, %p122
    %p124 = scmp.ne.s32.totalorder %s116, %s118
    %p125 = scmp.eq.s32.totalorder %s20, 3
    %p126 = por %p124, %p125
    %p127 = scmp.ne.s32.totalorder %s118, %s119
    %p128 = scmp.eq.s32.totalorder %s20, 0
    %p129 = por %p127, %p128
    %p130 = scmp.ne.s32.totalorder %s118, %s119
    %p131 = scmp.eq.s32.totalorder %s21, 3
    %p132 = por %p130, %p131
    %p134 = scmp.ne.s32.totalorder %s119, %s133
    %p135 = scmp.eq.s32.totalorder %s21, 0
    %p136 = por %p134, %p135
    %s138 = sadd.s32 %s137, 1
    %p141 = scmp.eq.s32.totalorder %s15, 3
    %p142 = scmp.ne.s32.totalorder %s137, %s139
    %p143 = scmp.eq.s32.totalorder %s15, 0
    %p144 = por %p142, %p143
    %p145 = scmp.ne.s32.totalorder %s137, %s139
    %p146 = scmp.eq.s32.totalorder %s20, 3
    %p147 = por %p145, %p146
    %p148 = scmp.ne.s32.totalorder %s139, %s140
    %p149 = scmp.eq.s32.totalorder %s20, 0
    %p150 = por %p148, %p149
    %p151 = scmp.ne.s32.totalorder %s139, %s140
    %p152 = scmp.eq.s32.totalorder %s21, 3
    %p153 = por %p151, %p152
    %p155 = scmp.ne.s32.totalorder %s140, %s154
    %p156 = scmp.eq.s32.totalorder %s21, 0
    %p157 = por %p155, %p156
    %s159 = sadd.s32 %s158, 1
    %p162 = scmp.eq.s32.totalorder %s15, 3
    %p163 = scmp.ne.s32.totalorder %s158, %s160
    %p164 = scmp.eq.s32.totalorder %s15, 0
    %p165 = por %p163, %p164
    %p166 = scmp.ne.s32.totalorder %s158, %s160
    %p167 = scmp.eq.s32.totalorder %s20, 3
    %p168 = por %p166, %p167
    %p169 = scmp.ne.s32.totalorder %s160, %s161
    %p170 = scmp.eq.s32.totalorder %s20, 0
    %p171 = por %p169, %p170
    %p172 = scmp.ne.s32.totalorder %s160, %s161
    %p173 = scmp.eq.s32.totalorder %s21, 3
    %p174 = por %p172, %p173
    %p176 = scmp.ne.s32.totalorder %s161, %s175
    %p177 = scmp.eq.s32.totalorder %s21, 0
    %p178 = por %p176, %p177
    %s179 = ssub.s32 %s22, %s34
    %s180 = ssub.s32 %s23, %s30
    %s181 = sor.u32 %s179, %s180
    %p182 = scmp.eq.s32.totalorder %s181, 0
    %s184 = sadd.s32 %s183, 1
    %s185 = scalar_select %p182, %s183, %s184
    %p188 = pneg %p182
    %p189 = scmp.eq.s32.totalorder %s15, 3
    %p190 = por %p188, %p189
    %p191 = scmp.ne.s32.totalorder %s183, %s186
    %p192 = scmp.eq.s32.totalorder %s15, 0
    %p193 = por %p191, %p192
    %p194 = scmp.ne.s32.totalorder %s183, %s186
    %p195 = scmp.eq.s32.totalorder %s20, 3
    %p196 = por %p194, %p195
    %p197 = scmp.ne.s32.totalorder %s186, %s187
    %p198 = scmp.eq.s32.totalorder %s20, 0
    %p199 = por %p197, %p198
    %p200 = scmp.ne.s32.totalorder %s186, %s187
    %p201 = scmp.eq.s32.totalorder %s21, 3
    %p202 = por %p200, %p201
    %p204 = scmp.ne.s32.totalorder %s187, %s203
    %p205 = scmp.eq.s32.totalorder %s21, 0
    %p206 = por %p204, %p205
    %s207 = ssub.s32 %s22, %s34
    %p208 = scmp.eq.s32.totalorder %s207, 0
    %s210 = sadd.s32 %s209, 1
    %s211 = scalar_select %p208, %s209, %s210
    %p214 = pneg %p208
    %p215 = scmp.eq.s32.totalorder %s15, 3
    %p216 = por %p214, %p215
    %p217 = scmp.ne.s32.totalorder %s209, %s212
    %p218 = scmp.eq.s32.totalorder %s15, 0
    %p219 = por %p217, %p218
    %p220 = scmp.ne.s32.totalorder %s209, %s212
    %p221 = scmp.eq.s32.totalorder %s20, 3
    %p222 = por %p220, %p221
    %p223 = scmp.ne.s32.totalorder %s212, %s213
    %p224 = scmp.eq.s32.totalorder %s20, 0
    %p225 = por %p223, %p224
    %p226 = scmp.ne.s32.totalorder %s212, %s213
    %p227 = scmp.eq.s32.totalorder %s21, 3
    %p228 = por %p226, %p227
    %p230 = scmp.ne.s32.totalorder %s213, %s229
    %p231 = scmp.eq.s32.totalorder %s21, 0
    %p232 = por %p230, %p231
    %s233 = ssub.s32 %s22, %s34
    %p234 = scmp.eq.s32.totalorder %s233, 0
    %s236 = sadd.s32 %s235, 1
    %s237 = scalar_select %p234, %s235, %s236
    %p240 = pneg %p234
    %p241 = scmp.eq.s32.totalorder %s15, 3
    %p242 = por %p240, %p241
    %p243 = scmp.ne.s32.totalorder %s235, %s238
    %p244 = scmp.eq.s32.totalorder %s15, 0
    %p245 = por %p243, %p244
    %p246 = scmp.ne.s32.totalorder %s235, %s238
    %p247 = scmp.eq.s32.totalorder %s20, 3
    %p248 = por %p246, %p247
    %p249 = scmp.ne.s32.totalorder %s238, %s239
    %p250 = scmp.eq.s32.totalorder %s20, 0
    %p251 = por %p249, %p250
    %p252 = scmp.ne.s32.totalorder %s238, %s239
    %p253 = scmp.eq.s32.totalorder %s21, 3
    %p254 = por %p252, %p253
    %p256 = scmp.ne.s32.totalorder %s239, %s255
    %p257 = scmp.eq.s32.totalorder %s21, 0
    %p258 = por %p256, %p257
    %p259 = scmp.le.s32.totalorder 1, %s15
    %p260 = scmp.lt.s32.totalorder %s15, 5
    %p261 = pnand %p259, %p260
    %p262 = pneg %p261
    // Predicated region
    $region9: #{bridge_forward.3} parent=5 // pred_check
      _
    $region10: #{bridge_forward.3} parent=5 // pred_check_branch
      %264 = sbr.rel (%p261) target = $region12
    $region11: #{bridge_forward.3} parent=5 // pred_region
      %s265 = ssub.s32 %s15, 1
      // Predicated region
      $region13: #{bridge_forward.3} parent=11 // pred_check
        %p266 = pneg %p108
      $region14: #{bridge_forward.3} parent=11 // pred_check_branch
        %268 = sbr.rel (%p266) target = $region16
      $region15: #{bridge_forward.3} parent=11 // pred_region
        _
      $region16: #{bridge_forward.3} parent=11 // pred_fallthru
        _
      // Predicated region
      $region17: #{bridge_forward.3} parent=11 // pred_check
        %p269 = pneg %p129
      $region18: #{bridge_forward.3} parent=11 // pred_check_branch
        %271 = sbr.rel (%p269) target = $region20
      $region19: #{bridge_forward.3} parent=11 // pred_region
        _
      $region20: #{bridge_forward.3} parent=11 // pred_fallthru
        _
      // Predicated region
      $region21: #{bridge_forward.3} parent=11 // pred_check
        %p272 = pneg %p150
      $region22: #{bridge_forward.3} parent=11 // pred_check_branch
        %274 = sbr.rel (%p272) target = $region24
      $region23: #{bridge_forward.3} parent=11 // pred_region
        _
      $region24: #{bridge_forward.3} parent=11 // pred_fallthru
        _
      // Predicated region
      $region25: #{bridge_forward.3} parent=11 // pred_check
        %p275 = pneg %p171
      $region26: #{bridge_forward.3} parent=11 // pred_check_branch
        %277 = sbr.rel (%p275) target = $region28
      $region27: #{bridge_forward.3} parent=11 // pred_region
        _
      $region28: #{bridge_forward.3} parent=11 // pred_fallthru
        _
    $region12: #{bridge_forward.3} parent=5 // pred_fallthru
      _
    %p278 = scmp.lt.s32.totalorder %s15, 4
    // Predicated region
    $region29: #{bridge_forward.3} parent=5 // pred_check
      %p279 = pneg %p278
    $region30: #{bridge_forward.3} parent=5 // pred_check_branch
      %281 = sbr.rel (%p279) target = $region32
    $region31: #{bridge_forward.3} parent=5 // pred_region
      // Predicated region
      $region33: #{bridge_forward.3} parent=31 // pred_check
        %p282 = pneg %p49
      $region34: #{bridge_forward.3} parent=31 // pred_check_branch
        %284 = sbr.rel (%p282) target = $region36
      $region35: #{bridge_forward.3} parent=31 // pred_region
        %s285 = smul.u32 8, %s23
        %s286 = ssub.s32 20, %s285
        %p287 = scmp.lt.s32.totalorder %s286, 8
        %s288 = scalar_select %p287, %s286, 8
        %s289 = smul.u32 8, %s288
        %s290 = smul.u32 %s289, 3
        %p291 = scmp.lt.s32.totalorder %s22, 1
        %s292 = scalar_select %p291, %s22, 1
        %p293 = scmp.lt.s32.totalorder %s285, 19
        %s294 = scalar_select %p293, %s285, 19
        %s295 = smul.addr %s294, 3
        %s296 = smul.addr %s292, 60
        %s297 = sadd.s32 %s295, %s296
        %s298 = smul.addr %s297, 8
        %s299 = scalar_lea.vmem %s0, %s298
        %s300 = smul.u32 8, %s23
        %s301 = ssub.s32 20, %s300
        %p302 = scmp.lt.s32.totalorder %s301, 8
        %s303 = scalar_select %p302, %s301, 8
        %s304 = smul.u32 8, %s303
        %s305 = smul.u32 %s304, 3
      $region36: #{bridge_forward.3} parent=31 // pred_fallthru
        _
      // Predicated region
      $region37: #{bridge_forward.3} parent=31 // pred_check
        %p306 = pneg %p81
      $region38: #{bridge_forward.3} parent=31 // pred_check_branch
        %308 = sbr.rel (%p306) target = $region40
      $region39: #{bridge_forward.3} parent=31 // pred_region
        %s309 = sadd.s32 %s23, 1
        %s310 = smul.u32 %s309, 2
        %s311 = smul.u32 4, %s310
        %p312 = scmp.lt.s32.totalorder %s22, 1
        %s313 = scalar_select %p312, %s22, 1
        %p314 = scmp.lt.s32.totalorder %s311, 19
        %s315 = scalar_select %p314, %s311, 19
        %s316 = smul.addr %s315, 3
        %s317 = smul.addr %s313, 60
        %s318 = sadd.s32 %s316, %s317
        %s319 = smul.addr %s318, 8
        %s320 = scalar_lea.vmem %s1, %s319
        %s321 = sadd.s32 %s23, 1
        %s322 = smul.u32 %s321, 2
        %s323 = smul.u32 4, %s322
      $region40: #{bridge_forward.3} parent=31 // pred_fallthru
        _
    $region32: #{bridge_forward.3} parent=5 // pred_fallthru
      _
    %p324 = scmp.le.s32.totalorder 1, %s15
    %p325 = scmp.lt.s32.totalorder %s15, 5
    %p326 = pnand %p324, %p325
    %p327 = pneg %p326
    // Predicated region
    $region41: #{bridge_forward.3} parent=5 // pred_check
      _
    $region42: #{bridge_forward.3} parent=5 // pred_check_branch
      %329 = sbr.rel (%p326) target = $region44
    $region43: #{bridge_forward.3} parent=5 // pred_region
      %s330 = ssub.s32 %s15, 1
      %s331 = smul.u32 8, %s25
      %s332 = ssub.s32 20, %s331
      %p333 = scmp.lt.s32.totalorder %s332, 8
      %s334 = scalar_select %p333, %s332, 8
      %s335 = smul.u32 8, %s334
      %s336 = smul.u32 %s335, 3
      %p337 = scmp.lt.s32.totalorder %s24, 1
      %s338 = scalar_select %p337, %s24, 1
      %p339 = scmp.lt.s32.totalorder %s331, 19
      %s340 = scalar_select %p339, %s331, 19
      %s341 = smul.addr %s340, 3
      %s342 = smul.addr %s338, 60
      %s343 = sadd.s32 %s341, %s342
      %s344 = smul.addr %s343, 8
      %s345 = scalar_lea.vmem %s0, %s344
      %p346 = pneg %p55
      %p347 = pneg %p52
      %s348 = sadd.s32 %s25, 1
      %s349 = smul.u32 %s348, 2
      %s350 = smul.u32 4, %s349
      %p351 = scmp.lt.s32.totalorder %s24, 1
      %s352 = scalar_select %p351, %s24, 1
      %p353 = scmp.lt.s32.totalorder %s350, 19
      %s354 = scalar_select %p353, %s350, 19
      %s355 = smul.addr %s354, 3
      %s356 = smul.addr %s352, 60
      %s357 = sadd.s32 %s355, %s356
      %s358 = smul.addr %s357, 8
      %s359 = scalar_lea.vmem %s1, %s358
      %p360 = pneg %p87
      %p361 = pneg %p84
      %p362 = pneg %p108
      %p363 = pneg %p105
      %p364 = pneg %p129
      %p365 = pneg %p126
      %p366 = pneg %p150
      %p367 = pneg %p147
      %p368 = pneg %p171
      %p369 = pneg %p168
      %p370 = pneg %p199
      %p371 = pneg %p196
      %s372 = smul.u32 8, %s25
      %p373 = scmp.lt.s32.totalorder %s24, 1
      %s374 = scalar_select %p373, %s24, 1
      %p375 = scmp.lt.s32.totalorder %s372, 15
      %s376 = scalar_select %p375, %s372, 15
      %s377 = smul.addr %s376, 2
      %s378 = smul.addr %s374, 32
      %s379 = sadd.s32 %s377, %s378
      %s380 = smul.addr %s379, 8
      %s381 = scalar_lea.vmem %s6, %s380
      %p382 = pneg %p225
      %p383 = pneg %p222
      %p384 = scmp.lt.s32.totalorder %s24, 1
      %s385 = scalar_select %p384, %s24, 1
      %s386 = scalar_lea.vmem %s7, %s385
      %p387 = pneg %p251
      %p388 = pneg %p248
      %p389 = scmp.lt.s32.totalorder %s24, 1
      %s390 = scalar_select %p389, %s24, 1
      %s391 = scalar_lea.vmem %s8, %s390
      %s392 = smul.u32 8, %s25
      %s393 = ssub.s32 20, %s392
      %p394 = scmp.lt.s32.totalorder %s393, 8
      %s395 = scalar_select %p394, %s393, 8
      %s396 = smul.u32 8, %s395
      %s397 = smul.u32 %s396, 3
      %p398 = scmp.lt.s32.totalorder %s24, 1
      %s399 = scalar_select %p398, %s24, 1
      %p400 = scmp.lt.s32.totalorder %s392, 19
      %s401 = scalar_select %p400, %s392, 19
      %s402 = smul.addr %s401, 3
      %s403 = smul.addr %s399, 60
      %s404 = sadd.s32 %s402, %s403
      %s405 = smul.addr %s404, 8
      %s406 = scalar_lea.vmem %s0, %s405
      %s407 = smul.u32 8, %s25
      %s408 = ssub.s32 20, %s407
      %p409 = scmp.lt.s32.totalorder %s408, 8
      %s410 = scalar_select %p409, %s408, 8
      %s411 = smul.u32 8, %s410
      %s412 = smul.u32 %s411, 3
      %s413 = sadd.s32 %s25, 1
      %s414 = smul.u32 %s413, 2
      %s415 = smul.u32 4, %s414
      %p416 = scmp.lt.s32.totalorder %s24, 1
      %s417 = scalar_select %p416, %s24, 1
      %p418 = scmp.lt.s32.totalorder %s415, 19
      %s419 = scalar_select %p418, %s415, 19
      %s420 = smul.addr %s419, 3
      %s421 = smul.addr %s417, 60
      %s422 = sadd.s32 %s420, %s421
      %s423 = smul.addr %s422, 8
      %s424 = scalar_lea.vmem %s1, %s423
      %s425 = sadd.s32 %s25, 1
      %s426 = smul.u32 %s425, 2
      %s427 = smul.u32 4, %s426
      %s428 = smul.u32 8, %s25
      %p429 = scmp.lt.s32.totalorder %s24, 1
      %s430 = scalar_select %p429, %s24, 1
      %p431 = scmp.lt.s32.totalorder %s428, 15
      %s432 = scalar_select %p431, %s428, 15
      %s433 = smul.addr %s432, 2
      %s434 = smul.addr %s430, 32
      %s435 = sadd.s32 %s433, %s434
      %s436 = smul.addr %s435, 8
      %s437 = scalar_lea.vmem %s6, %s436
      %s438 = smul.u32 8, %s25
      %p439 = scmp.lt.s32.totalorder %s24, 1
      %s440 = scalar_select %p439, %s24, 1
      %s441 = scalar_lea.vmem %s7, %s440
      %p442 = scmp.lt.s32.totalorder %s24, 1
      %s443 = scalar_select %p442, %s24, 1
      %s444 = scalar_lea.vmem %s8, %s443
      %p445 = scmp.eq.s32.totalorder %s25, 0
      // Predicated region
      $region45: #{bridge_forward.3} parent=43 // pred_check
        %p446 = pneg %p445
      $region46: #{bridge_forward.3} parent=43 // pred_check_branch
        %448 = sbr.rel (%p446) target = $region48
      $region47: #{bridge_forward.3} parent=43 // pred_region
        %vm449 = vcmask 57344
        %450 = vst.msk [vmem:[%s441] sm:$0x1] %vm449, 0.0
        %451 = vst.msk [vmem:[%s444] sm:$0x1] %vm449, 0.0
      $region48: #{bridge_forward.3} parent=43 // pred_fallthru
        _
      %v452 = vld [vmem:[%s406] sm:$0xff]
      %v453 = vld [vmem:[%s406 + $0x8] sm:$0xff]
      %v454 = vld [vmem:[%s406 + $0x10] sm:$0xf]
      %v455 = vld [vmem:[%s406 + $0x18] sm:$0xff]
      %v456 = vld [vmem:[%s406 + $0x20] sm:$0xff]
      %v457 = vld [vmem:[%s406 + $0x28] sm:$0xf]
      %v458 = vld [vmem:[%s406 + $0x30] sm:$0xff]
      %v459 = vld [vmem:[%s406 + $0x38] sm:$0xff]
      %v460 = vld [vmem:[%s406 + $0x40] sm:$0xf]
      %v461 = vld [vmem:[%s406 + $0x48] sm:$0xff]
      %v462 = vld [vmem:[%s406 + $0x50] sm:$0xff]
      %v463 = vld [vmem:[%s406 + $0x58] sm:$0xf]
      %v464 = vld [vmem:[%s406 + $0x60] sm:$0xff]
      %v465 = vld [vmem:[%s406 + $0x68] sm:$0xff]
      %v466 = vld [vmem:[%s406 + $0x70] sm:$0xf]
      %v467 = vld [vmem:[%s406 + $0x78] sm:$0xff]
      %v468 = vld [vmem:[%s406 + $0x80] sm:$0xff]
      %v469 = vld [vmem:[%s406 + $0x88] sm:$0xf]
      %v470 = vld [vmem:[%s406 + $0x90] sm:$0xff]
      %v471 = vld [vmem:[%s406 + $0x98] sm:$0xff]
      %v472 = vld [vmem:[%s406 + $0xa0] sm:$0xf]
      %v473 = vld [vmem:[%s406 + $0xa8] sm:$0xff]
      %v474 = vld [vmem:[%s406 + $0xb0] sm:$0xff]
      %v475 = vld [vmem:[%s406 + $0xb8] sm:$0xf]
      %v476 = vld [vmem:[%s424] sm:$0xff]
      %v477 = vld [vmem:[%s424 + $0x8] sm:$0xff]
      %v478 = vld [vmem:[%s424 + $0x10] sm:$0xf]
      %v479 = vld [vmem:[%s424 + $0x18] sm:$0xff]
      %v480 = vld [vmem:[%s424 + $0x20] sm:$0xff]
      %v481 = vld [vmem:[%s424 + $0x28] sm:$0xf]
      %v482 = vld [vmem:[%s424 + $0x30] sm:$0xff]
      %v483 = vld [vmem:[%s424 + $0x38] sm:$0xff]
      %v484 = vld [vmem:[%s424 + $0x40] sm:$0xf]
      %v485 = vld [vmem:[%s424 + $0x48] sm:$0xff]
      %v486 = vld [vmem:[%s424 + $0x50] sm:$0xff]
      %v487 = vld [vmem:[%s424 + $0x58] sm:$0xf]
      %vm512 = vcmask 1045504
      %v513 = vrot.slane %v452, 2
      %v514 = vrot.slane %v453, 2
      %v515 = vsel %vm512, %v513, %v514
      %v516 = vrot.slane %v454, 2
      %v517 = vsel %vm512, %v514, %v516
      %v518 = vrot.slane %v455, 2
      %v519 = vrot.slane %v456, 2
      %v520 = vsel %vm512, %v518, %v519
      %v521 = vrot.slane %v457, 2
      %v522 = vsel %vm512, %v519, %v521
      %v523 = vrot.slane %v458, 2
      %v524 = vrot.slane %v459, 2
      %v525 = vsel %vm512, %v523, %v524
      %v526 = vrot.slane %v460, 2
      %v527 = vsel %vm512, %v524, %v526
      %v528 = vrot.slane %v461, 2
      %v529 = vrot.slane %v462, 2
      %v530 = vsel %vm512, %v528, %v529
      %v531 = vrot.slane %v463, 2
      %v532 = vsel %vm512, %v529, %v531
      %v533 = vrot.slane %v464, 2
      %v534 = vrot.slane %v465, 2
      %v535 = vsel %vm512, %v533, %v534
      %v536 = vrot.slane %v466, 2
      %v537 = vsel %vm512, %v534, %v536
      %v538 = vrot.slane %v467, 2
      %v539 = vrot.slane %v468, 2
      %v540 = vsel %vm512, %v538, %v539
      %v541 = vrot.slane %v469, 2
      %v542 = vsel %vm512, %v539, %v541
      %v543 = vrot.slane %v470, 2
      %v544 = vrot.slane %v471, 2
      %v545 = vsel %vm512, %v543, %v544
      %v546 = vrot.slane %v472, 2
      %v547 = vsel %vm512, %v544, %v546
      %v548 = vrot.slane %v473, 2
      %v549 = vrot.slane %v474, 2
      %v550 = vsel %vm512, %v548, %v549
      %v551 = vrot.slane %v475, 2
      %v552 = vsel %vm512, %v549, %v551
      %vm553 = vcmask 1043456
      %v554 = vrot.slane %v452, 4
      %v555 = vrot.slane %v453, 4
      %v556 = vsel %vm553, %v554, %v555
      %v557 = vrot.slane %v454, 4
      %v558 = vsel %vm553, %v555, %v557
      %v559 = vrot.slane %v455, 4
      %v560 = vrot.slane %v456, 4
      %v561 = vsel %vm553, %v559, %v560
      %v562 = vrot.slane %v457, 4
      %v563 = vsel %vm553, %v560, %v562
      %v564 = vrot.slane %v458, 4
      %v565 = vrot.slane %v459, 4
      %v566 = vsel %vm553, %v564, %v565
      %v567 = vrot.slane %v460, 4
      %v568 = vsel %vm553, %v565, %v567
      %v569 = vrot.slane %v461, 4
      %v570 = vrot.slane %v462, 4
      %v571 = vsel %vm553, %v569, %v570
      %v572 = vrot.slane %v463, 4
      %v573 = vsel %vm553, %v570, %v572
      %v574 = vrot.slane %v464, 4
      %v575 = vrot.slane %v465, 4
      %v576 = vsel %vm553, %v574, %v575
      %v577 = vrot.slane %v466, 4
      %v578 = vsel %vm553, %v575, %v577
      %v579 = vrot.slane %v467, 4
      %v580 = vrot.slane %v468, 4
      %v581 = vsel %vm553, %v579, %v580
      %v582 = vrot.slane %v469, 4
      %v583 = vsel %vm553, %v580, %v582
      %v584 = vrot.slane %v470, 4
      %v585 = vrot.slane %v471, 4
      %v586 = vsel %vm553, %v584, %v585
      %v587 = vrot.slane %v472, 4
      %v588 = vsel %vm553, %v585, %v587
      %v589 = vrot.slane %v473, 4
      %v590 = vrot.slane %v474, 4
      %v591 = vsel %vm553, %v589, %v590
      %v592 = vrot.slane %v475, 4
      %v593 = vsel %vm553, %v590, %v592
      %v600 = vrot.slane %v476, 2
      %v601 = vrot.slane %v477, 2
      %v602 = vsel %vm512, %v600, %v601
      %v603 = vrot.slane %v478, 2
      %v604 = vsel %vm512, %v601, %v603
      %v605 = vrot.slane %v479, 2
      %v606 = vrot.slane %v480, 2
      %v607 = vsel %vm512, %v605, %v606
      %v608 = vrot.slane %v481, 2
      %v609 = vsel %vm512, %v606, %v608
      %v610 = vrot.slane %v476, 4
      %v611 = vrot.slane %v477, 4
      %v612 = vsel %vm553, %v610, %v611
      %v613 = vrot.slane %v478, 4
      %v614 = vsel %vm553, %v611, %v613
      %v615 = vrot.slane %v479, 4
      %v616 = vrot.slane %v480, 4
      %v617 = vsel %vm553, %v615, %v616
      %v618 = vrot.slane %v481, 4
      %v619 = vsel %vm553, %v616, %v618
      %v626 = vrot.slane %v482, 2
      %v627 = vrot.slane %v483, 2
      %v628 = vsel %vm512, %v626, %v627
      %v629 = vrot.slane %v484, 2
      %v630 = vsel %vm512, %v627, %v629
      %v631 = vrot.slane %v485, 2
      %v632 = vrot.slane %v486, 2
      %v633 = vsel %vm512, %v631, %v632
      %v634 = vrot.slane %v487, 2
      %v635 = vsel %vm512, %v632, %v634
      %v636 = vrot.slane %v482, 4
      %v637 = vrot.slane %v483, 4
      %v638 = vsel %vm553, %v636, %v637
      %v639 = vrot.slane %v484, 4
      %v640 = vsel %vm553, %v637, %v639
      %v641 = vrot.slane %v485, 4
      %v642 = vrot.slane %v486, 4
      %v643 = vsel %vm553, %v641, %v642
      %v644 = vrot.slane %v487, 4
      %v645 = vsel %vm553, %v642, %v644
      %646 = vrot.lane.b32.xlu0 %v515, 4
      %v647 = vpop.permute.xlu0 %646
      %648 = vrot.lane.b32.xlu0 %v517, 4
      %v649 = vpop.permute.xlu0 %648
      %650 = vrot.lane.b32.xlu0 %v520, 4
      %v651 = vpop.permute.xlu0 %650
      %652 = vrot.lane.b32.xlu0 %v522, 4
      %v653 = vpop.permute.xlu0 %652
      %654 = vrot.lane.b32.xlu0 %v525, 4
      %v655 = vpop.permute.xlu0 %654
      %656 = vrot.lane.b32.xlu0 %v527, 4
      %v657 = vpop.permute.xlu0 %656
      %658 = vrot.lane.b32.xlu0 %v530, 4
      %v659 = vpop.permute.xlu0 %658
      %660 = vrot.lane.b32.xlu0 %v532, 4
      %v661 = vpop.permute.xlu0 %660
      %662 = vrot.lane.b32.xlu0 %v535, 4
      %v663 = vpop.permute.xlu0 %662
      %664 = vrot.lane.b32.xlu0 %v537, 4
      %v665 = vpop.permute.xlu0 %664
      %666 = vrot.lane.b32.xlu0 %v540, 4
      %v667 = vpop.permute.xlu0 %666
      %668 = vrot.lane.b32.xlu0 %v542, 4
      %v669 = vpop.permute.xlu0 %668
      %670 = vrot.lane.b32.xlu0 %v545, 4
      %v671 = vpop.permute.xlu0 %670
      %672 = vrot.lane.b32.xlu0 %v547, 4
      %v673 = vpop.permute.xlu0 %672
      %674 = vrot.lane.b32.xlu0 %v550, 4
      %v675 = vpop.permute.xlu0 %674
      %676 = vrot.lane.b32.xlu0 %v552, 4
      %v677 = vpop.permute.xlu0 %676
      %694 = vrot.lane.b32.xlu0 %v556, 8
      %v695 = vpop.permute.xlu0 %694
      %696 = vrot.lane.b32.xlu0 %v558, 8
      %v697 = vpop.permute.xlu0 %696
      %698 = vrot.lane.b32.xlu0 %v561, 8
      %v699 = vpop.permute.xlu0 %698
      %700 = vrot.lane.b32.xlu0 %v563, 8
      %v701 = vpop.permute.xlu0 %700
      %702 = vrot.lane.b32.xlu0 %v566, 8
      %v703 = vpop.permute.xlu0 %702
      %704 = vrot.lane.b32.xlu0 %v568, 8
      %v705 = vpop.permute.xlu0 %704
      %706 = vrot.lane.b32.xlu0 %v571, 8
      %v707 = vpop.permute.xlu0 %706
      %708 = vrot.lane.b32.xlu0 %v573, 8
      %v709 = vpop.permute.xlu0 %708
      %710 = vrot.lane.b32.xlu0 %v576, 8
      %v711 = vpop.permute.xlu0 %710
      %712 = vrot.lane.b32.xlu0 %v578, 8
      %v713 = vpop.permute.xlu0 %712
      %714 = vrot.lane.b32.xlu0 %v581, 8
      %v715 = vpop.permute.xlu0 %714
      %716 = vrot.lane.b32.xlu0 %v583, 8
      %v717 = vpop.permute.xlu0 %716
      %718 = vrot.lane.b32.xlu0 %v586, 8
      %v719 = vpop.permute.xlu0 %718
      %720 = vrot.lane.b32.xlu0 %v588, 8
      %v721 = vpop.permute.xlu0 %720
      %722 = vrot.lane.b32.xlu0 %v591, 8
      %v723 = vpop.permute.xlu0 %722
      %724 = vrot.lane.b32.xlu0 %v593, 8
      %v725 = vpop.permute.xlu0 %724
      %742 = vrot.lane.b32.xlu0 %v458, 12
      %v743 = vpop.permute.xlu0 %742
      %744 = vrot.lane.b32.xlu0 %v459, 12
      %v745 = vpop.permute.xlu0 %744
      %746 = vrot.lane.b32.xlu0 %v461, 12
      %v747 = vpop.permute.xlu0 %746
      %748 = vrot.lane.b32.xlu0 %v462, 12
      %v749 = vpop.permute.xlu0 %748
      %750 = vrot.lane.b32.xlu0 %v464, 12
      %v751 = vpop.permute.xlu0 %750
      %752 = vrot.lane.b32.xlu0 %v465, 12
      %v753 = vpop.permute.xlu0 %752
      %754 = vrot.lane.b32.xlu0 %v467, 12
      %v755 = vpop.permute.xlu0 %754
      %756 = vrot.lane.b32.xlu0 %v468, 12
      %v757 = vpop.permute.xlu0 %756
      %758 = vrot.lane.b32.xlu0 %v470, 12
      %v759 = vpop.permute.xlu0 %758
      %760 = vrot.lane.b32.xlu0 %v471, 12
      %v761 = vpop.permute.xlu0 %760
      %762 = vrot.lane.b32.xlu0 %v473, 12
      %v763 = vpop.permute.xlu0 %762
      %764 = vrot.lane.b32.xlu0 %v474, 12
      %v765 = vpop.permute.xlu0 %764
      %766 = vrot.lane.b32.xlu0 %v476, 12
      %v767 = vpop.permute.xlu0 %766
      %768 = vrot.lane.b32.xlu0 %v477, 12
      %v769 = vpop.permute.xlu0 %768
      %770 = vrot.lane.b32.xlu0 %v479, 12
      %v771 = vpop.permute.xlu0 %770
      %772 = vrot.lane.b32.xlu0 %v480, 12
      %v773 = vpop.permute.xlu0 %772
      %790 = vrot.lane.b32.xlu0 %v525, 16
      %v791 = vpop.permute.xlu0 %790
      %792 = vrot.lane.b32.xlu0 %v527, 16
      %v793 = vpop.permute.xlu0 %792
      %794 = vrot.lane.b32.xlu0 %v530, 16
      %v795 = vpop.permute.xlu0 %794
      %796 = vrot.lane.b32.xlu0 %v532, 16
      %v797 = vpop.permute.xlu0 %796
      %798 = vrot.lane.b32.xlu0 %v535, 16
      %v799 = vpop.permute.xlu0 %798
      %800 = vrot.lane.b32.xlu0 %v537, 16
      %v801 = vpop.permute.xlu0 %800
      %802 = vrot.lane.b32.xlu0 %v540, 16
      %v803 = vpop.permute.xlu0 %802
      %804 = vrot.lane.b32.xlu0 %v542, 16
      %v805 = vpop.permute.xlu0 %804
      %806 = vrot.lane.b32.xlu0 %v545, 16
      %v807 = vpop.permute.xlu0 %806
      %808 = vrot.lane.b32.xlu0 %v547, 16
      %v809 = vpop.permute.xlu0 %808
      %810 = vrot.lane.b32.xlu0 %v550, 16
      %v811 = vpop.permute.xlu0 %810
      %812 = vrot.lane.b32.xlu0 %v552, 16
      %v813 = vpop.permute.xlu0 %812
      %814 = vrot.lane.b32.xlu0 %v602, 16
      %v815 = vpop.permute.xlu0 %814
      %816 = vrot.lane.b32.xlu0 %v604, 16
      %v817 = vpop.permute.xlu0 %816
      %818 = vrot.lane.b32.xlu0 %v607, 16
      %v819 = vpop.permute.xlu0 %818
      %820 = vrot.lane.b32.xlu0 %v609, 16
      %v821 = vpop.permute.xlu0 %820
      %838 = vrot.lane.b32.xlu0 %v566, 20
      %v839 = vpop.permute.xlu0 %838
      %840 = vrot.lane.b32.xlu0 %v568, 20
      %v841 = vpop.permute.xlu0 %840
      %842 = vrot.lane.b32.xlu0 %v571, 20
      %v843 = vpop.permute.xlu0 %842
      %844 = vrot.lane.b32.xlu0 %v573, 20
      %v845 = vpop.permute.xlu0 %844
      %846 = vrot.lane.b32.xlu0 %v576, 20
      %v847 = vpop.permute.xlu0 %846
      %848 = vrot.lane.b32.xlu0 %v578, 20
      %v849 = vpop.permute.xlu0 %848
      %850 = vrot.lane.b32.xlu0 %v581, 20
      %v851 = vpop.permute.xlu0 %850
      %852 = vrot.lane.b32.xlu0 %v583, 20
      %v853 = vpop.permute.xlu0 %852
      %854 = vrot.lane.b32.xlu0 %v586, 20
      %v855 = vpop.permute.xlu0 %854
      %856 = vrot.lane.b32.xlu0 %v588, 20
      %v857 = vpop.permute.xlu0 %856
      %858 = vrot.lane.b32.xlu0 %v591, 20
      %v859 = vpop.permute.xlu0 %858
      %860 = vrot.lane.b32.xlu0 %v593, 20
      %v861 = vpop.permute.xlu0 %860
      %862 = vrot.lane.b32.xlu0 %v612, 20
      %v863 = vpop.permute.xlu0 %862
      %864 = vrot.lane.b32.xlu0 %v614, 20
      %v865 = vpop.permute.xlu0 %864
      %866 = vrot.lane.b32.xlu0 %v617, 20
      %v867 = vpop.permute.xlu0 %866
      %868 = vrot.lane.b32.xlu0 %v619, 20
      %v869 = vpop.permute.xlu0 %868
      %886 = vrot.lane.b32.xlu0 %v464, 24
      %v887 = vpop.permute.xlu0 %886
      %888 = vrot.lane.b32.xlu0 %v465, 24
      %v889 = vpop.permute.xlu0 %888
      %890 = vrot.lane.b32.xlu0 %v467, 24
      %v891 = vpop.permute.xlu0 %890
      %892 = vrot.lane.b32.xlu0 %v468, 24
      %v893 = vpop.permute.xlu0 %892
      %894 = vrot.lane.b32.xlu0 %v470, 24
      %v895 = vpop.permute.xlu0 %894
      %896 = vrot.lane.b32.xlu0 %v471, 24
      %v897 = vpop.permute.xlu0 %896
      %898 = vrot.lane.b32.xlu0 %v473, 24
      %v899 = vpop.permute.xlu0 %898
      %900 = vrot.lane.b32.xlu0 %v474, 24
      %v901 = vpop.permute.xlu0 %900
      %902 = vrot.lane.b32.xlu0 %v476, 24
      %v903 = vpop.permute.xlu0 %902
      %904 = vrot.lane.b32.xlu0 %v477, 24
      %v905 = vpop.permute.xlu0 %904
      %906 = vrot.lane.b32.xlu0 %v479, 24
      %v907 = vpop.permute.xlu0 %906
      %908 = vrot.lane.b32.xlu0 %v480, 24
      %v909 = vpop.permute.xlu0 %908
      %910 = vrot.lane.b32.xlu0 %v482, 24
      %v911 = vpop.permute.xlu0 %910
      %912 = vrot.lane.b32.xlu0 %v483, 24
      %v913 = vpop.permute.xlu0 %912
      %914 = vrot.lane.b32.xlu0 %v485, 24
      %v915 = vpop.permute.xlu0 %914
      %916 = vrot.lane.b32.xlu0 %v486, 24
      %v917 = vpop.permute.xlu0 %916
      %934 = vrot.lane.b32.xlu0 %v535, 28
      %v935 = vpop.permute.xlu0 %934
      %936 = vrot.lane.b32.xlu0 %v537, 28
      %v937 = vpop.permute.xlu0 %936
      %938 = vrot.lane.b32.xlu0 %v540, 28
      %v939 = vpop.permute.xlu0 %938
      %940 = vrot.lane.b32.xlu0 %v542, 28
      %v941 = vpop.permute.xlu0 %940
      %942 = vrot.lane.b32.xlu0 %v545, 28
      %v943 = vpop.permute.xlu0 %942
      %944 = vrot.lane.b32.xlu0 %v547, 28
      %v945 = vpop.permute.xlu0 %944
      %946 = vrot.lane.b32.xlu0 %v550, 28
      %v947 = vpop.permute.xlu0 %946
      %948 = vrot.lane.b32.xlu0 %v552, 28
      %v949 = vpop.permute.xlu0 %948
      %950 = vrot.lane.b32.xlu0 %v602, 28
      %v951 = vpop.permute.xlu0 %950
      %952 = vrot.lane.b32.xlu0 %v604, 28
      %v953 = vpop.permute.xlu0 %952
      %954 = vrot.lane.b32.xlu0 %v607, 28
      %v955 = vpop.permute.xlu0 %954
      %956 = vrot.lane.b32.xlu0 %v609, 28
      %v957 = vpop.permute.xlu0 %956
      %958 = vrot.lane.b32.xlu0 %v628, 28
      %v959 = vpop.permute.xlu0 %958
      %960 = vrot.lane.b32.xlu0 %v630, 28
      %v961 = vpop.permute.xlu0 %960
      %962 = vrot.lane.b32.xlu0 %v633, 28
      %v963 = vpop.permute.xlu0 %962
      %964 = vrot.lane.b32.xlu0 %v635, 28
      %v965 = vpop.permute.xlu0 %964
      %982 = vrot.lane.b32.xlu0 %v576, 32
      %v983 = vpop.permute.xlu0 %982
      %984 = vrot.lane.b32.xlu0 %v578, 32
      %v985 = vpop.permute.xlu0 %984
      %986 = vrot.lane.b32.xlu0 %v581, 32
      %v987 = vpop.permute.xlu0 %986
      %988 = vrot.lane.b32.xlu0 %v583, 32
      %v989 = vpop.permute.xlu0 %988
      %990 = vrot.lane.b32.xlu0 %v586, 32
      %v991 = vpop.permute.xlu0 %990
      %992 = vrot.lane.b32.xlu0 %v588, 32
      %v993 = vpop.permute.xlu0 %992
      %994 = vrot.lane.b32.xlu0 %v591, 32
      %v995 = vpop.permute.xlu0 %994
      %996 = vrot.lane.b32.xlu0 %v593, 32
      %v997 = vpop.permute.xlu0 %996
      %998 = vrot.lane.b32.xlu0 %v612, 32
      %v999 = vpop.permute.xlu0 %998
      %1000 = vrot.lane.b32.xlu0 %v614, 32
      %v1001 = vpop.permute.xlu0 %1000
      %1002 = vrot.lane.b32.xlu0 %v617, 32
      %v1003 = vpop.permute.xlu0 %1002
      %1004 = vrot.lane.b32.xlu0 %v619, 32
      %v1005 = vpop.permute.xlu0 %1004
      %1006 = vrot.lane.b32.xlu0 %v638, 32
      %v1007 = vpop.permute.xlu0 %1006
      %1008 = vrot.lane.b32.xlu0 %v640, 32
      %v1009 = vpop.permute.xlu0 %1008
      %1010 = vrot.lane.b32.xlu0 %v643, 32
      %v1011 = vpop.permute.xlu0 %1010
      %1012 = vrot.lane.b32.xlu0 %v645, 32
      %v1013 = vpop.permute.xlu0 %1012
      %vm1030 = vcmask 31744
      %v1031 = vsel %vm1030, %v452, %v647
      %v1032 = vsel %vm1030, %v453, %v649
      %v1033 = vsel %vm1030, %v455, %v651
      %v1034 = vsel %vm1030, %v456, %v653
      %v1035 = vsel %vm1030, %v458, %v655
      %v1036 = vsel %vm1030, %v459, %v657
      %v1037 = vsel %vm1030, %v461, %v659
      %v1038 = vsel %vm1030, %v462, %v661
      %v1039 = vsel %vm1030, %v464, %v663
      %v1040 = vsel %vm1030, %v465, %v665
      %v1041 = vsel %vm1030, %v467, %v667
      %v1042 = vsel %vm1030, %v468, %v669
      %v1043 = vsel %vm1030, %v470, %v671
      %v1044 = vsel %vm1030, %v471, %v673
      %v1045 = vsel %vm1030, %v473, %v675
      %v1046 = vsel %vm1030, %v474, %v677
      %vm1047 = vcmask 64512
      %v1048 = vsel %vm1047, %v1031, %v695
      %v1049 = vsel %vm1047, %v1032, %v697
      %v1050 = vsel %vm1047, %v1033, %v699
      %v1051 = vsel %vm1047, %v1034, %v701
      %v1052 = vsel %vm1047, %v1035, %v703
      %v1053 = vsel %vm1047, %v1036, %v705
      %v1054 = vsel %vm1047, %v1037, %v707
      %v1055 = vsel %vm1047, %v1038, %v709
      %v1056 = vsel %vm1047, %v1039, %v711
      %v1057 = vsel %vm1047, %v1040, %v713
      %v1058 = vsel %vm1047, %v1041, %v715
      %v1059 = vsel %vm1047, %v1042, %v717
      %v1060 = vsel %vm1047, %v1043, %v719
      %v1061 = vsel %vm1047, %v1044, %v721
      %v1062 = vsel %vm1047, %v1045, %v723
      %v1063 = vsel %vm1047, %v1046, %v725
      %vm1064 = vcmask 97280
      %v1065 = vsel %vm1064, %v1048, %v743
      %v1066 = vsel %vm1064, %v1049, %v745
      %v1067 = vsel %vm1064, %v1050, %v747
      %v1068 = vsel %vm1064, %v1051, %v749
      %v1069 = vsel %vm1064, %v1052, %v751
      %v1070 = vsel %vm1064, %v1053, %v753
      %v1071 = vsel %vm1064, %v1054, %v755
      %v1072 = vsel %vm1064, %v1055, %v757
      %v1073 = vsel %vm1064, %v1056, %v759
      %v1074 = vsel %vm1064, %v1057, %v761
      %v1075 = vsel %vm1064, %v1058, %v763
      %v1076 = vsel %vm1064, %v1059, %v765
      %v1077 = vsel %vm1064, %v1060, %v767
      %v1078 = vsel %vm1064, %v1061, %v769
      %v1079 = vsel %vm1064, %v1062, %v771
      %v1080 = vsel %vm1064, %v1063, %v773
      %vm1081 = vcmask 130048
      %v1082 = vsel %vm1081, %v1065, %v791
      %v1083 = vsel %vm1081, %v1066, %v793
      %v1084 = vsel %vm1081, %v1067, %v795
      %v1085 = vsel %vm1081, %v1068, %v797
      %v1086 = vsel %vm1081, %v1069, %v799
      %v1087 = vsel %vm1081, %v1070, %v801
      %v1088 = vsel %vm1081, %v1071, %v803
      %v1089 = vsel %vm1081, %v1072, %v805
      %v1090 = vsel %vm1081, %v1073, %v807
      %v1091 = vsel %vm1081, %v1074, %v809
      %v1092 = vsel %vm1081, %v1075, %v811
      %v1093 = vsel %vm1081, %v1076, %v813
      %v1094 = vsel %vm1081, %v1077, %v815
      %v1095 = vsel %vm1081, %v1078, %v817
      %v1096 = vsel %vm1081, %v1079, %v819
      %v1097 = vsel %vm1081, %v1080, %v821
      %vm1098 = vcmask 162816
      %v1099 = vsel %vm1098, %v1082, %v839
      %v1100 = vsel %vm1098, %v1083, %v841
      %v1101 = vsel %vm1098, %v1084, %v843
      %v1102 = vsel %vm1098, %v1085, %v845
      %v1103 = vsel %vm1098, %v1086, %v847
      %v1104 = vsel %vm1098, %v1087, %v849
      %v1105 = vsel %vm1098, %v1088, %v851
      %v1106 = vsel %vm1098, %v1089, %v853
      %v1107 = vsel %vm1098, %v1090, %v855
      %v1108 = vsel %vm1098, %v1091, %v857
      %v1109 = vsel %vm1098, %v1092, %v859
      %v1110 = vsel %vm1098, %v1093, %v861
      %v1111 = vsel %vm1098, %v1094, %v863
      %v1112 = vsel %vm1098, %v1095, %v865
      %v1113 = vsel %vm1098, %v1096, %v867
      %v1114 = vsel %vm1098, %v1097, %v869
      %vm1115 = vcmask 195584
      %v1116 = vsel %vm1115, %v1099, %v887
      %v1117 = vsel %vm1115, %v1100, %v889
      %v1118 = vsel %vm1115, %v1101, %v891
      %v1119 = vsel %vm1115, %v1102, %v893
      %v1120 = vsel %vm1115, %v1103, %v895
      %v1121 = vsel %vm1115, %v1104, %v897
      %v1122 = vsel %vm1115, %v1105, %v899
      %v1123 = vsel %vm1115, %v1106, %v901
      %v1124 = vsel %vm1115, %v1107, %v903
      %v1125 = vsel %vm1115, %v1108, %v905
      %v1126 = vsel %vm1115, %v1109, %v907
      %v1127 = vsel %vm1115, %v1110, %v909
      %v1128 = vsel %vm1115, %v1111, %v911
      %v1129 = vsel %vm1115, %v1112, %v913
      %v1130 = vsel %vm1115, %v1113, %v915
      %v1131 = vsel %vm1115, %v1114, %v917
      %vm1132 = vcmask 228352
      %v1133 = vsel %vm1132, %v1116, %v935
      %v1134 = vsel %vm1132, %v1117, %v937
      %v1135 = vsel %vm1132, %v1118, %v939
      %v1136 = vsel %vm1132, %v1119, %v941
      %v1137 = vsel %vm1132, %v1120, %v943
      %v1138 = vsel %vm1132, %v1121, %v945
      %v1139 = vsel %vm1132, %v1122, %v947
      %v1140 = vsel %vm1132, %v1123, %v949
      %v1141 = vsel %vm1132, %v1124, %v951
      %v1142 = vsel %vm1132, %v1125, %v953
      %v1143 = vsel %vm1132, %v1126, %v955
      %v1144 = vsel %vm1132, %v1127, %v957
      %v1145 = vsel %vm1132, %v1128, %v959
      %v1146 = vsel %vm1132, %v1129, %v961
      %v1147 = vsel %vm1132, %v1130, %v963
      %v1148 = vsel %vm1132, %v1131, %v965
      %vm1149 = vcmask 261120
      %v1150 = vsel %vm1149, %v1133, %v983
      %v1151 = vsel %vm1149, %v1134, %v985
      %v1152 = vsel %vm1149, %v1135, %v987
      %v1153 = vsel %vm1149, %v1136, %v989
      %v1154 = vsel %vm1149, %v1137, %v991
      %v1155 = vsel %vm1149, %v1138, %v993
      %v1156 = vsel %vm1149, %v1139, %v995
      %v1157 = vsel %vm1149, %v1140, %v997
      %v1158 = vsel %vm1149, %v1141, %v999
      %v1159 = vsel %vm1149, %v1142, %v1001
      %v1160 = vsel %vm1149, %v1143, %v1003
      %v1161 = vsel %vm1149, %v1144, %v1005
      %v1162 = vsel %vm1149, %v1145, %v1007
      %v1163 = vsel %vm1149, %v1146, %v1009
      %v1164 = vsel %vm1149, %v1147, %v1011
      %v1165 = vsel %vm1149, %v1148, %v1013
      %v1166 = vld [vmem:[%s2] sm:$0xff]
      %v1167 = vld [vmem:[%s2 + $0x8] sm:$0xff]
      %v1168 = vld [vmem:[%s2 + $0x10] sm:$0xff]
      %v1169 = vld [vmem:[%s2 + $0x18] sm:$0xff]
      %v1170 = vld [vmem:[%s2 + $0x20] sm:$0xf]
      %v1171 = vld [vmem:[%s3] sm:$0x1]
      %v1173 = vperm.slane %v1171, 0
      %vm1175 = vcmask 293888
      %v1177 = vsel %vm1175, %v1150, 0
      %v1180 = vsel %vm1175, %v1151, 0
      %v1183 = vsel %vm1175, %v1152, 0
      %v1186 = vsel %vm1175, %v1153, 0
      %v1189 = vsel %vm1175, %v1154, 0
      %v1192 = vsel %vm1175, %v1155, 0
      %v1195 = vsel %vm1175, %v1156, 0
      %v1198 = vsel %vm1175, %v1157, 0
      %v1201 = vsel %vm1175, %v1158, 0
      %v1204 = vsel %vm1175, %v1159, 0
      %v1207 = vsel %vm1175, %v1160, 0
      %v1210 = vsel %vm1175, %v1161, 0
      %v1213 = vsel %vm1175, %v1162, 0
      %v1216 = vsel %vm1175, %v1163, 0
      %v1219 = vsel %vm1175, %v1164, 0
      %v1222 = vsel %vm1175, %v1165, 0
      %v1225 = vsel %vm553, %v1170, 0
      %1227 = vmatpush.msra.mxu0 0.0
      %1228 = vmatpush.msra.mxu0 0.0
      %1229 = vmatpush.msra.mxu0 0.0
      %1230 = vmatpush.msra.mxu0 0.0
      %1231 = vmatpush.msra.mxu0 0.0
      %1232 = vmatpush.msra.mxu0 0.0
      %1233 = vmatpush.msra.mxu0 0.0
      %1234 = vmatpush.msra.mxu0 0.0
      %1235 = vmatpush.msra.mxu0 0.0
      %1236 = vmatpush.msra.mxu0 0.0
      %1237 = vmatpush.msra.mxu0 0.0
      %1238 = vmatpush.msra.mxu0 %v1225
      %1239 = vmatpush.msra.mxu0 %v1169
      %1240 = vmatpush.msra.mxu0 %v1168
      %1241 = vmatpush.msra.mxu0 %v1167
      %1242 = vmatpush.msra.mxu0 %v1166
      %1243 = vmatmul.f32.gmra.mxu0 %v1177
      %v1244 = vpop.f32.mrf.mxu0
      %v1245 = vadd.f32 %v1173, %v1244
      %1246 = vmatmul.f32.gmra.mxu0 %v1180
      %v1247 = vpop.f32.mrf.mxu0
      %v1248 = vadd.f32 %v1173, %v1247
      %1249 = vmatmul.f32.gmra.mxu0 %v1183
      %v1250 = vpop.f32.mrf.mxu0
      %v1251 = vadd.f32 %v1173, %v1250
      %1252 = vmatmul.f32.gmra.mxu0 %v1186
      %v1253 = vpop.f32.mrf.mxu0
      %v1254 = vadd.f32 %v1173, %v1253
      %1255 = vmatmul.f32.gmra.mxu0 %v1189
      %v1256 = vpop.f32.mrf.mxu0
      %v1257 = vadd.f32 %v1173, %v1256
      %1258 = vmatmul.f32.gmra.mxu0 %v1192
      %v1259 = vpop.f32.mrf.mxu0
      %v1260 = vadd.f32 %v1173, %v1259
      %1261 = vmatmul.f32.gmra.mxu0 %v1195
      %v1262 = vpop.f32.mrf.mxu0
      %v1263 = vadd.f32 %v1173, %v1262
      %1264 = vmatmul.f32.gmra.mxu0 %v1198
      %v1265 = vpop.f32.mrf.mxu0
      %v1266 = vadd.f32 %v1173, %v1265
      %1267 = vmatmul.f32.gmra.mxu0 %v1201
      %v1268 = vpop.f32.mrf.mxu0
      %v1269 = vadd.f32 %v1173, %v1268
      %1270 = vmatmul.f32.gmra.mxu0 %v1204
      %v1271 = vpop.f32.mrf.mxu0
      %v1272 = vadd.f32 %v1173, %v1271
      %1273 = vmatmul.f32.gmra.mxu0 %v1207
      %v1274 = vpop.f32.mrf.mxu0
      %v1275 = vadd.f32 %v1173, %v1274
      %1276 = vmatmul.f32.gmra.mxu0 %v1210
      %v1277 = vpop.f32.mrf.mxu0
      %v1278 = vadd.f32 %v1173, %v1277
      %1279 = vmatmul.f32.gmra.mxu0 %v1213
      %v1280 = vpop.f32.mrf.mxu0
      %v1281 = vadd.f32 %v1173, %v1280
      %1282 = vmatmul.f32.gmra.mxu0 %v1216
      %v1283 = vpop.f32.mrf.mxu0
      %v1284 = vadd.f32 %v1173, %v1283
      %1285 = vmatmul.f32.gmra.mxu0 %v1219
      %v1286 = vpop.f32.mrf.mxu0
      %v1287 = vadd.f32 %v1173, %v1286
      %1288 = vmatmul.f32.gmra.mxu0 %v1222
      %v1289 = vpop.f32.mrf.mxu0
      %v1290 = vadd.f32 %v1173, %v1289
      %1291 = vdwg.mxu0
      %v1292 = vld [vmem:[%s441] sm:$0x1]
      %v1293 = vsel %vm1047, %v1245, 0.0
      %v1294 = vsel %vm1047, %v1248, 0.0
      %v1295 = vadd.f32 %v1293, %v1294
      %v1296 = vsel %vm1047, %v1251, 0.0
      %v1297 = vadd.f32 %v1295, %v1296
      %v1298 = vsel %vm1047, %v1254, 0.0
      %v1299 = vadd.f32 %v1297, %v1298
      %v1300 = vsel %vm1047, %v1257, 0.0
      %v1301 = vadd.f32 %v1299, %v1300
      %v1302 = vsel %vm1047, %v1260, 0.0
      %v1303 = vadd.f32 %v1301, %v1302
      %v1304 = vsel %vm1047, %v1263, 0.0
      %v1305 = vadd.f32 %v1303, %v1304
      %v1306 = vsel %vm1047, %v1266, 0.0
      %v1307 = vadd.f32 %v1305, %v1306
      %v1308 = vsel %vm1047, %v1269, 0.0
      %v1309 = vadd.f32 %v1307, %v1308
      %v1310 = vsel %vm1047, %v1272, 0.0
      %v1311 = vadd.f32 %v1309, %v1310
      %v1312 = vsel %vm1047, %v1275, 0.0
      %v1313 = vadd.f32 %v1311, %v1312
      %v1314 = vsel %vm1047, %v1278, 0.0
      %v1315 = vadd.f32 %v1313, %v1314
      %v1316 = vsel %vm1047, %v1281, 0.0
      %v1317 = vadd.f32 %v1315, %v1316
      %v1318 = vsel %vm1047, %v1284, 0.0
      %v1319 = vadd.f32 %v1317, %v1318
      %v1320 = vsel %vm1047, %v1287, 0.0
      %v1321 = vadd.f32 %v1319, %v1320
      %v1322 = vsel %vm1047, %v1290, 0.0
      %v1323 = vadd.f32 %v1321, %v1322
      %v1324 = vrot.slane %v1323, 4
      %v1325 = vadd.f32 %v1323, %v1324
      %v1326 = vrot.slane %v1325, 2
      %v1327 = vadd.f32 %v1325, %v1326
      %v1328 = vrot.slane %v1327, 1
      %v1329 = vadd.f32 %v1327, %v1328
      %v1330 = vadd.f32 %v1292, %v1329
      %vm1331 = vcmask 57344
      %1332 = vst.msk [vmem:[%s441] sm:$0x1] %vm1331, %v1330
      %v1333 = vld [vmem:[%s444] sm:$0x1]
      %v1334 = vmul.f32 %v1245, %v1245
      %v1335 = vmul.f32 %v1248, %v1248
      %v1336 = vmul.f32 %v1251, %v1251
      %v1337 = vmul.f32 %v1254, %v1254
      %v1338 = vmul.f32 %v1257, %v1257
      %v1339 = vmul.f32 %v1260, %v1260
      %v1340 = vmul.f32 %v1263, %v1263
      %v1341 = vmul.f32 %v1266, %v1266
      %v1342 = vmul.f32 %v1269, %v1269
      %v1343 = vmul.f32 %v1272, %v1272
      %v1344 = vmul.f32 %v1275, %v1275
      %v1345 = vmul.f32 %v1278, %v1278
      %v1346 = vmul.f32 %v1281, %v1281
      %v1347 = vmul.f32 %v1284, %v1284
      %v1348 = vmul.f32 %v1287, %v1287
      %v1349 = vmul.f32 %v1290, %v1290
      %v1350 = vsel %vm1047, %v1334, 0.0
      %v1351 = vsel %vm1047, %v1335, 0.0
      %v1352 = vadd.f32 %v1350, %v1351
      %v1353 = vsel %vm1047, %v1336, 0.0
      %v1354 = vadd.f32 %v1352, %v1353
      %v1355 = vsel %vm1047, %v1337, 0.0
      %v1356 = vadd.f32 %v1354, %v1355
      %v1357 = vsel %vm1047, %v1338, 0.0
      %v1358 = vadd.f32 %v1356, %v1357
      %v1359 = vsel %vm1047, %v1339, 0.0
      %v1360 = vadd.f32 %v1358, %v1359
      %v1361 = vsel %vm1047, %v1340, 0.0
      %v1362 = vadd.f32 %v1360, %v1361
      %v1363 = vsel %vm1047, %v1341, 0.0
      %v1364 = vadd.f32 %v1362, %v1363
      %v1365 = vsel %vm1047, %v1342, 0.0
      %v1366 = vadd.f32 %v1364, %v1365
      %v1367 = vsel %vm1047, %v1343, 0.0
      %v1368 = vadd.f32 %v1366, %v1367
      %v1369 = vsel %vm1047, %v1344, 0.0
      %v1370 = vadd.f32 %v1368, %v1369
      %v1371 = vsel %vm1047, %v1345, 0.0
      %v1372 = vadd.f32 %v1370, %v1371
      %v1373 = vsel %vm1047, %v1346, 0.0
      %v1374 = vadd.f32 %v1372, %v1373
      %v1375 = vsel %vm1047, %v1347, 0.0
      %v1376 = vadd.f32 %v1374, %v1375
      %v1377 = vsel %vm1047, %v1348, 0.0
      %v1378 = vadd.f32 %v1376, %v1377
      %v1379 = vsel %vm1047, %v1349, 0.0
      %v1380 = vadd.f32 %v1378, %v1379
      %v1381 = vrot.slane %v1380, 4
      %v1382 = vadd.f32 %v1380, %v1381
      %v1383 = vrot.slane %v1382, 2
      %v1384 = vadd.f32 %v1382, %v1383
      %v1385 = vrot.slane %v1384, 1
      %v1386 = vadd.f32 %v1384, %v1385
      %v1387 = vadd.f32 %v1333, %v1386
      %1388 = vst.msk [vmem:[%s444] sm:$0x1] %vm1331, %v1387
      %1389 = vst.msk [vmem:[%s437] sm:$0xff] %vm1047, %v1245
      %1390 = vst.msk [vmem:[%s437 + $0x8] sm:$0xff] %vm1047, %v1248
      %1391 = vst.msk [vmem:[%s437 + $0x10] sm:$0xff] %vm1047, %v1251
      %1392 = vst.msk [vmem:[%s437 + $0x18] sm:$0xff] %vm1047, %v1254
      %1393 = vst.msk [vmem:[%s437 + $0x20] sm:$0xff] %vm1047, %v1257
      %1394 = vst.msk [vmem:[%s437 + $0x28] sm:$0xff] %vm1047, %v1260
      %1395 = vst.msk [vmem:[%s437 + $0x30] sm:$0xff] %vm1047, %v1263
      %1396 = vst.msk [vmem:[%s437 + $0x38] sm:$0xff] %vm1047, %v1266
      %1397 = vst.msk [vmem:[%s437 + $0x40] sm:$0xff] %vm1047, %v1269
      %1398 = vst.msk [vmem:[%s437 + $0x48] sm:$0xff] %vm1047, %v1272
      %1399 = vst.msk [vmem:[%s437 + $0x50] sm:$0xff] %vm1047, %v1275
      %1400 = vst.msk [vmem:[%s437 + $0x58] sm:$0xff] %vm1047, %v1278
      %1401 = vst.msk [vmem:[%s437 + $0x60] sm:$0xff] %vm1047, %v1281
      %1402 = vst.msk [vmem:[%s437 + $0x68] sm:$0xff] %vm1047, %v1284
      %1403 = vst.msk [vmem:[%s437 + $0x70] sm:$0xff] %vm1047, %v1287
      %1404 = vst.msk [vmem:[%s437 + $0x78] sm:$0xff] %vm1047, %v1290
      %s1405 = smul.u32 8, %s25
      %p1406 = scmp.lt.s32.totalorder %s24, 1
      %s1407 = scalar_select %p1406, %s24, 1
      %p1408 = scmp.lt.s32.totalorder %s1405, 15
      %s1409 = scalar_select %p1408, %s1405, 15
      %s1410 = smul.addr %s1409, 2
      %s1411 = smul.addr %s1407, 32
      %s1412 = sadd.s32 %s1410, %s1411
      %s1413 = smul.addr %s1412, 8
      %s1414 = scalar_lea.vmem %s6, %s1413
      %p1415 = scmp.lt.s32.totalorder %s24, 1
      %s1416 = scalar_select %p1415, %s24, 1
      %s1417 = scalar_lea.vmem %s7, %s1416
      %p1418 = scmp.lt.s32.totalorder %s24, 1
      %s1419 = scalar_select %p1418, %s24, 1
      %s1420 = scalar_lea.vmem %s8, %s1419
      // Predicated region
      $region49: #{bridge_forward.3} parent=43 // pred_check
        %p1421 = pneg %p196
      $region50: #{bridge_forward.3} parent=43 // pred_check_branch
        %1423 = sbr.rel (%p1421) target = $region52
      $region51: #{bridge_forward.3} parent=43 // pred_region
        %s1424 = smul.u32 8, %s25
      $region52: #{bridge_forward.3} parent=43 // pred_fallthru
        _
      // Predicated region
      $region53: #{bridge_forward.3} parent=43 // pred_check
        %p1425 = pneg %p222
      $region54: #{bridge_forward.3} parent=43 // pred_check_branch
        %1427 = sbr.rel (%p1425) target = $region56
      $region55: #{bridge_forward.3} parent=43 // pred_region
        _
      $region56: #{bridge_forward.3} parent=43 // pred_fallthru
        _
      // Predicated region
      $region57: #{bridge_forward.3} parent=43 // pred_check
        %p1428 = pneg %p248
      $region58: #{bridge_forward.3} parent=43 // pred_check_branch
        %1430 = sbr.rel (%p1428) target = $region60
      $region59: #{bridge_forward.3} parent=43 // pred_region
        _
      $region60: #{bridge_forward.3} parent=43 // pred_fallthru
        _
    $region44: #{bridge_forward.3} parent=5 // pred_fallthru
      _
    %p1431 = scmp.le.s32.totalorder 2, %s15
    // Predicated region
    $region61: #{bridge_forward.3} parent=5 // pred_check
      %p1432 = pneg %p1431
    $region62: #{bridge_forward.3} parent=5 // pred_check_branch
      %1434 = sbr.rel (%p1432) target = $region64
    $region63: #{bridge_forward.3} parent=5 // pred_region
      %s1435 = ssub.s32 %s15, 2
      // Predicated region
      $region65: #{bridge_forward.3} parent=63 // pred_check
        %p1436 = pneg %p202
      $region66: #{bridge_forward.3} parent=63 // pred_check_branch
        %1438 = sbr.rel (%p1436) target = $region68
      $region67: #{bridge_forward.3} parent=63 // pred_region
        %s1439 = smul.u32 8, %s27
        %p1440 = scmp.lt.s32.totalorder %s26, 1
        %s1441 = scalar_select %p1440, %s26, 1
        %p1442 = scmp.lt.s32.totalorder %s1439, 15
        %s1443 = scalar_select %p1442, %s1439, 15
        %s1444 = smul.addr %s1443, 2
        %s1445 = smul.addr %s1441, 32
        %s1446 = sadd.s32 %s1444, %s1445
        %s1447 = smul.addr %s1446, 8
        %s1448 = scalar_lea.vmem %s6, %s1447
      $region68: #{bridge_forward.3} parent=63 // pred_fallthru
        _
      // Predicated region
      $region69: #{bridge_forward.3} parent=63 // pred_check
        %p1449 = pneg %p228
      $region70: #{bridge_forward.3} parent=63 // pred_check_branch
        %1451 = sbr.rel (%p1449) target = $region72
      $region71: #{bridge_forward.3} parent=63 // pred_region
        %p1452 = scmp.lt.s32.totalorder %s26, 1
        %s1453 = scalar_select %p1452, %s26, 1
        %s1454 = scalar_lea.vmem %s7, %s1453
      $region72: #{bridge_forward.3} parent=63 // pred_fallthru
        _
      // Predicated region
      $region73: #{bridge_forward.3} parent=63 // pred_check
        %p1455 = pneg %p254
      $region74: #{bridge_forward.3} parent=63 // pred_check_branch
        %1457 = sbr.rel (%p1455) target = $region76
      $region75: #{bridge_forward.3} parent=63 // pred_region
        %p1458 = scmp.lt.s32.totalorder %s26, 1
        %s1459 = scalar_select %p1458, %s26, 1
        %s1460 = scalar_lea.vmem %s8, %s1459
      $region76: #{bridge_forward.3} parent=63 // pred_fallthru
        _
    $region64: #{bridge_forward.3} parent=5 // pred_fallthru
      _
  $region6: #{bridge_forward.3} parent=0 // loop_footer
    %s19 = sadd.s32 1, %s15
  $region7: #{bridge_forward.3} parent=0 // loop_footer_branch
    %14 = sbr.rel target = $region3
  $region8: #{bridge_forward.3} parent=0 // loop_exit
    _

// kernel: bridge_forward.4
$region0: #{bridge_forward.4}
  #allocation0 [shape = 'u32[]', space=smem, size = 0x4, offset = 0x4, fixed_abs, tag = 'smem constant byte address 0x4 - core index']
  #allocation1 [shape = 'u32[72,128]{1,0:T(1,128)}', space=vmem, size = 0x9000, scoped, tag = 'internal scratch']
  %s0 = inlined_call_operand.vmem [shape: f32[2,20,20,8], index: 0, kind: input, shape index: {}, may-alias: {0,1}]
  %s1 = inlined_call_operand.vmem [shape: f32[2,20,20,8], index: 1, kind: input, shape index: {}, may-alias: {0,1}]
  %s2 = inlined_call_operand.vmem [shape: f32[72,8], index: 2, kind: input, shape index: {}]
  %s3 = inlined_call_operand.vmem [shape: f32[1,8], index: 3, kind: input, shape index: {}]
  %s4 = inlined_call_operand.vmem [shape: f32[1,8], index: 4, kind: input, shape index: {}]
  %s5 = inlined_call_operand.vmem [shape: f32[1,8], index: 5, kind: input, shape index: {}]
  %s6 = inlined_call_operand.vmem [shape: f32[2,16,16,8], index: 6, kind: output, shape index: {0}]
  %s7 = inlined_call_operand.vmem [shape: f32[2,1,8], index: 7, kind: output, shape index: {1}]
  %s8 = inlined_call_operand.vmem [shape: f32[2,1,8], index: 8, kind: output, shape index: {2}]
  %9 = xla_tuple %s6, %s7, %s8
  %s10 = sld [smem:[#allocation0]]
  $region77: #{bridge_forward.4} parent=0
    _
  %s12 = ssub.s32 1, %s10
  %s13 = scalar_select 0, %s12, %s10
  loop: start=0, step=1, limit=6
  $region2: #{bridge_forward.4} parent=0 // loop_pre_header
    _
  $region3: #{bridge_forward.4} parent=0 // loop_header
    %s15 = sphi 0, %s19
    %p16 = scmp.ge.s32.totalorder %s15, 6
    %s22 = sphi 0, %s34
    %s23 = sphi 0, %s30
    %s24 = sphi 0, %s22
    %s25 = sphi 0, %s23
    %s26 = sphi 0, %s24
    %s27 = sphi 0, %s25
    %s39 = sphi 0, %s41
    %s42 = sphi 0, %s39
    %s43 = sphi 0, %s42
    %s59 = sphi 0, %s43
    %s71 = sphi 0, %s73
    %s74 = sphi 0, %s71
    %s75 = sphi 0, %s74
    %s91 = sphi 0, %s75
    %s95 = sphi 0, %s95
    %s97 = sphi 0, %s95
    %s98 = sphi 0, %s97
    %s112 = sphi 0, %s98
    %s116 = sphi 0, %s116
    %s118 = sphi 0, %s116
    %s119 = sphi 0, %s118
    %s133 = sphi 0, %s119
    %s137 = sphi 0, %s137
    %s139 = sphi 0, %s137
    %s140 = sphi 0, %s139
    %s154 = sphi 0, %s140
    %s158 = sphi 0, %s158
    %s160 = sphi 0, %s158
    %s161 = sphi 0, %s160
    %s175 = sphi 0, %s161
    %s183 = sphi 0, %s185
    %s186 = sphi 0, %s183
    %s187 = sphi 0, %s186
    %s203 = sphi 0, %s187
    %s209 = sphi 0, %s211
    %s212 = sphi 0, %s209
    %s213 = sphi 0, %s212
    %s229 = sphi 0, %s213
    %s235 = sphi 0, %s237
    %s238 = sphi 0, %s235
    %s239 = sphi 0, %s238
    %s255 = sphi 0, %s239
  $region4: #{bridge_forward.4} parent=0 // loop_header_branch
    %18 = sbr.rel (%p16) target = $region8
  $region5: #{bridge_forward.4} parent=0 // loop_body
    %s20 = ssub.s32 %s15, 1
    %s21 = ssub.s32 %s15, 2
    %s28 = sadd.s32 1, %s23
    %p29 = scmp.ge.s32.totalorder %s28, 2
    %s30 = scalar_select %p29, 0, %s28
    %s31 = sadd.s32 1, %s22
    %s32 = scalar_select %p29, %s31, %s22
    %p33 = scmp.ge.s32.totalorder %s32, 2
    %s34 = scalar_select %p33, 0, %s32
    %s35 = ssub.s32 %s22, %s34
    %s36 = ssub.s32 %s23, %s30
    %s37 = sor.u32 %s35, %s36
    %p38 = scmp.eq.s32.totalorder %s37, 0
    %s40 = sadd.s32 %s39, 1
    %s41 = scalar_select %p38, %s39, %s40
    %p44 = pneg %p38
    %p45 = scmp.eq.s32.totalorder %s15, 3
    %p46 = por %p44, %p45
    %p47 = scmp.ne.s32.totalorder %s39, %s42
    %p48 = scmp.eq.s32.totalorder %s15, 0
    %p49 = por %p47, %p48
    %p50 = scmp.ne.s32.totalorder %s39, %s42
    %p51 = scmp.eq.s32.totalorder %s20, 3
    %p52 = por %p50, %p51
    %p53 = scmp.ne.s32.totalorder %s42, %s43
    %p54 = scmp.eq.s32.totalorder %s20, 0
    %p55 = por %p53, %p54
    %p56 = scmp.ne.s32.totalorder %s42, %s43
    %p57 = scmp.eq.s32.totalorder %s21, 3
    %p58 = por %p56, %p57
    %p60 = scmp.ne.s32.totalorder %s43, %s59
    %p61 = scmp.eq.s32.totalorder %s21, 0
    %p62 = por %p60, %p61
    %s63 = sadd.s32 %s23, 1
    %s64 = smul.u32 %s63, 2
    %s65 = sadd.s32 %s30, 1
    %s66 = smul.u32 %s65, 2
    %s67 = ssub.s32 %s22, %s34
    %s68 = ssub.s32 %s64, %s66
    %s69 = sor.u32 %s67, %s68
    %p70 = scmp.eq.s32.totalorder %s69, 0
    %s72 = sadd.s32 %s71, 1
    %s73 = scalar_select %p70, %s71, %s72
    %p76 = pneg %p70
    %p77 = scmp.eq.s32.totalorder %s15, 3
    %p78 = por %p76, %p77
    %p79 = scmp.ne.s32.totalorder %s71, %s74
    %p80 = scmp.eq.s32.totalorder %s15, 0
    %p81 = por %p79, %p80
    %p82 = scmp.ne.s32.totalorder %s71, %s74
    %p83 = scmp.eq.s32.totalorder %s20, 3
    %p84 = por %p82, %p83
    %p85 = scmp.ne.s32.totalorder %s74, %s75
    %p86 = scmp.eq.s32.totalorder %s20, 0
    %p87 = por %p85, %p86
    %p88 = scmp.ne.s32.totalorder %s74, %s75
    %p89 = scmp.eq.s32.totalorder %s21, 3
    %p90 = por %p88, %p89
    %p92 = scmp.ne.s32.totalorder %s75, %s91
    %p93 = scmp.eq.s32.totalorder %s21, 0
    %p94 = por %p92, %p93
    %s96 = sadd.s32 %s95, 1
    %p99 = scmp.eq.s32.totalorder %s15, 3
    %p100 = scmp.ne.s32.totalorder %s95, %s97
    %p101 = scmp.eq.s32.totalorder %s15, 0
    %p102 = por %p100, %p101
    %p103 = scmp.ne.s32.totalorder %s95, %s97
    %p104 = scmp.eq.s32.totalorder %s20, 3
    %p105 = por %p103, %p104
    %p106 = scmp.ne.s32.totalorder %s97, %s98
    %p107 = scmp.eq.s32.totalorder %s20, 0
    %p108 = por %p106, %p107
    %p109 = scmp.ne.s32.totalorder %s97, %s98
    %p110 = scmp.eq.s32.totalorder %s21, 3
    %p111 = por %p109, %p110
    %p113 = scmp.ne.s32.totalorder %s98, %s112
    %p114 = scmp.eq.s32.totalorder %s21, 0
    %p115 = por %p113, %p114
    %s117 = sadd.s32 %s116, 1
    %p120 = scmp.eq.s32.totalorder %s15, 3
    %p121 = scmp.ne.s32.totalorder %s116, %s118
    %p122 = scmp.eq.s32.totalorder %s15, 0
    %p123 = por %p121, %p122
    %p124 = scmp.ne.s32.totalorder %s116, %s118
    %p125 = scmp.eq.s32.totalorder %s20, 3
    %p126 = por %p124, %p125
    %p127 = scmp.ne.s32.totalorder %s118, %s119
    %p128 = scmp.eq.s32.totalorder %s20, 0
    %p129 = por %p127, %p128
    %p130 = scmp.ne.s32.totalorder %s118, %s119
    %p131 = scmp.eq.s32.totalorder %s21, 3
    %p132 = por %p130, %p131
    %p134 = scmp.ne.s32.totalorder %s119, %s133
    %p135 = scmp.eq.s32.totalorder %s21, 0
    %p136 = por %p134, %p135
    %s138 = sadd.s32 %s137, 1
    %p141 = scmp.eq.s32.totalorder %s15, 3
    %p142 = scmp.ne.s32.totalorder %s137, %s139
    %p143 = scmp.eq.s32.totalorder %s15, 0
    %p144 = por %p142, %p143
    %p145 = scmp.ne.s32.totalorder %s137, %s139
    %p146 = scmp.eq.s32.totalorder %s20, 3
    %p147 = por %p145, %p146
    %p148 = scmp.ne.s32.totalorder %s139, %s140
    %p149 = scmp.eq.s32.totalorder %s20, 0
    %p150 = por %p148, %p149
    %p151 = scmp.ne.s32.totalorder %s139, %s140
    %p152 = scmp.eq.s32.totalorder %s21, 3
    %p153 = por %p151, %p152
    %p155 = scmp.ne.s32.totalorder %s140, %s154
    %p156 = scmp.eq.s32.totalorder %s21, 0
    %p157 = por %p155, %p156
    %s159 = sadd.s32 %s158, 1
    %p162 = scmp.eq.s32.totalorder %s15, 3
    %p163 = scmp.ne.s32.totalorder %s158, %s160
    %p164 = scmp.eq.s32.totalorder %s15, 0
    %p165 = por %p163, %p164
    %p166 = scmp.ne.s32.totalorder %s158, %s160
    %p167 = scmp.eq.s32.totalorder %s20, 3
    %p168 = por %p166, %p167
    %p169 = scmp.ne.s32.totalorder %s160, %s161
    %p170 = scmp.eq.s32.totalorder %s20, 0
    %p171 = por %p169, %p170
    %p172 = scmp.ne.s32.totalorder %s160, %s161
    %p173 = scmp.eq.s32.totalorder %s21, 3
    %p174 = por %p172, %p173
    %p176 = scmp.ne.s32.totalorder %s161, %s175
    %p177 = scmp.eq.s32.totalorder %s21, 0
    %p178 = por %p176, %p177
    %s179 = ssub.s32 %s22, %s34
    %s180 = ssub.s32 %s23, %s30
    %s181 = sor.u32 %s179, %s180
    %p182 = scmp.eq.s32.totalorder %s181, 0
    %s184 = sadd.s32 %s183, 1
    %s185 = scalar_select %p182, %s183, %s184
    %p188 = pneg %p182
    %p189 = scmp.eq.s32.totalorder %s15, 3
    %p190 = por %p188, %p189
    %p191 = scmp.ne.s32.totalorder %s183, %s186
    %p192 = scmp.eq.s32.totalorder %s15, 0
    %p193 = por %p191, %p192
    %p194 = scmp.ne.s32.totalorder %s183, %s186
    %p195 = scmp.eq.s32.totalorder %s20, 3
    %p196 = por %p194, %p195
    %p197 = scmp.ne.s32.totalorder %s186, %s187
    %p198 = scmp.eq.s32.totalorder %s20, 0
    %p199 = por %p197, %p198
    %p200 = scmp.ne.s32.totalorder %s186, %s187
    %p201 = scmp.eq.s32.totalorder %s21, 3
    %p202 = por %p200, %p201
    %p204 = scmp.ne.s32.totalorder %s187, %s203
    %p205 = scmp.eq.s32.totalorder %s21, 0
    %p206 = por %p204, %p205
    %s207 = ssub.s32 %s22, %s34
    %p208 = scmp.eq.s32.totalorder %s207, 0
    %s210 = sadd.s32 %s209, 1
    %s211 = scalar_select %p208, %s209, %s210
    %p214 = pneg %p208
    %p215 = scmp.eq.s32.totalorder %s15, 3
    %p216 = por %p214, %p215
    %p217 = scmp.ne.s32.totalorder %s209, %s212
    %p218 = scmp.eq.s32.totalorder %s15, 0
    %p219 = por %p217, %p218
    %p220 = scmp.ne.s32.totalorder %s209, %s212
    %p221 = scmp.eq.s32.totalorder %s20, 3
    %p222 = por %p220, %p221
    %p223 = scmp.ne.s32.totalorder %s212, %s213
    %p224 = scmp.eq.s32.totalorder %s20, 0
    %p225 = por %p223, %p224
    %p226 = scmp.ne.s32.totalorder %s212, %s213
    %p227 = scmp.eq.s32.totalorder %s21, 3
    %p228 = por %p226, %p227
    %p230 = scmp.ne.s32.totalorder %s213, %s229
    %p231 = scmp.eq.s32.totalorder %s21, 0
    %p232 = por %p230, %p231
    %s233 = ssub.s32 %s22, %s34
    %p234 = scmp.eq.s32.totalorder %s233, 0
    %s236 = sadd.s32 %s235, 1
    %s237 = scalar_select %p234, %s235, %s236
    %p240 = pneg %p234
    %p241 = scmp.eq.s32.totalorder %s15, 3
    %p242 = por %p240, %p241
    %p243 = scmp.ne.s32.totalorder %s235, %s238
    %p244 = scmp.eq.s32.totalorder %s15, 0
    %p245 = por %p243, %p244
    %p246 = scmp.ne.s32.totalorder %s235, %s238
    %p247 = scmp.eq.s32.totalorder %s20, 3
    %p248 = por %p246, %p247
    %p249 = scmp.ne.s32.totalorder %s238, %s239
    %p250 = scmp.eq.s32.totalorder %s20, 0
    %p251 = por %p249, %p250
    %p252 = scmp.ne.s32.totalorder %s238, %s239
    %p253 = scmp.eq.s32.totalorder %s21, 3
    %p254 = por %p252, %p253
    %p256 = scmp.ne.s32.totalorder %s239, %s255
    %p257 = scmp.eq.s32.totalorder %s21, 0
    %p258 = por %p256, %p257
    %p259 = scmp.le.s32.totalorder 1, %s15
    %p260 = scmp.lt.s32.totalorder %s15, 5
    %p261 = pnand %p259, %p260
    %p262 = pneg %p261
    // Predicated region
    $region9: #{bridge_forward.4} parent=5 // pred_check
      _
    $region10: #{bridge_forward.4} parent=5 // pred_check_branch
      %264 = sbr.rel (%p261) target = $region12
    $region11: #{bridge_forward.4} parent=5 // pred_region
      %s265 = ssub.s32 %s15, 1
      // Predicated region
      $region13: #{bridge_forward.4} parent=11 // pred_check
        %p266 = pneg %p108
      $region14: #{bridge_forward.4} parent=11 // pred_check_branch
        %268 = sbr.rel (%p266) target = $region16
      $region15: #{bridge_forward.4} parent=11 // pred_region
        _
      $region16: #{bridge_forward.4} parent=11 // pred_fallthru
        _
      // Predicated region
      $region17: #{bridge_forward.4} parent=11 // pred_check
        %p269 = pneg %p129
      $region18: #{bridge_forward.4} parent=11 // pred_check_branch
        %271 = sbr.rel (%p269) target = $region20
      $region19: #{bridge_forward.4} parent=11 // pred_region
        _
      $region20: #{bridge_forward.4} parent=11 // pred_fallthru
        _
      // Predicated region
      $region21: #{bridge_forward.4} parent=11 // pred_check
        %p272 = pneg %p150
      $region22: #{bridge_forward.4} parent=11 // pred_check_branch
        %274 = sbr.rel (%p272) target = $region24
      $region23: #{bridge_forward.4} parent=11 // pred_region
        _
      $region24: #{bridge_forward.4} parent=11 // pred_fallthru
        _
      // Predicated region
      $region25: #{bridge_forward.4} parent=11 // pred_check
        %p275 = pneg %p171
      $region26: #{bridge_forward.4} parent=11 // pred_check_branch
        %277 = sbr.rel (%p275) target = $region28
      $region27: #{bridge_forward.4} parent=11 // pred_region
        _
      $region28: #{bridge_forward.4} parent=11 // pred_fallthru
        _
    $region12: #{bridge_forward.4} parent=5 // pred_fallthru
      _
    %p278 = scmp.lt.s32.totalorder %s15, 4
    // Predicated region
    $region29: #{bridge_forward.4} parent=5 // pred_check
      %p279 = pneg %p278
    $region30: #{bridge_forward.4} parent=5 // pred_check_branch
      %281 = sbr.rel (%p279) target = $region32
    $region31: #{bridge_forward.4} parent=5 // pred_region
      // Predicated region
      $region33: #{bridge_forward.4} parent=31 // pred_check
        %p282 = pneg %p49
      $region34: #{bridge_forward.4} parent=31 // pred_check_branch
        %284 = sbr.rel (%p282) target = $region36
      $region35: #{bridge_forward.4} parent=31 // pred_region
        %s285 = smul.u32 8, %s23
        %s286 = ssub.s32 20, %s285
        %p287 = scmp.lt.s32.totalorder %s286, 8
        %s288 = scalar_select %p287, %s286, 8
        %s289 = smul.u32 8, %s288
        %s290 = smul.u32 %s289, 3
        %p291 = scmp.lt.s32.totalorder %s22, 1
        %s292 = scalar_select %p291, %s22, 1
        %p293 = scmp.lt.s32.totalorder %s285, 19
        %s294 = scalar_select %p293, %s285, 19
        %s295 = smul.addr %s294, 3
        %s296 = smul.addr %s292, 60
        %s297 = sadd.s32 %s295, %s296
        %s298 = smul.addr %s297, 8
        %s299 = scalar_lea.vmem %s0, %s298
        %s300 = smul.u32 8, %s23
        %s301 = ssub.s32 20, %s300
        %p302 = scmp.lt.s32.totalorder %s301, 8
        %s303 = scalar_select %p302, %s301, 8
        %s304 = smul.u32 8, %s303
        %s305 = smul.u32 %s304, 3
      $region36: #{bridge_forward.4} parent=31 // pred_fallthru
        _
      // Predicated region
      $region37: #{bridge_forward.4} parent=31 // pred_check
        %p306 = pneg %p81
      $region38: #{bridge_forward.4} parent=31 // pred_check_branch
        %308 = sbr.rel (%p306) target = $region40
      $region39: #{bridge_forward.4} parent=31 // pred_region
        %s309 = sadd.s32 %s23, 1
        %s310 = smul.u32 %s309, 2
        %s311 = smul.u32 4, %s310
        %p312 = scmp.lt.s32.totalorder %s22, 1
        %s313 = scalar_select %p312, %s22, 1
        %p314 = scmp.lt.s32.totalorder %s311, 19
        %s315 = scalar_select %p314, %s311, 19
        %s316 = smul.addr %s315, 3
        %s317 = smul.addr %s313, 60
        %s318 = sadd.s32 %s316, %s317
        %s319 = smul.addr %s318, 8
        %s320 = scalar_lea.vmem %s1, %s319
        %s321 = sadd.s32 %s23, 1
        %s322 = smul.u32 %s321, 2
        %s323 = smul.u32 4, %s322
      $region40: #{bridge_forward.4} parent=31 // pred_fallthru
        _
    $region32: #{bridge_forward.4} parent=5 // pred_fallthru
      _
    %p324 = scmp.le.s32.totalorder 1, %s15
    %p325 = scmp.lt.s32.totalorder %s15, 5
    %p326 = pnand %p324, %p325
    %p327 = pneg %p326
    // Predicated region
    $region41: #{bridge_forward.4} parent=5 // pred_check
      _
    $region42: #{bridge_forward.4} parent=5 // pred_check_branch
      %329 = sbr.rel (%p326) target = $region44
    $region43: #{bridge_forward.4} parent=5 // pred_region
      %s330 = ssub.s32 %s15, 1
      %s331 = smul.u32 8, %s25
      %s332 = ssub.s32 20, %s331
      %p333 = scmp.lt.s32.totalorder %s332, 8
      %s334 = scalar_select %p333, %s332, 8
      %s335 = smul.u32 8, %s334
      %s336 = smul.u32 %s335, 3
      %p337 = scmp.lt.s32.totalorder %s24, 1
      %s338 = scalar_select %p337, %s24, 1
      %p339 = scmp.lt.s32.totalorder %s331, 19
      %s340 = scalar_select %p339, %s331, 19
      %s341 = smul.addr %s340, 3
      %s342 = smul.addr %s338, 60
      %s343 = sadd.s32 %s341, %s342
      %s344 = smul.addr %s343, 8
      %s345 = scalar_lea.vmem %s0, %s344
      %p346 = pneg %p55
      %p347 = pneg %p52
      %s348 = sadd.s32 %s25, 1
      %s349 = smul.u32 %s348, 2
      %s350 = smul.u32 4, %s349
      %p351 = scmp.lt.s32.totalorder %s24, 1
      %s352 = scalar_select %p351, %s24, 1
      %p353 = scmp.lt.s32.totalorder %s350, 19
      %s354 = scalar_select %p353, %s350, 19
      %s355 = smul.addr %s354, 3
      %s356 = smul.addr %s352, 60
      %s357 = sadd.s32 %s355, %s356
      %s358 = smul.addr %s357, 8
      %s359 = scalar_lea.vmem %s1, %s358
      %p360 = pneg %p87
      %p361 = pneg %p84
      %p362 = pneg %p108
      %p363 = pneg %p105
      %p364 = pneg %p129
      %p365 = pneg %p126
      %p366 = pneg %p150
      %p367 = pneg %p147
      %p368 = pneg %p171
      %p369 = pneg %p168
      %p370 = pneg %p199
      %p371 = pneg %p196
      %s372 = smul.u32 8, %s25
      %p373 = scmp.lt.s32.totalorder %s24, 1
      %s374 = scalar_select %p373, %s24, 1
      %p375 = scmp.lt.s32.totalorder %s372, 15
      %s376 = scalar_select %p375, %s372, 15
      %s377 = smul.addr %s376, 2
      %s378 = smul.addr %s374, 32
      %s379 = sadd.s32 %s377, %s378
      %s380 = smul.addr %s379, 8
      %s381 = scalar_lea.vmem %s6, %s380
      %p382 = pneg %p225
      %p383 = pneg %p222
      %p384 = scmp.lt.s32.totalorder %s24, 1
      %s385 = scalar_select %p384, %s24, 1
      %s386 = scalar_lea.vmem %s7, %s385
      %p387 = pneg %p251
      %p388 = pneg %p248
      %p389 = scmp.lt.s32.totalorder %s24, 1
      %s390 = scalar_select %p389, %s24, 1
      %s391 = scalar_lea.vmem %s8, %s390
      %s392 = smul.u32 8, %s25
      %s393 = ssub.s32 20, %s392
      %p394 = scmp.lt.s32.totalorder %s393, 8
      %s395 = scalar_select %p394, %s393, 8
      %s396 = smul.u32 8, %s395
      %s397 = smul.u32 %s396, 3
      %p398 = scmp.lt.s32.totalorder %s24, 1
      %s399 = scalar_select %p398, %s24, 1
      %p400 = scmp.lt.s32.totalorder %s392, 19
      %s401 = scalar_select %p400, %s392, 19
      %s402 = smul.addr %s401, 3
      %s403 = smul.addr %s399, 60
      %s404 = sadd.s32 %s402, %s403
      %s405 = smul.addr %s404, 8
      %s406 = scalar_lea.vmem %s0, %s405
      %s407 = smul.u32 8, %s25
      %s408 = ssub.s32 20, %s407
      %p409 = scmp.lt.s32.totalorder %s408, 8
      %s410 = scalar_select %p409, %s408, 8
      %s411 = smul.u32 8, %s410
      %s412 = smul.u32 %s411, 3
      %s413 = sadd.s32 %s25, 1
      %s414 = smul.u32 %s413, 2
      %s415 = smul.u32 4, %s414
      %p416 = scmp.lt.s32.totalorder %s24, 1
      %s417 = scalar_select %p416, %s24, 1
      %p418 = scmp.lt.s32.totalorder %s415, 19
      %s419 = scalar_select %p418, %s415, 19
      %s420 = smul.addr %s419, 3
      %s421 = smul.addr %s417, 60
      %s422 = sadd.s32 %s420, %s421
      %s423 = smul.addr %s422, 8
      %s424 = scalar_lea.vmem %s1, %s423
      %s425 = sadd.s32 %s25, 1
      %s426 = smul.u32 %s425, 2
      %s427 = smul.u32 4, %s426
      %s428 = smul.u32 8, %s25
      %p429 = scmp.lt.s32.totalorder %s24, 1
      %s430 = scalar_select %p429, %s24, 1
      %p431 = scmp.lt.s32.totalorder %s428, 15
      %s432 = scalar_select %p431, %s428, 15
      %s433 = smul.addr %s432, 2
      %s434 = smul.addr %s430, 32
      %s435 = sadd.s32 %s433, %s434
      %s436 = smul.addr %s435, 8
      %s437 = scalar_lea.vmem %s6, %s436
      %s438 = smul.u32 8, %s25
      %p439 = scmp.lt.s32.totalorder %s24, 1
      %s440 = scalar_select %p439, %s24, 1
      %s441 = scalar_lea.vmem %s7, %s440
      %p442 = scmp.lt.s32.totalorder %s24, 1
      %s443 = scalar_select %p442, %s24, 1
      %s444 = scalar_lea.vmem %s8, %s443
      %p445 = scmp.eq.s32.totalorder %s25, 0
      // Predicated region
      $region45: #{bridge_forward.4} parent=43 // pred_check
        %p446 = pneg %p445
      $region46: #{bridge_forward.4} parent=43 // pred_check_branch
        %448 = sbr.rel (%p446) target = $region48
      $region47: #{bridge_forward.4} parent=43 // pred_region
        %vm449 = vcmask 57344
        %450 = vst.msk [vmem:[%s441] sm:$0x1] %vm449, 0.0
        %451 = vst.msk [vmem:[%s444] sm:$0x1] %vm449, 0.0
      $region48: #{bridge_forward.4} parent=43 // pred_fallthru
        _
      %v452 = vld [vmem:[%s406] sm:$0xff]
      %v453 = vld [vmem:[%s406 + $0x8] sm:$0xff]
      %v454 = vld [vmem:[%s406 + $0x10] sm:$0xf]
      %v455 = vld [vmem:[%s406 + $0x18] sm:$0xff]
      %v456 = vld [vmem:[%s406 + $0x20] sm:$0xff]
      %v457 = vld [vmem:[%s406 + $0x28] sm:$0xf]
      %v458 = vld [vmem:[%s406 + $0x30] sm:$0xff]
      %v459 = vld [vmem:[%s406 + $0x38] sm:$0xff]
      %v460 = vld [vmem:[%s406 + $0x40] sm:$0xf]
      %v461 = vld [vmem:[%s406 + $0x48] sm:$0xff]
      %v462 = vld [vmem:[%s406 + $0x50] sm:$0xff]
      %v463 = vld [vmem:[%s406 + $0x58] sm:$0xf]
      %v464 = vld [vmem:[%s406 + $0x60] sm:$0xff]
      %v465 = vld [vmem:[%s406 + $0x68] sm:$0xff]
      %v466 = vld [vmem:[%s406 + $0x70] sm:$0xf]
      %v467 = vld [vmem:[%s406 + $0x78] sm:$0xff]
      %v468 = vld [vmem:[%s406 + $0x80] sm:$0xff]
      %v469 = vld [vmem:[%s406 + $0x88] sm:$0xf]
      %v470 = vld [vmem:[%s406 + $0x90] sm:$0xff]
      %v471 = vld [vmem:[%s406 + $0x98] sm:$0xff]
      %v472 = vld [vmem:[%s406 + $0xa0] sm:$0xf]
      %v473 = vld [vmem:[%s406 + $0xa8] sm:$0xff]
      %v474 = vld [vmem:[%s406 + $0xb0] sm:$0xff]
      %v475 = vld [vmem:[%s406 + $0xb8] sm:$0xf]
      %v476 = vld [vmem:[%s424] sm:$0xff]
      %v477 = vld [vmem:[%s424 + $0x8] sm:$0xff]
      %v478 = vld [vmem:[%s424 + $0x10] sm:$0xf]
      %v479 = vld [vmem:[%s424 + $0x18] sm:$0xff]
      %v480 = vld [vmem:[%s424 + $0x20] sm:$0xff]
      %v481 = vld [vmem:[%s424 + $0x28] sm:$0xf]
      %v482 = vld [vmem:[%s424 + $0x30] sm:$0xff]
      %v483 = vld [vmem:[%s424 + $0x38] sm:$0xff]
      %v484 = vld [vmem:[%s424 + $0x40] sm:$0xf]
      %v485 = vld [vmem:[%s424 + $0x48] sm:$0xff]
      %v486 = vld [vmem:[%s424 + $0x50] sm:$0xff]
      %v487 = vld [vmem:[%s424 + $0x58] sm:$0xf]
      %v488 = vld [vmem:[%s4] sm:$0x1]
      %v490 = vperm.slane %v488, 0
      %v492 = vmul.f32 %v452, %v490
      %v493 = vmul.f32 %v453, %v490
      %v494 = vmul.f32 %v454, %v490
      %v495 = vmul.f32 %v455, %v490
      %v496 = vmul.f32 %v456, %v490
      %v497 = vmul.f32 %v457, %v490
      %v498 = vmul.f32 %v458, %v490
      %v499 = vmul.f32 %v459, %v490
      %v500 = vmul.f32 %v460, %v490
      %v501 = vmul.f32 %v461, %v490
      %v502 = vmul.f32 %v462, %v490
      %v503 = vmul.f32 %v463, %v490
      %v504 = vmul.f32 %v464, %v490
      %v505 = vmul.f32 %v465, %v490
      %v506 = vmul.f32 %v466, %v490
      %v507 = vmul.f32 %v467, %v490
      %v508 = vmul.f32 %v468, %v490
      %v509 = vmul.f32 %v469, %v490
      %v510 = vmul.f32 %v470, %v490
      %v511 = vmul.f32 %v471, %v490
      %v512 = vmul.f32 %v472, %v490
      %v513 = vmul.f32 %v473, %v490
      %v514 = vmul.f32 %v474, %v490
      %v515 = vmul.f32 %v475, %v490
      %v516 = vmul.f32 %v476, %v490
      %v517 = vmul.f32 %v477, %v490
      %v518 = vmul.f32 %v478, %v490
      %v519 = vmul.f32 %v479, %v490
      %v520 = vmul.f32 %v480, %v490
      %v521 = vmul.f32 %v481, %v490
      %v522 = vmul.f32 %v482, %v490
      %v523 = vmul.f32 %v483, %v490
      %v524 = vmul.f32 %v484, %v490
      %v525 = vmul.f32 %v485, %v490
      %v526 = vmul.f32 %v486, %v490
      %v527 = vmul.f32 %v487, %v490
      %v528 = vld [vmem:[%s5] sm:$0x1]
      %v530 = vperm.slane %v528, 0
      %v532 = vadd.f32 %v492, %v530
      %v533 = vadd.f32 %v493, %v530
      %v534 = vadd.f32 %v494, %v530
      %v535 = vadd.f32 %v495, %v530
      %v536 = vadd.f32 %v496, %v530
      %v537 = vadd.f32 %v497, %v530
      %v538 = vadd.f32 %v498, %v530
      %v539 = vadd.f32 %v499, %v530
      %v540 = vadd.f32 %v500, %v530
      %v541 = vadd.f32 %v501, %v530
      %v542 = vadd.f32 %v502, %v530
      %v543 = vadd.f32 %v503, %v530
      %v544 = vadd.f32 %v504, %v530
      %v545 = vadd.f32 %v505, %v530
      %v546 = vadd.f32 %v506, %v530
      %v547 = vadd.f32 %v507, %v530
      %v548 = vadd.f32 %v508, %v530
      %v549 = vadd.f32 %v509, %v530
      %v550 = vadd.f32 %v510, %v530
      %v551 = vadd.f32 %v511, %v530
      %v552 = vadd.f32 %v512, %v530
      %v553 = vadd.f32 %v513, %v530
      %v554 = vadd.f32 %v514, %v530
      %v555 = vadd.f32 %v515, %v530
      %v556 = vadd.f32 %v516, %v530
      %v557 = vadd.f32 %v517, %v530
      %v558 = vadd.f32 %v518, %v530
      %v559 = vadd.f32 %v519, %v530
      %v560 = vadd.f32 %v520, %v530
      %v561 = vadd.f32 %v521, %v530
      %v562 = vadd.f32 %v522, %v530
      %v563 = vadd.f32 %v523, %v530
      %v564 = vadd.f32 %v524, %v530
      %v565 = vadd.f32 %v525, %v530
      %v566 = vadd.f32 %v526, %v530
      %v567 = vadd.f32 %v527, %v530
      %vm568 = vcmp.ge.f32.partialorder %v532, 0.0
      %vm569 = vcmp.ge.f32.partialorder %v533, 0.0
      %vm570 = vcmp.ge.f32.partialorder %v534, 0.0
      %vm571 = vcmp.ge.f32.partialorder %v535, 0.0
      %vm572 = vcmp.ge.f32.partialorder %v536, 0.0
      %vm573 = vcmp.ge.f32.partialorder %v537, 0.0
      %vm574 = vcmp.ge.f32.partialorder %v538, 0.0
      %vm575 = vcmp.ge.f32.partialorder %v539, 0.0
      %vm576 = vcmp.ge.f32.partialorder %v540, 0.0
      %vm577 = vcmp.ge.f32.partialorder %v541, 0.0
      %vm578 = vcmp.ge.f32.partialorder %v542, 0.0
      %vm579 = vcmp.ge.f32.partialorder %v543, 0.0
      %vm580 = vcmp.ge.f32.partialorder %v544, 0.0
      %vm581 = vcmp.ge.f32.partialorder %v545, 0.0
      %vm582 = vcmp.ge.f32.partialorder %v546, 0.0
      %vm583 = vcmp.ge.f32.partialorder %v547, 0.0
      %vm584 = vcmp.ge.f32.partialorder %v548, 0.0
      %vm585 = vcmp.ge.f32.partialorder %v549, 0.0
      %vm586 = vcmp.ge.f32.partialorder %v550, 0.0
      %vm587 = vcmp.ge.f32.partialorder %v551, 0.0
      %vm588 = vcmp.ge.f32.partialorder %v552, 0.0
      %vm589 = vcmp.ge.f32.partialorder %v553, 0.0
      %vm590 = vcmp.ge.f32.partialorder %v554, 0.0
      %vm591 = vcmp.ge.f32.partialorder %v555, 0.0
      %vm592 = vcmp.ge.f32.partialorder %v556, 0.0
      %vm593 = vcmp.ge.f32.partialorder %v557, 0.0
      %vm594 = vcmp.ge.f32.partialorder %v558, 0.0
      %vm595 = vcmp.ge.f32.partialorder %v559, 0.0
      %vm596 = vcmp.ge.f32.partialorder %v560, 0.0
      %vm597 = vcmp.ge.f32.partialorder %v561, 0.0
      %vm598 = vcmp.ge.f32.partialorder %v562, 0.0
      %vm599 = vcmp.ge.f32.partialorder %v563, 0.0
      %vm600 = vcmp.ge.f32.partialorder %v564, 0.0
      %vm601 = vcmp.ge.f32.partialorder %v565, 0.0
      %vm602 = vcmp.ge.f32.partialorder %v566, 0.0
      %vm603 = vcmp.ge.f32.partialorder %v567, 0.0
      %v604 = vmul.f32 %v532, 0.01
      %v605 = vmul.f32 %v533, 0.01
      %v606 = vmul.f32 %v534, 0.01
      %v607 = vmul.f32 %v535, 0.01
      %v608 = vmul.f32 %v536, 0.01
      %v609 = vmul.f32 %v537, 0.01
      %v610 = vmul.f32 %v538, 0.01
      %v611 = vmul.f32 %v539, 0.01
      %v612 = vmul.f32 %v540, 0.01
      %v613 = vmul.f32 %v541, 0.01
      %v614 = vmul.f32 %v542, 0.01
      %v615 = vmul.f32 %v543, 0.01
      %v616 = vmul.f32 %v544, 0.01
      %v617 = vmul.f32 %v545, 0.01
      %v618 = vmul.f32 %v546, 0.01
      %v619 = vmul.f32 %v547, 0.01
      %v620 = vmul.f32 %v548, 0.01
      %v621 = vmul.f32 %v549, 0.01
      %v622 = vmul.f32 %v550, 0.01
      %v623 = vmul.f32 %v551, 0.01
      %v624 = vmul.f32 %v552, 0.01
      %v625 = vmul.f32 %v553, 0.01
      %v626 = vmul.f32 %v554, 0.01
      %v627 = vmul.f32 %v555, 0.01
      %v628 = vmul.f32 %v556, 0.01
      %v629 = vmul.f32 %v557, 0.01
      %v630 = vmul.f32 %v558, 0.01
      %v631 = vmul.f32 %v559, 0.01
      %v632 = vmul.f32 %v560, 0.01
      %v633 = vmul.f32 %v561, 0.01
      %v634 = vmul.f32 %v562, 0.01
      %v635 = vmul.f32 %v563, 0.01
      %v636 = vmul.f32 %v564, 0.01
      %v637 = vmul.f32 %v565, 0.01
      %v638 = vmul.f32 %v566, 0.01
      %v639 = vmul.f32 %v567, 0.01
      %v640 = vsel %vm568, %v532, %v604
      %v641 = vsel %vm569, %v533, %v605
      %v642 = vsel %vm570, %v534, %v606
      %v643 = vsel %vm571, %v535, %v607
      %v644 = vsel %vm572, %v536, %v608
      %v645 = vsel %vm573, %v537, %v609
      %v646 = vsel %vm574, %v538, %v610
      %v647 = vsel %vm575, %v539, %v611
      %v648 = vsel %vm576, %v540, %v612
      %v649 = vsel %vm577, %v541, %v613
      %v650 = vsel %vm578, %v542, %v614
      %v651 = vsel %vm579, %v543, %v615
      %v652 = vsel %vm580, %v544, %v616
      %v653 = vsel %vm581, %v545, %v617
      %v654 = vsel %vm582, %v546, %v618
      %v655 = vsel %vm583, %v547, %v619
      %v656 = vsel %vm584, %v548, %v620
      %v657 = vsel %vm585, %v549, %v621
      %v658 = vsel %vm586, %v550, %v622
      %v659 = vsel %vm587, %v551, %v623
      %v660 = vsel %vm588, %v552, %v624
      %v661 = vsel %vm589, %v553, %v625
      %v662 = vsel %vm590, %v554, %v626
      %v663 = vsel %vm591, %v555, %v627
      %v664 = vsel %vm592, %v556, %v628
      %v665 = vsel %vm593, %v557, %v629
      %v666 = vsel %vm594, %v558, %v630
      %v667 = vsel %vm595, %v559, %v631
      %v668 = vsel %vm596, %v560, %v632
      %v669 = vsel %vm597, %v561, %v633
      %v670 = vsel %vm598, %v562, %v634
      %v671 = vsel %vm599, %v563, %v635
      %v672 = vsel %vm600, %v564, %v636
      %v673 = vsel %vm601, %v565, %v637
      %v674 = vsel %vm602, %v566, %v638
      %v675 = vsel %vm603, %v567, %v639
      %s676 = smul.u32 %s25, 8
      %v677 = vstv %s676
      %v678 = vadd.s32 %v677, 1
      %v679 = vadd.s32 %v677, 2
      %v680 = vadd.s32 %v677, 3
      %v681 = vadd.s32 %v677, 4
      %v682 = vadd.s32 %v677, 5
      %v683 = vadd.s32 %v677, 6
      %v684 = vadd.s32 %v677, 7
      %v685 = vadd.s32 %v677, 8
      %v686 = vadd.s32 %v677, 9
      %v687 = vadd.s32 %v677, 10
      %v688 = vadd.s32 %v677, 11
      %v689 = vlaneseq
      %v690 = vshrl.u32 %v689, 7
      %v691 = vadd.s32 %v690, 8
      %v692 = vadd.s32 %v690, 16
      %vm693 = vcmp.ge.s32.totalorder %v677, 2
      %vm694 = vcmp.ge.s32.totalorder %v678, 2
      %vm695 = vcmp.ge.s32.totalorder %v679, 2
      %vm696 = vcmp.ge.s32.totalorder %v680, 2
      %vm697 = vcmp.ge.s32.totalorder %v681, 2
      %vm698 = vcmp.ge.s32.totalorder %v682, 2
      %vm699 = vcmp.ge.s32.totalorder %v683, 2
      %vm700 = vcmp.ge.s32.totalorder %v684, 2
      %vm701 = vcmp.ge.s32.totalorder %v685, 2
      %vm702 = vcmp.ge.s32.totalorder %v686, 2
      %vm703 = vcmp.ge.s32.totalorder %v687, 2
      %vm704 = vcmp.ge.s32.totalorder %v688, 2
      %vm705 = vcmp.lt.s32.totalorder %v677, 18
      %vm706 = vcmp.lt.s32.totalorder %v678, 18
      %vm707 = vcmp.lt.s32.totalorder %v679, 18
      %vm708 = vcmp.lt.s32.totalorder %v680, 18
      %vm709 = vcmp.lt.s32.totalorder %v681, 18
      %vm710 = vcmp.lt.s32.totalorder %v682, 18
      %vm711 = vcmp.lt.s32.totalorder %v683, 18
      %vm712 = vcmp.lt.s32.totalorder %v684, 18
      %vm713 = vcmp.lt.s32.totalorder %v685, 18
      %vm714 = vcmp.lt.s32.totalorder %v686, 18
      %vm715 = vcmp.lt.s32.totalorder %v687, 18
      %vm716 = vcmp.lt.s32.totalorder %v688, 18
      %vm717 = vmand %vm693, %vm705
      %vm718 = vmand %vm694, %vm706
      %vm719 = vmand %vm695, %vm707
      %vm720 = vmand %vm696, %vm708
      %vm721 = vmand %vm697, %vm709
      %vm722 = vmand %vm698, %vm710
      %vm723 = vmand %vm699, %vm711
      %vm724 = vmand %vm700, %vm712
      %vm725 = vmand %vm701, %vm713
      %vm726 = vmand %vm702, %vm714
      %vm727 = vmand %vm703, %vm715
      %vm728 = vmand %vm704, %vm716
      %vm729 = vcmp.ge.s32.totalorder %v690, 2
      %vm730 = vcmp.ge.s32.totalorder %v691, 2
      %vm731 = vcmp.ge.s32.totalorder %v692, 2
      %vm732 = vmand %vm717, %vm729
      %vm733 = vmand %vm717, %vm730
      %vm734 = vmand %vm717, %vm731
      %vm735 = vmand %vm718, %vm729
      %vm736 = vmand %vm718, %vm730
      %vm737 = vmand %vm718, %vm731
      %vm738 = vmand %vm719, %vm729
      %vm739 = vmand %vm719, %vm730
      %vm740 = vmand %vm719, %vm731
      %vm741 = vmand %vm720, %vm729
      %vm742 = vmand %vm720, %vm730
      %vm743 = vmand %vm720, %vm731
      %vm744 = vmand %vm721, %vm729
      %vm745 = vmand %vm721, %vm730
      %vm746 = vmand %vm721, %vm731
      %vm747 = vmand %vm722, %vm729
      %vm748 = vmand %vm722, %vm730
      %vm749 = vmand %vm722, %vm731
      %vm750 = vmand %vm723, %vm729
      %vm751 = vmand %vm723, %vm730
      %vm752 = vmand %vm723, %vm731
      %vm753 = vmand %vm724, %vm729
      %vm754 = vmand %vm724, %vm730
      %vm755 = vmand %vm724, %vm731
      %vm756 = vmand %vm725, %vm729
      %vm757 = vmand %vm725, %vm730
      %vm758 = vmand %vm725, %vm731
      %vm759 = vmand %vm726, %vm729
      %vm760 = vmand %vm726, %vm730
      %vm761 = vmand %vm726, %vm731
      %vm762 = vmand %vm727, %vm729
      %vm763 = vmand %vm727, %vm730
      %vm764 = vmand %vm727, %vm731
      %vm765 = vmand %vm728, %vm729
      %vm766 = vmand %vm728, %vm730
      %vm767 = vmand %vm728, %vm731
      %vm768 = vcmp.lt.s32.totalorder %v690, 18
      %vm769 = vcmp.lt.s32.totalorder %v691, 18
      %vm770 = vcmp.lt.s32.totalorder %v692, 18
      %vm771 = vmand %vm732, %vm768
      %vm772 = vmand %vm733, %vm769
      %vm773 = vmand %vm734, %vm770
      %vm774 = vmand %vm735, %vm768
      %vm775 = vmand %vm736, %vm769
      %vm776 = vmand %vm737, %vm770
      %vm777 = vmand %vm738, %vm768
      %vm778 = vmand %vm739, %vm769
      %vm779 = vmand %vm740, %vm770
      %vm780 = vmand %vm741, %vm768
      %vm781 = vmand %vm742, %vm769
      %vm782 = vmand %vm743, %vm770
      %vm783 = vmand %vm744, %vm768
      %vm784 = vmand %vm745, %vm769
      %vm785 = vmand %vm746, %vm770
      %vm786 = vmand %vm747, %vm768
      %vm787 = vmand %vm748, %vm769
      %vm788 = vmand %vm749, %vm770
      %vm789 = vmand %vm750, %vm768
      %vm790 = vmand %vm751, %vm769
      %vm791 = vmand %vm752, %vm770
      %vm792 = vmand %vm753, %vm768
      %vm793 = vmand %vm754, %vm769
      %vm794 = vmand %vm755, %vm770
      %vm795 = vmand %vm756, %vm768
      %vm796 = vmand %vm757, %vm769
      %vm797 = vmand %vm758, %vm770
      %vm798 = vmand %vm759, %vm768
      %vm799 = vmand %vm760, %vm769
      %vm800 = vmand %vm761, %vm770
      %vm801 = vmand %vm762, %vm768
      %vm802 = vmand %vm763, %vm769
      %vm803 = vmand %vm764, %vm770
      %vm804 = vmand %vm765, %vm768
      %vm805 = vmand %vm766, %vm769
      %vm806 = vmand %vm767, %vm770
      %v807 = vsel %vm771, %v640, 0.0
      %v808 = vsel %vm772, %v641, 0.0
      %v809 = vsel %vm773, %v642, 0.0
      %v810 = vsel %vm774, %v643, 0.0
      %v811 = vsel %vm775, %v644, 0.0
      %v812 = vsel %vm776, %v645, 0.0
      %v813 = vsel %vm777, %v646, 0.0
      %v814 = vsel %vm778, %v647, 0.0
      %v815 = vsel %vm779, %v648, 0.0
      %v816 = vsel %vm780, %v649, 0.0
      %v817 = vsel %vm781, %v650, 0.0
      %v818 = vsel %vm782, %v651, 0.0
      %v819 = vsel %vm783, %v652, 0.0
      %v820 = vsel %vm784, %v653, 0.0
      %v821 = vsel %vm785, %v654, 0.0
      %v822 = vsel %vm786, %v655, 0.0
      %v823 = vsel %vm787, %v656, 0.0
      %v824 = vsel %vm788, %v657, 0.0
      %v825 = vsel %vm789, %v658, 0.0
      %v826 = vsel %vm790, %v659, 0.0
      %v827 = vsel %vm791, %v660, 0.0
      %v828 = vsel %vm792, %v661, 0.0
      %v829 = vsel %vm793, %v662, 0.0
      %v830 = vsel %vm794, %v663, 0.0
      %v831 = vsel %vm795, %v664, 0.0
      %v832 = vsel %vm796, %v665, 0.0
      %v833 = vsel %vm797, %v666, 0.0
      %v834 = vsel %vm798, %v667, 0.0
      %v835 = vsel %vm799, %v668, 0.0
      %v836 = vsel %vm800, %v669, 0.0
      %v837 = vsel %vm801, %v670, 0.0
      %v838 = vsel %vm802, %v671, 0.0
      %v839 = vsel %vm803, %v672, 0.0
      %v840 = vsel %vm804, %v673, 0.0
      %v841 = vsel %vm805, %v674, 0.0
      %v842 = vsel %vm806, %v675, 0.0
      %vm867 = vcmask 1045504
      %v868 = vrot.slane %v807, 2
      %v869 = vrot.slane %v808, 2
      %v870 = vsel %vm867, %v868, %v869
      %v871 = vrot.slane %v809, 2
      %v872 = vsel %vm867, %v869, %v871
      %v873 = vrot.slane %v810, 2
      %v874 = vrot.slane %v811, 2
      %v875 = vsel %vm867, %v873, %v874
      %v876 = vrot.slane %v812, 2
      %v877 = vsel %vm867, %v874, %v876
      %v878 = vrot.slane %v813, 2
      %v879 = vrot.slane %v814, 2
      %v880 = vsel %vm867, %v878, %v879
      %v881 = vrot.slane %v815, 2
      %v882 = vsel %vm867, %v879, %v881
      %v883 = vrot.slane %v816, 2
      %v884 = vrot.slane %v817, 2
      %v885 = vsel %vm867, %v883, %v884
      %v886 = vrot.slane %v818, 2
      %v887 = vsel %vm867, %v884, %v886
      %v888 = vrot.slane %v819, 2
      %v889 = vrot.slane %v820, 2
      %v890 = vsel %vm867, %v888, %v889
      %v891 = vrot.slane %v821, 2
      %v892 = vsel %vm867, %v889, %v891
      %v893 = vrot.slane %v822, 2
      %v894 = vrot.slane %v823, 2
      %v895 = vsel %vm867, %v893, %v894
      %v896 = vrot.slane %v824, 2
      %v897 = vsel %vm867, %v894, %v896
      %v898 = vrot.slane %v825, 2
      %v899 = vrot.slane %v826, 2
      %v900 = vsel %vm867, %v898, %v899
      %v901 = vrot.slane %v827, 2
      %v902 = vsel %vm867, %v899, %v901
      %v903 = vrot.slane %v828, 2
      %v904 = vrot.slane %v829, 2
      %v905 = vsel %vm867, %v903, %v904
      %v906 = vrot.slane %v830, 2
      %v907 = vsel %vm867, %v904, %v906
      %vm908 = vcmask 1043456
      %v909 = vrot.slane %v807, 4
      %v910 = vrot.slane %v808, 4
      %v911 = vsel %vm908, %v909, %v910
      %v912 = vrot.slane %v809, 4
      %v913 = vsel %vm908, %v910, %v912
      %v914 = vrot.slane %v810, 4
      %v915 = vrot.slane %v811, 4
      %v916 = vsel %vm908, %v914, %v915
      %v917 = vrot.slane %v812, 4
      %v918 = vsel %vm908, %v915, %v917
      %v919 = vrot.slane %v813, 4
      %v920 = vrot.slane %v814, 4
      %v921 = vsel %vm908, %v919, %v920
      %v922 = vrot.slane %v815, 4
      %v923 = vsel %vm908, %v920, %v922
      %v924 = vrot.slane %v816, 4
      %v925 = vrot.slane %v817, 4
      %v926 = vsel %vm908, %v924, %v925
      %v927 = vrot.slane %v818, 4
      %v928 = vsel %vm908, %v925, %v927
      %v929 = vrot.slane %v819, 4
      %v930 = vrot.slane %v820, 4
      %v931 = vsel %vm908, %v929, %v930
      %v932 = vrot.slane %v821, 4
      %v933 = vsel %vm908, %v930, %v932
      %v934 = vrot.slane %v822, 4
      %v935 = vrot.slane %v823, 4
      %v936 = vsel %vm908, %v934, %v935
      %v937 = vrot.slane %v824, 4
      %v938 = vsel %vm908, %v935, %v937
      %v939 = vrot.slane %v825, 4
      %v940 = vrot.slane %v826, 4
      %v941 = vsel %vm908, %v939, %v940
      %v942 = vrot.slane %v827, 4
      %v943 = vsel %vm908, %v940, %v942
      %v944 = vrot.slane %v828, 4
      %v945 = vrot.slane %v829, 4
      %v946 = vsel %vm908, %v944, %v945
      %v947 = vrot.slane %v830, 4
      %v948 = vsel %vm908, %v945, %v947
      %v955 = vrot.slane %v831, 2
      %v956 = vrot.slane %v832, 2
      %v957 = vsel %vm867, %v955, %v956
      %v958 = vrot.slane %v833, 2
      %v959 = vsel %vm867, %v956, %v958
      %v960 = vrot.slane %v834, 2
      %v961 = vrot.slane %v835, 2
      %v962 = vsel %vm867, %v960, %v961
      %v963 = vrot.slane %v836, 2
      %v964 = vsel %vm867, %v961, %v963
      %v965 = vrot.slane %v831, 4
      %v966 = vrot.slane %v832, 4
      %v967 = vsel %vm908, %v965, %v966
      %v968 = vrot.slane %v833, 4
      %v969 = vsel %vm908, %v966, %v968
      %v970 = vrot.slane %v834, 4
      %v971 = vrot.slane %v835, 4
      %v972 = vsel %vm908, %v970, %v971
      %v973 = vrot.slane %v836, 4
      %v974 = vsel %vm908, %v971, %v973
      %v981 = vrot.slane %v837, 2
      %v982 = vrot.slane %v838, 2
      %v983 = vsel %vm867, %v981, %v982
      %v984 = vrot.slane %v839, 2
      %v985 = vsel %vm867, %v982, %v984
      %v986 = vrot.slane %v840, 2
      %v987 = vrot.slane %v841, 2
      %v988 = vsel %vm867, %v986, %v987
      %v989 = vrot.slane %v842, 2
      %v990 = vsel %vm867, %v987, %v989
      %v991 = vrot.slane %v837, 4
      %v992 = vrot.slane %v838, 4
      %v993 = vsel %vm908, %v991, %v992
      %v994 = vrot.slane %v839, 4
      %v995 = vsel %vm908, %v992, %v994
      %v996 = vrot.slane %v840, 4
      %v997 = vrot.slane %v841, 4
      %v998 = vsel %vm908, %v996, %v997
      %v999 = vrot.slane %v842, 4
      %v1000 = vsel %vm908, %v997, %v999
      %1001 = vrot.lane.b32.xlu0 %v870, 8
      %v1002 = vpop.permute.xlu0 %1001
      %1003 = vrot.lane.b32.xlu0 %v872, 8
      %v1004 = vpop.permute.xlu0 %1003
      %1005 = vrot.lane.b32.xlu0 %v875, 8
      %v1006 = vpop.permute.xlu0 %1005
      %1007 = vrot.lane.b32.xlu0 %v877, 8
      %v1008 = vpop.permute.xlu0 %1007
      %1009 = vrot.lane.b32.xlu0 %v880, 8
      %v1010 = vpop.permute.xlu0 %1009
      %1011 = vrot.lane.b32.xlu0 %v882, 8
      %v1012 = vpop.permute.xlu0 %1011
      %1013 = vrot.lane.b32.xlu0 %v885, 8
      %v1014 = vpop.permute.xlu0 %1013
      %1015 = vrot.lane.b32.xlu0 %v887, 8
      %v1016 = vpop.permute.xlu0 %1015
      %1017 = vrot.lane.b32.xlu0 %v890, 8
      %v1018 = vpop.permute.xlu0 %1017
      %1019 = vrot.lane.b32.xlu0 %v892, 8
      %v1020 = vpop.permute.xlu0 %1019
      %1021 = vrot.lane.b32.xlu0 %v895, 8
      %v1022 = vpop.permute.xlu0 %1021
      %1023 = vrot.lane.b32.xlu0 %v897, 8
      %v1024 = vpop.permute.xlu0 %1023
      %1025 = vrot.lane.b32.xlu0 %v900, 8
      %v1026 = vpop.permute.xlu0 %1025
      %1027 = vrot.lane.b32.xlu0 %v902, 8
      %v1028 = vpop.permute.xlu0 %1027
      %1029 = vrot.lane.b32.xlu0 %v905, 8
      %v1030 = vpop.permute.xlu0 %1029
      %1031 = vrot.lane.b32.xlu0 %v907, 8
      %v1032 = vpop.permute.xlu0 %1031
      %1049 = vrot.lane.b32.xlu0 %v911, 16
      %v1050 = vpop.permute.xlu0 %1049
      %1051 = vrot.lane.b32.xlu0 %v913, 16
      %v1052 = vpop.permute.xlu0 %1051
      %1053 = vrot.lane.b32.xlu0 %v916, 16
      %v1054 = vpop.permute.xlu0 %1053
      %1055 = vrot.lane.b32.xlu0 %v918, 16
      %v1056 = vpop.permute.xlu0 %1055
      %1057 = vrot.lane.b32.xlu0 %v921, 16
      %v1058 = vpop.permute.xlu0 %1057
      %1059 = vrot.lane.b32.xlu0 %v923, 16
      %v1060 = vpop.permute.xlu0 %1059
      %1061 = vrot.lane.b32.xlu0 %v926, 16
      %v1062 = vpop.permute.xlu0 %1061
      %1063 = vrot.lane.b32.xlu0 %v928, 16
      %v1064 = vpop.permute.xlu0 %1063
      %1065 = vrot.lane.b32.xlu0 %v931, 16
      %v1066 = vpop.permute.xlu0 %1065
      %1067 = vrot.lane.b32.xlu0 %v933, 16
      %v1068 = vpop.permute.xlu0 %1067
      %1069 = vrot.lane.b32.xlu0 %v936, 16
      %v1070 = vpop.permute.xlu0 %1069
      %1071 = vrot.lane.b32.xlu0 %v938, 16
      %v1072 = vpop.permute.xlu0 %1071
      %1073 = vrot.lane.b32.xlu0 %v941, 16
      %v1074 = vpop.permute.xlu0 %1073
      %1075 = vrot.lane.b32.xlu0 %v943, 16
      %v1076 = vpop.permute.xlu0 %1075
      %1077 = vrot.lane.b32.xlu0 %v946, 16
      %v1078 = vpop.permute.xlu0 %1077
      %1079 = vrot.lane.b32.xlu0 %v948, 16
      %v1080 = vpop.permute.xlu0 %1079
      %1097 = vrot.lane.b32.xlu0 %v813, 24
      %v1098 = vpop.permute.xlu0 %1097
      %1099 = vrot.lane.b32.xlu0 %v814, 24
      %v1100 = vpop.permute.xlu0 %1099
      %1101 = vrot.lane.b32.xlu0 %v816, 24
      %v1102 = vpop.permute.xlu0 %1101
      %1103 = vrot.lane.b32.xlu0 %v817, 24
      %v1104 = vpop.permute.xlu0 %1103
      %1105 = vrot.lane.b32.xlu0 %v819, 24
      %v1106 = vpop.permute.xlu0 %1105
      %1107 = vrot.lane.b32.xlu0 %v820, 24
      %v1108 = vpop.permute.xlu0 %1107
      %1109 = vrot.lane.b32.xlu0 %v822, 24
      %v1110 = vpop.permute.xlu0 %1109
      %1111 = vrot.lane.b32.xlu0 %v823, 24
      %v1112 = vpop.permute.xlu0 %1111
      %1113 = vrot.lane.b32.xlu0 %v825, 24
      %v1114 = vpop.permute.xlu0 %1113
      %1115 = vrot.lane.b32.xlu0 %v826, 24
      %v1116 = vpop.permute.xlu0 %1115
      %1117 = vrot.lane.b32.xlu0 %v828, 24
      %v1118 = vpop.permute.xlu0 %1117
      %1119 = vrot.lane.b32.xlu0 %v829, 24
      %v1120 = vpop.permute.xlu0 %1119
      %1121 = vrot.lane.b32.xlu0 %v831, 24
      %v1122 = vpop.permute.xlu0 %1121
      %1123 = vrot.lane.b32.xlu0 %v832, 24
      %v1124 = vpop.permute.xlu0 %1123
      %1125 = vrot.lane.b32.xlu0 %v834, 24
      %v1126 = vpop.permute.xlu0 %1125
      %1127 = vrot.lane.b32.xlu0 %v835, 24
      %v1128 = vpop.permute.xlu0 %1127
      %1145 = vrot.lane.b32.xlu0 %v880, 32
      %v1146 = vpop.permute.xlu0 %1145
      %1147 = vrot.lane.b32.xlu0 %v882, 32
      %v1148 = vpop.permute.xlu0 %1147
      %1149 = vrot.lane.b32.xlu0 %v885, 32
      %v1150 = vpop.permute.xlu0 %1149
      %1151 = vrot.lane.b32.xlu0 %v887, 32
      %v1152 = vpop.permute.xlu0 %1151
      %1153 = vrot.lane.b32.xlu0 %v890, 32
      %v1154 = vpop.permute.xlu0 %1153
      %1155 = vrot.lane.b32.xlu0 %v892, 32
      %v1156 = vpop.permute.xlu0 %1155
      %1157 = vrot.lane.b32.xlu0 %v895, 32
      %v1158 = vpop.permute.xlu0 %1157
      %1159 = vrot.lane.b32.xlu0 %v897, 32
      %v1160 = vpop.permute.xlu0 %1159
      %1161 = vrot.lane.b32.xlu0 %v900, 32
      %v1162 = vpop.permute.xlu0 %1161
      %1163 = vrot.lane.b32.xlu0 %v902, 32
      %v1164 = vpop.permute.xlu0 %1163
      %1165 = vrot.lane.b32.xlu0 %v905, 32
      %v1166 = vpop.permute.xlu0 %1165
      %1167 = vrot.lane.b32.xlu0 %v907, 32
      %v1168 = vpop.permute.xlu0 %1167
      %1169 = vrot.lane.b32.xlu0 %v957, 32
      %v1170 = vpop.permute.xlu0 %1169
      %1171 = vrot.lane.b32.xlu0 %v959, 32
      %v1172 = vpop.permute.xlu0 %1171
      %1173 = vrot.lane.b32.xlu0 %v962, 32
      %v1174 = vpop.permute.xlu0 %1173
      %1175 = vrot.lane.b32.xlu0 %v964, 32
      %v1176 = vpop.permute.xlu0 %1175
      %1193 = vrot.lane.b32.xlu0 %v921, 40
      %v1194 = vpop.permute.xlu0 %1193
      %1195 = vrot.lane.b32.xlu0 %v923, 40
      %v1196 = vpop.permute.xlu0 %1195
      %1197 = vrot.lane.b32.xlu0 %v926, 40
      %v1198 = vpop.permute.xlu0 %1197
      %1199 = vrot.lane.b32.xlu0 %v928, 40
      %v1200 = vpop.permute.xlu0 %1199
      %1201 = vrot.lane.b32.xlu0 %v931, 40
      %v1202 = vpop.permute.xlu0 %1201
      %1203 = vrot.lane.b32.xlu0 %v933, 40
      %v1204 = vpop.permute.xlu0 %1203
      %1205 = vrot.lane.b32.xlu0 %v936, 40
      %v1206 = vpop.permute.xlu0 %1205
      %1207 = vrot.lane.b32.xlu0 %v938, 40
      %v1208 = vpop.permute.xlu0 %1207
      %1209 = vrot.lane.b32.xlu0 %v941, 40
      %v1210 = vpop.permute.xlu0 %1209
      %1211 = vrot.lane.b32.xlu0 %v943, 40
      %v1212 = vpop.permute.xlu0 %1211
      %1213 = vrot.lane.b32.xlu0 %v946, 40
      %v1214 = vpop.permute.xlu0 %1213
      %1215 = vrot.lane.b32.xlu0 %v948, 40
      %v1216 = vpop.permute.xlu0 %1215
      %1217 = vrot.lane.b32.xlu0 %v967, 40
      %v1218 = vpop.permute.xlu0 %1217
      %1219 = vrot.lane.b32.xlu0 %v969, 40
      %v1220 = vpop.permute.xlu0 %1219
      %1221 = vrot.lane.b32.xlu0 %v972, 40
      %v1222 = vpop.permute.xlu0 %1221
      %1223 = vrot.lane.b32.xlu0 %v974, 40
      %v1224 = vpop.permute.xlu0 %1223
      %1241 = vrot.lane.b32.xlu0 %v819, 48
      %v1242 = vpop.permute.xlu0 %1241
      %1243 = vrot.lane.b32.xlu0 %v820, 48
      %v1244 = vpop.permute.xlu0 %1243
      %1245 = vrot.lane.b32.xlu0 %v822, 48
      %v1246 = vpop.permute.xlu0 %1245
      %1247 = vrot.lane.b32.xlu0 %v823, 48
      %v1248 = vpop.permute.xlu0 %1247
      %1249 = vrot.lane.b32.xlu0 %v825, 48
      %v1250 = vpop.permute.xlu0 %1249
      %1251 = vrot.lane.b32.xlu0 %v826, 48
      %v1252 = vpop.permute.xlu0 %1251
      %1253 = vrot.lane.b32.xlu0 %v828, 48
      %v1254 = vpop.permute.xlu0 %1253
      %1255 = vrot.lane.b32.xlu0 %v829, 48
      %v1256 = vpop.permute.xlu0 %1255
      %1257 = vrot.lane.b32.xlu0 %v831, 48
      %v1258 = vpop.permute.xlu0 %1257
      %1259 = vrot.lane.b32.xlu0 %v832, 48
      %v1260 = vpop.permute.xlu0 %1259
      %1261 = vrot.lane.b32.xlu0 %v834, 48
      %v1262 = vpop.permute.xlu0 %1261
      %1263 = vrot.lane.b32.xlu0 %v835, 48
      %v1264 = vpop.permute.xlu0 %1263
      %1265 = vrot.lane.b32.xlu0 %v837, 48
      %v1266 = vpop.permute.xlu0 %1265
      %1267 = vrot.lane.b32.xlu0 %v838, 48
      %v1268 = vpop.permute.xlu0 %1267
      %1269 = vrot.lane.b32.xlu0 %v840, 48
      %v1270 = vpop.permute.xlu0 %1269
      %1271 = vrot.lane.b32.xlu0 %v841, 48
      %v1272 = vpop.permute.xlu0 %1271
      %1289 = vrot.lane.b32.xlu0 %v890, 56
      %v1290 = vpop.permute.xlu0 %1289
      %1291 = vrot.lane.b32.xlu0 %v892, 56
      %v1292 = vpop.permute.xlu0 %1291
      %1293 = vrot.lane.b32.xlu0 %v895, 56
      %v1294 = vpop.permute.xlu0 %1293
      %1295 = vrot.lane.b32.xlu0 %v897, 56
      %v1296 = vpop.permute.xlu0 %1295
      %1297 = vrot.lane.b32.xlu0 %v900, 56
      %v1298 = vpop.permute.xlu0 %1297
      %1299 = vrot.lane.b32.xlu0 %v902, 56
      %v1300 = vpop.permute.xlu0 %1299
      %1301 = vrot.lane.b32.xlu0 %v905, 56
      %v1302 = vpop.permute.xlu0 %1301
      %1303 = vrot.lane.b32.xlu0 %v907, 56
      %v1304 = vpop.permute.xlu0 %1303
      %1305 = vrot.lane.b32.xlu0 %v957, 56
      %v1306 = vpop.permute.xlu0 %1305
      %1307 = vrot.lane.b32.xlu0 %v959, 56
      %v1308 = vpop.permute.xlu0 %1307
      %1309 = vrot.lane.b32.xlu0 %v962, 56
      %v1310 = vpop.permute.xlu0 %1309
      %1311 = vrot.lane.b32.xlu0 %v964, 56
      %v1312 = vpop.permute.xlu0 %1311
      %1313 = vrot.lane.b32.xlu0 %v983, 56
      %v1314 = vpop.permute.xlu0 %1313
      %1315 = vrot.lane.b32.xlu0 %v985, 56
      %v1316 = vpop.permute.xlu0 %1315
      %1317 = vrot.lane.b32.xlu0 %v988, 56
      %v1318 = vpop.permute.xlu0 %1317
      %1319 = vrot.lane.b32.xlu0 %v990, 56
      %v1320 = vpop.permute.xlu0 %1319
      %1337 = vrot.lane.b32.xlu0 %v931, 64
      %v1338 = vpop.permute.xlu0 %1337
      %1339 = vrot.lane.b32.xlu0 %v933, 64
      %v1340 = vpop.permute.xlu0 %1339
      %1341 = vrot.lane.b32.xlu0 %v936, 64
      %v1342 = vpop.permute.xlu0 %1341
      %1343 = vrot.lane.b32.xlu0 %v938, 64
      %v1344 = vpop.permute.xlu0 %1343
      %1345 = vrot.lane.b32.xlu0 %v941, 64
      %v1346 = vpop.permute.xlu0 %1345
      %1347 = vrot.lane.b32.xlu0 %v943, 64
      %v1348 = vpop.permute.xlu0 %1347
      %1349 = vrot.lane.b32.xlu0 %v946, 64
      %v1350 = vpop.permute.xlu0 %1349
      %1351 = vrot.lane.b32.xlu0 %v948, 64
      %v1352 = vpop.permute.xlu0 %1351
      %1353 = vrot.lane.b32.xlu0 %v967, 64
      %v1354 = vpop.permute.xlu0 %1353
      %1355 = vrot.lane.b32.xlu0 %v969, 64
      %v1356 = vpop.permute.xlu0 %1355
      %1357 = vrot.lane.b32.xlu0 %v972, 64
      %v1358 = vpop.permute.xlu0 %1357
      %1359 = vrot.lane.b32.xlu0 %v974, 64
      %v1360 = vpop.permute.xlu0 %1359
      %1361 = vrot.lane.b32.xlu0 %v993, 64
      %v1362 = vpop.permute.xlu0 %1361
      %1363 = vrot.lane.b32.xlu0 %v995, 64
      %v1364 = vpop.permute.xlu0 %1363
      %1365 = vrot.lane.b32.xlu0 %v998, 64
      %v1366 = vpop.permute.xlu0 %1365
      %1367 = vrot.lane.b32.xlu0 %v1000, 64
      %v1368 = vpop.permute.xlu0 %1367
      %vm1385 = vcmask 64512
      %v1386 = vsel %vm1385, %v807, %v1002
      %v1387 = vsel %vm1385, %v808, %v1004
      %v1388 = vsel %vm1385, %v810, %v1006
      %v1389 = vsel %vm1385, %v811, %v1008
      %v1390 = vsel %vm1385, %v813, %v1010
      %v1391 = vsel %vm1385, %v814, %v1012
      %v1392 = vsel %vm1385, %v816, %v1014
      %v1393 = vsel %vm1385, %v817, %v1016
      %v1394 = vsel %vm1385, %v819, %v1018
      %v1395 = vsel %vm1385, %v820, %v1020
      %v1396 = vsel %vm1385, %v822, %v1022
      %v1397 = vsel %vm1385, %v823, %v1024
      %v1398 = vsel %vm1385, %v825, %v1026
      %v1399 = vsel %vm1385, %v826, %v1028
      %v1400 = vsel %vm1385, %v828, %v1030
      %v1401 = vsel %vm1385, %v829, %v1032
      %vm1402 = vcmask 130048
      %v1403 = vsel %vm1402, %v1386, %v1050
      %v1404 = vsel %vm1402, %v1387, %v1052
      %v1405 = vsel %vm1402, %v1388, %v1054
      %v1406 = vsel %vm1402, %v1389, %v1056
      %v1407 = vsel %vm1402, %v1390, %v1058
      %v1408 = vsel %vm1402, %v1391, %v1060
      %v1409 = vsel %vm1402, %v1392, %v1062
      %v1410 = vsel %vm1402, %v1393, %v1064
      %v1411 = vsel %vm1402, %v1394, %v1066
      %v1412 = vsel %vm1402, %v1395, %v1068
      %v1413 = vsel %vm1402, %v1396, %v1070
      %v1414 = vsel %vm1402, %v1397, %v1072
      %v1415 = vsel %vm1402, %v1398, %v1074
      %v1416 = vsel %vm1402, %v1399, %v1076
      %v1417 = vsel %vm1402, %v1400, %v1078
      %v1418 = vsel %vm1402, %v1401, %v1080
      %vm1419 = vcmask 195584
      %v1420 = vsel %vm1419, %v1403, %v1098
      %v1421 = vsel %vm1419, %v1404, %v1100
      %v1422 = vsel %vm1419, %v1405, %v1102
      %v1423 = vsel %vm1419, %v1406, %v1104
      %v1424 = vsel %vm1419, %v1407, %v1106
      %v1425 = vsel %vm1419, %v1408, %v1108
      %v1426 = vsel %vm1419, %v1409, %v1110
      %v1427 = vsel %vm1419, %v1410, %v1112
      %v1428 = vsel %vm1419, %v1411, %v1114
      %v1429 = vsel %vm1419, %v1412, %v1116
      %v1430 = vsel %vm1419, %v1413, %v1118
      %v1431 = vsel %vm1419, %v1414, %v1120
      %v1432 = vsel %vm1419, %v1415, %v1122
      %v1433 = vsel %vm1419, %v1416, %v1124
      %v1434 = vsel %vm1419, %v1417, %v1126
      %v1435 = vsel %vm1419, %v1418, %v1128
      %vm1436 = vcmask 261120
      %v1437 = vsel %vm1436, %v1420, %v1146
      %v1438 = vsel %vm1436, %v1421, %v1148
      %v1439 = vsel %vm1436, %v1422, %v1150
      %v1440 = vsel %vm1436, %v1423, %v1152
      %v1441 = vsel %vm1436, %v1424, %v1154
      %v1442 = vsel %vm1436, %v1425, %v1156
      %v1443 = vsel %vm1436, %v1426, %v1158
      %v1444 = vsel %vm1436, %v1427, %v1160
      %v1445 = vsel %vm1436, %v1428, %v1162
      %v1446 = vsel %vm1436, %v1429, %v1164
      %v1447 = vsel %vm1436, %v1430, %v1166
      %v1448 = vsel %vm1436, %v1431, %v1168
      %v1449 = vsel %vm1436, %v1432, %v1170
      %v1450 = vsel %vm1436, %v1433, %v1172
      %v1451 = vsel %vm1436, %v1434, %v1174
      %v1452 = vsel %vm1436, %v1435, %v1176
      %vm1453 = vcmask 326656
      %v1454 = vsel %vm1453, %v1437, %v1194
      %v1455 = vsel %vm1453, %v1438, %v1196
      %v1456 = vsel %vm1453, %v1439, %v1198
      %v1457 = vsel %vm1453, %v1440, %v1200
      %v1458 = vsel %vm1453, %v1441, %v1202
      %v1459 = vsel %vm1453, %v1442, %v1204
      %v1460 = vsel %vm1453, %v1443, %v1206
      %v1461 = vsel %vm1453, %v1444, %v1208
      %v1462 = vsel %vm1453, %v1445, %v1210
      %v1463 = vsel %vm1453, %v1446, %v1212
      %v1464 = vsel %vm1453, %v1447, %v1214
      %v1465 = vsel %vm1453, %v1448, %v1216
      %v1466 = vsel %vm1453, %v1449, %v1218
      %v1467 = vsel %vm1453, %v1450, %v1220
      %v1468 = vsel %vm1453, %v1451, %v1222
      %v1469 = vsel %vm1453, %v1452, %v1224
      %vm1470 = vcmask 392192
      %v1471 = vsel %vm1470, %v1454, %v1242
      %v1472 = vsel %vm1470, %v1455, %v1244
      %v1473 = vsel %vm1470, %v1456, %v1246
      %v1474 = vsel %vm1470, %v1457, %v1248
      %v1475 = vsel %vm1470, %v1458, %v1250
      %v1476 = vsel %vm1470, %v1459, %v1252
      %v1477 = vsel %vm1470, %v1460, %v1254
      %v1478 = vsel %vm1470, %v1461, %v1256
      %v1479 = vsel %vm1470, %v1462, %v1258
      %v1480 = vsel %vm1470, %v1463, %v1260
      %v1481 = vsel %vm1470, %v1464, %v1262
      %v1482 = vsel %vm1470, %v1465, %v1264
      %v1483 = vsel %vm1470, %v1466, %v1266
      %v1484 = vsel %vm1470, %v1467, %v1268
      %v1485 = vsel %vm1470, %v1468, %v1270
      %v1486 = vsel %vm1470, %v1469, %v1272
      %vm1487 = vcmask 457728
      %v1488 = vsel %vm1487, %v1471, %v1290
      %v1489 = vsel %vm1487, %v1472, %v1292
      %v1490 = vsel %vm1487, %v1473, %v1294
      %v1491 = vsel %vm1487, %v1474, %v1296
      %v1492 = vsel %vm1487, %v1475, %v1298
      %v1493 = vsel %vm1487, %v1476, %v1300
      %v1494 = vsel %vm1487, %v1477, %v1302
      %v1495 = vsel %vm1487, %v1478, %v1304
      %v1496 = vsel %vm1487, %v1479, %v1306
      %v1497 = vsel %vm1487, %v1480, %v1308
      %v1498 = vsel %vm1487, %v1481, %v1310
      %v1499 = vsel %vm1487, %v1482, %v1312
      %v1500 = vsel %vm1487, %v1483, %v1314
      %v1501 = vsel %vm1487, %v1484, %v1316
      %v1502 = vsel %vm1487, %v1485, %v1318
      %v1503 = vsel %vm1487, %v1486, %v1320
      %vm1504 = vcmask 523264
      %v1505 = vsel %vm1504, %v1488, %v1338
      %v1506 = vsel %vm1504, %v1489, %v1340
      %v1507 = vsel %vm1504, %v1490, %v1342
      %v1508 = vsel %vm1504, %v1491, %v1344
      %v1509 = vsel %vm1504, %v1492, %v1346
      %v1510 = vsel %vm1504, %v1493, %v1348
      %v1511 = vsel %vm1504, %v1494, %v1350
      %v1512 = vsel %vm1504, %v1495, %v1352
      %v1513 = vsel %vm1504, %v1496, %v1354
      %v1514 = vsel %vm1504, %v1497, %v1356
      %v1515 = vsel %vm1504, %v1498, %v1358
      %v1516 = vsel %vm1504, %v1499, %v1360
      %v1517 = vsel %vm1504, %v1500, %v1362
      %v1518 = vsel %vm1504, %v1501, %v1364
      %v1519 = vsel %vm1504, %v1502, %v1366
      %v1520 = vsel %vm1504, %v1503, %v1368
      %v1521 = vld [vmem:[%s2] sm:$0xff]
      %v1522 = vld [vmem:[%s2 + $0x8] sm:$0xff]
      %v1523 = vld [vmem:[%s2 + $0x10] sm:$0xff]
      %v1524 = vld [vmem:[%s2 + $0x18] sm:$0xff]
      %v1525 = vld [vmem:[%s2 + $0x20] sm:$0xff]
      %v1526 = vld [vmem:[%s2 + $0x28] sm:$0xff]
      %v1527 = vld [vmem:[%s2 + $0x30] sm:$0xff]
      %v1528 = vld [vmem:[%s2 + $0x38] sm:$0xff]
      %v1529 = vld [vmem:[%s2 + $0x40] sm:$0xff]
      %v1530 = vld [vmem:[%s3] sm:$0x1]
      %v1532 = vperm.slane %v1530, 0
      %vm1534 = vcmask 588800
      %v1536 = vsel %vm1534, %v1505, 0
      %v1539 = vsel %vm1534, %v1506, 0
      %v1542 = vsel %vm1534, %v1507, 0
      %v1545 = vsel %vm1534, %v1508, 0
      %v1548 = vsel %vm1534, %v1509, 0
      %v1551 = vsel %vm1534, %v1510, 0
      %v1554 = vsel %vm1534, %v1511, 0
      %v1557 = vsel %vm1534, %v1512, 0
      %v1560 = vsel %vm1534, %v1513, 0
      %v1563 = vsel %vm1534, %v1514, 0
      %v1566 = vsel %vm1534, %v1515, 0
      %v1569 = vsel %vm1534, %v1516, 0
      %v1572 = vsel %vm1534, %v1517, 0
      %v1575 = vsel %vm1534, %v1518, 0
      %v1578 = vsel %vm1534, %v1519, 0
      %v1581 = vsel %vm1534, %v1520, 0
      %1583 = vmatpush.msra.mxu0 0.0
      %1584 = vmatpush.msra.mxu0 0.0
      %1585 = vmatpush.msra.mxu0 0.0
      %1586 = vmatpush.msra.mxu0 0.0
      %1587 = vmatpush.msra.mxu0 0.0
      %1588 = vmatpush.msra.mxu0 0.0
      %1589 = vmatpush.msra.mxu0 0.0
      %1590 = vmatpush.msra.mxu0 %v1529
      %1591 = vmatpush.msra.mxu0 %v1528
      %1592 = vmatpush.msra.mxu0 %v1527
      %1593 = vmatpush.msra.mxu0 %v1526
      %1594 = vmatpush.msra.mxu0 %v1525
      %1595 = vmatpush.msra.mxu0 %v1524
      %1596 = vmatpush.msra.mxu0 %v1523
      %1597 = vmatpush.msra.mxu0 %v1522
      %1598 = vmatpush.msra.mxu0 %v1521
      %1599 = vmatmul.f32.gmra.mxu0 %v1536
      %v1600 = vpop.f32.mrf.mxu0
      %v1601 = vadd.f32 %v1532, %v1600
      %1602 = vmatmul.f32.gmra.mxu0 %v1539
      %v1603 = vpop.f32.mrf.mxu0
      %v1604 = vadd.f32 %v1532, %v1603
      %1605 = vmatmul.f32.gmra.mxu0 %v1542
      %v1606 = vpop.f32.mrf.mxu0
      %v1607 = vadd.f32 %v1532, %v1606
      %1608 = vmatmul.f32.gmra.mxu0 %v1545
      %v1609 = vpop.f32.mrf.mxu0
      %v1610 = vadd.f32 %v1532, %v1609
      %1611 = vmatmul.f32.gmra.mxu0 %v1548
      %v1612 = vpop.f32.mrf.mxu0
      %v1613 = vadd.f32 %v1532, %v1612
      %1614 = vmatmul.f32.gmra.mxu0 %v1551
      %v1615 = vpop.f32.mrf.mxu0
      %v1616 = vadd.f32 %v1532, %v1615
      %1617 = vmatmul.f32.gmra.mxu0 %v1554
      %v1618 = vpop.f32.mrf.mxu0
      %v1619 = vadd.f32 %v1532, %v1618
      %1620 = vmatmul.f32.gmra.mxu0 %v1557
      %v1621 = vpop.f32.mrf.mxu0
      %v1622 = vadd.f32 %v1532, %v1621
      %1623 = vmatmul.f32.gmra.mxu0 %v1560
      %v1624 = vpop.f32.mrf.mxu0
      %v1625 = vadd.f32 %v1532, %v1624
      %1626 = vmatmul.f32.gmra.mxu0 %v1563
      %v1627 = vpop.f32.mrf.mxu0
      %v1628 = vadd.f32 %v1532, %v1627
      %1629 = vmatmul.f32.gmra.mxu0 %v1566
      %v1630 = vpop.f32.mrf.mxu0
      %v1631 = vadd.f32 %v1532, %v1630
      %1632 = vmatmul.f32.gmra.mxu0 %v1569
      %v1633 = vpop.f32.mrf.mxu0
      %v1634 = vadd.f32 %v1532, %v1633
      %1635 = vmatmul.f32.gmra.mxu0 %v1572
      %v1636 = vpop.f32.mrf.mxu0
      %v1637 = vadd.f32 %v1532, %v1636
      %1638 = vmatmul.f32.gmra.mxu0 %v1575
      %v1639 = vpop.f32.mrf.mxu0
      %v1640 = vadd.f32 %v1532, %v1639
      %1641 = vmatmul.f32.gmra.mxu0 %v1578
      %v1642 = vpop.f32.mrf.mxu0
      %v1643 = vadd.f32 %v1532, %v1642
      %1644 = vmatmul.f32.gmra.mxu0 %v1581
      %v1645 = vpop.f32.mrf.mxu0
      %v1646 = vadd.f32 %v1532, %v1645
      %1647 = vdwg.mxu0
      %vm1648 = vcmp.ge.f32.partialorder %v1601, 0.0
      %vm1649 = vcmp.ge.f32.partialorder %v1604, 0.0
      %vm1650 = vcmp.ge.f32.partialorder %v1607, 0.0
      %vm1651 = vcmp.ge.f32.partialorder %v1610, 0.0
      %vm1652 = vcmp.ge.f32.partialorder %v1613, 0.0
      %vm1653 = vcmp.ge.f32.partialorder %v1616, 0.0
      %vm1654 = vcmp.ge.f32.partialorder %v1619, 0.0
      %vm1655 = vcmp.ge.f32.partialorder %v1622, 0.0
      %vm1656 = vcmp.ge.f32.partialorder %v1625, 0.0
      %vm1657 = vcmp.ge.f32.partialorder %v1628, 0.0
      %vm1658 = vcmp.ge.f32.partialorder %v1631, 0.0
      %vm1659 = vcmp.ge.f32.partialorder %v1634, 0.0
      %vm1660 = vcmp.ge.f32.partialorder %v1637, 0.0
      %vm1661 = vcmp.ge.f32.partialorder %v1640, 0.0
      %vm1662 = vcmp.ge.f32.partialorder %v1643, 0.0
      %vm1663 = vcmp.ge.f32.partialorder %v1646, 0.0
      %v1664 = vmul.f32 %v1601, 0.01
      %v1665 = vmul.f32 %v1604, 0.01
      %v1666 = vmul.f32 %v1607, 0.01
      %v1667 = vmul.f32 %v1610, 0.01
      %v1668 = vmul.f32 %v1613, 0.01
      %v1669 = vmul.f32 %v1616, 0.01
      %v1670 = vmul.f32 %v1619, 0.01
      %v1671 = vmul.f32 %v1622, 0.01
      %v1672 = vmul.f32 %v1625, 0.01
      %v1673 = vmul.f32 %v1628, 0.01
      %v1674 = vmul.f32 %v1631, 0.01
      %v1675 = vmul.f32 %v1634, 0.01
      %v1676 = vmul.f32 %v1637, 0.01
      %v1677 = vmul.f32 %v1640, 0.01
      %v1678 = vmul.f32 %v1643, 0.01
      %v1679 = vmul.f32 %v1646, 0.01
      %v1680 = vsel %vm1648, %v1601, %v1664
      %v1681 = vsel %vm1649, %v1604, %v1665
      %v1682 = vsel %vm1650, %v1607, %v1666
      %v1683 = vsel %vm1651, %v1610, %v1667
      %v1684 = vsel %vm1652, %v1613, %v1668
      %v1685 = vsel %vm1653, %v1616, %v1669
      %v1686 = vsel %vm1654, %v1619, %v1670
      %v1687 = vsel %vm1655, %v1622, %v1671
      %v1688 = vsel %vm1656, %v1625, %v1672
      %v1689 = vsel %vm1657, %v1628, %v1673
      %v1690 = vsel %vm1658, %v1631, %v1674
      %v1691 = vsel %vm1659, %v1634, %v1675
      %v1692 = vsel %vm1660, %v1637, %v1676
      %v1693 = vsel %vm1661, %v1640, %v1677
      %v1694 = vsel %vm1662, %v1643, %v1678
      %v1695 = vsel %vm1663, %v1646, %v1679
      %v1696 = vld [vmem:[%s441] sm:$0x1]
      %v1697 = vsel %vm1385, %v1680, 0.0
      %v1698 = vsel %vm1385, %v1681, 0.0
      %v1699 = vadd.f32 %v1697, %v1698
      %v1700 = vsel %vm1385, %v1682, 0.0
      %v1701 = vadd.f32 %v1699, %v1700
      %v1702 = vsel %vm1385, %v1683, 0.0
      %v1703 = vadd.f32 %v1701, %v1702
      %v1704 = vsel %vm1385, %v1684, 0.0
      %v1705 = vadd.f32 %v1703, %v1704
      %v1706 = vsel %vm1385, %v1685, 0.0
      %v1707 = vadd.f32 %v1705, %v1706
      %v1708 = vsel %vm1385, %v1686, 0.0
      %v1709 = vadd.f32 %v1707, %v1708
      %v1710 = vsel %vm1385, %v1687, 0.0
      %v1711 = vadd.f32 %v1709, %v1710
      %v1712 = vsel %vm1385, %v1688, 0.0
      %v1713 = vadd.f32 %v1711, %v1712
      %v1714 = vsel %vm1385, %v1689, 0.0
      %v1715 = vadd.f32 %v1713, %v1714
      %v1716 = vsel %vm1385, %v1690, 0.0
      %v1717 = vadd.f32 %v1715, %v1716
      %v1718 = vsel %vm1385, %v1691, 0.0
      %v1719 = vadd.f32 %v1717, %v1718
      %v1720 = vsel %vm1385, %v1692, 0.0
      %v1721 = vadd.f32 %v1719, %v1720
      %v1722 = vsel %vm1385, %v1693, 0.0
      %v1723 = vadd.f32 %v1721, %v1722
      %v1724 = vsel %vm1385, %v1694, 0.0
      %v1725 = vadd.f32 %v1723, %v1724
      %v1726 = vsel %vm1385, %v1695, 0.0
      %v1727 = vadd.f32 %v1725, %v1726
      %v1728 = vrot.slane %v1727, 4
      %v1729 = vadd.f32 %v1727, %v1728
      %v1730 = vrot.slane %v1729, 2
      %v1731 = vadd.f32 %v1729, %v1730
      %v1732 = vrot.slane %v1731, 1
      %v1733 = vadd.f32 %v1731, %v1732
      %v1734 = vadd.f32 %v1696, %v1733
      %vm1735 = vcmask 57344
      %1736 = vst.msk [vmem:[%s441] sm:$0x1] %vm1735, %v1734
      %v1737 = vld [vmem:[%s444] sm:$0x1]
      %v1738 = vmul.f32 %v1680, %v1680
      %v1739 = vmul.f32 %v1681, %v1681
      %v1740 = vmul.f32 %v1682, %v1682
      %v1741 = vmul.f32 %v1683, %v1683
      %v1742 = vmul.f32 %v1684, %v1684
      %v1743 = vmul.f32 %v1685, %v1685
      %v1744 = vmul.f32 %v1686, %v1686
      %v1745 = vmul.f32 %v1687, %v1687
      %v1746 = vmul.f32 %v1688, %v1688
      %v1747 = vmul.f32 %v1689, %v1689
      %v1748 = vmul.f32 %v1690, %v1690
      %v1749 = vmul.f32 %v1691, %v1691
      %v1750 = vmul.f32 %v1692, %v1692
      %v1751 = vmul.f32 %v1693, %v1693
      %v1752 = vmul.f32 %v1694, %v1694
      %v1753 = vmul.f32 %v1695, %v1695
      %v1754 = vsel %vm1385, %v1738, 0.0
      %v1755 = vsel %vm1385, %v1739, 0.0
      %v1756 = vadd.f32 %v1754, %v1755
      %v1757 = vsel %vm1385, %v1740, 0.0
      %v1758 = vadd.f32 %v1756, %v1757
      %v1759 = vsel %vm1385, %v1741, 0.0
      %v1760 = vadd.f32 %v1758, %v1759
      %v1761 = vsel %vm1385, %v1742, 0.0
      %v1762 = vadd.f32 %v1760, %v1761
      %v1763 = vsel %vm1385, %v1743, 0.0
      %v1764 = vadd.f32 %v1762, %v1763
      %v1765 = vsel %vm1385, %v1744, 0.0
      %v1766 = vadd.f32 %v1764, %v1765
      %v1767 = vsel %vm1385, %v1745, 0.0
      %v1768 = vadd.f32 %v1766, %v1767
      %v1769 = vsel %vm1385, %v1746, 0.0
      %v1770 = vadd.f32 %v1768, %v1769
      %v1771 = vsel %vm1385, %v1747, 0.0
      %v1772 = vadd.f32 %v1770, %v1771
      %v1773 = vsel %vm1385, %v1748, 0.0
      %v1774 = vadd.f32 %v1772, %v1773
      %v1775 = vsel %vm1385, %v1749, 0.0
      %v1776 = vadd.f32 %v1774, %v1775
      %v1777 = vsel %vm1385, %v1750, 0.0
      %v1778 = vadd.f32 %v1776, %v1777
      %v1779 = vsel %vm1385, %v1751, 0.0
      %v1780 = vadd.f32 %v1778, %v1779
      %v1781 = vsel %vm1385, %v1752, 0.0
      %v1782 = vadd.f32 %v1780, %v1781
      %v1783 = vsel %vm1385, %v1753, 0.0
      %v1784 = vadd.f32 %v1782, %v1783
      %v1785 = vrot.slane %v1784, 4
      %v1786 = vadd.f32 %v1784, %v1785
      %v1787 = vrot.slane %v1786, 2
      %v1788 = vadd.f32 %v1786, %v1787
      %v1789 = vrot.slane %v1788, 1
      %v1790 = vadd.f32 %v1788, %v1789
      %v1791 = vadd.f32 %v1737, %v1790
      %1792 = vst.msk [vmem:[%s444] sm:$0x1] %vm1735, %v1791
      %1793 = vst.msk [vmem:[%s437] sm:$0xff] %vm1385, %v1680
      %1794 = vst.msk [vmem:[%s437 + $0x8] sm:$0xff] %vm1385, %v1681
      %1795 = vst.msk [vmem:[%s437 + $0x10] sm:$0xff] %vm1385, %v1682
      %1796 = vst.msk [vmem:[%s437 + $0x18] sm:$0xff] %vm1385, %v1683
      %1797 = vst.msk [vmem:[%s437 + $0x20] sm:$0xff] %vm1385, %v1684
      %1798 = vst.msk [vmem:[%s437 + $0x28] sm:$0xff] %vm1385, %v1685
      %1799 = vst.msk [vmem:[%s437 + $0x30] sm:$0xff] %vm1385, %v1686
      %1800 = vst.msk [vmem:[%s437 + $0x38] sm:$0xff] %vm1385, %v1687
      %1801 = vst.msk [vmem:[%s437 + $0x40] sm:$0xff] %vm1385, %v1688
      %1802 = vst.msk [vmem:[%s437 + $0x48] sm:$0xff] %vm1385, %v1689
      %1803 = vst.msk [vmem:[%s437 + $0x50] sm:$0xff] %vm1385, %v1690
      %1804 = vst.msk [vmem:[%s437 + $0x58] sm:$0xff] %vm1385, %v1691
      %1805 = vst.msk [vmem:[%s437 + $0x60] sm:$0xff] %vm1385, %v1692
      %1806 = vst.msk [vmem:[%s437 + $0x68] sm:$0xff] %vm1385, %v1693
      %1807 = vst.msk [vmem:[%s437 + $0x70] sm:$0xff] %vm1385, %v1694
      %1808 = vst.msk [vmem:[%s437 + $0x78] sm:$0xff] %vm1385, %v1695
      %s1809 = smul.u32 8, %s25
      %p1810 = scmp.lt.s32.totalorder %s24, 1
      %s1811 = scalar_select %p1810, %s24, 1
      %p1812 = scmp.lt.s32.totalorder %s1809, 15
      %s1813 = scalar_select %p1812, %s1809, 15
      %s1814 = smul.addr %s1813, 2
      %s1815 = smul.addr %s1811, 32
      %s1816 = sadd.s32 %s1814, %s1815
      %s1817 = smul.addr %s1816, 8
      %s1818 = scalar_lea.vmem %s6, %s1817
      %p1819 = scmp.lt.s32.totalorder %s24, 1
      %s1820 = scalar_select %p1819, %s24, 1
      %s1821 = scalar_lea.vmem %s7, %s1820
      %p1822 = scmp.lt.s32.totalorder %s24, 1
      %s1823 = scalar_select %p1822, %s24, 1
      %s1824 = scalar_lea.vmem %s8, %s1823
      // Predicated region
      $region49: #{bridge_forward.4} parent=43 // pred_check
        %p1825 = pneg %p196
      $region50: #{bridge_forward.4} parent=43 // pred_check_branch
        %1827 = sbr.rel (%p1825) target = $region52
      $region51: #{bridge_forward.4} parent=43 // pred_region
        %s1828 = smul.u32 8, %s25
      $region52: #{bridge_forward.4} parent=43 // pred_fallthru
        _
      // Predicated region
      $region53: #{bridge_forward.4} parent=43 // pred_check
        %p1829 = pneg %p222
      $region54: #{bridge_forward.4} parent=43 // pred_check_branch
        %1831 = sbr.rel (%p1829) target = $region56
      $region55: #{bridge_forward.4} parent=43 // pred_region
        _
      $region56: #{bridge_forward.4} parent=43 // pred_fallthru
        _
      // Predicated region
      $region57: #{bridge_forward.4} parent=43 // pred_check
        %p1832 = pneg %p248
      $region58: #{bridge_forward.4} parent=43 // pred_check_branch
        %1834 = sbr.rel (%p1832) target = $region60
      $region59: #{bridge_forward.4} parent=43 // pred_region
        _
      $region60: #{bridge_forward.4} parent=43 // pred_fallthru
        _
    $region44: #{bridge_forward.4} parent=5 // pred_fallthru
      _
    %p1835 = scmp.le.s32.totalorder 2, %s15
    // Predicated region
    $region61: #{bridge_forward.4} parent=5 // pred_check
      %p1836 = pneg %p1835
    $region62: #{bridge_forward.4} parent=5 // pred_check_branch
      %1838 = sbr.rel (%p1836) target = $region64
    $region63: #{bridge_forward.4} parent=5 // pred_region
      %s1839 = ssub.s32 %s15, 2
      // Predicated region
      $region65: #{bridge_forward.4} parent=63 // pred_check
        %p1840 = pneg %p202
      $region66: #{bridge_forward.4} parent=63 // pred_check_branch
        %1842 = sbr.rel (%p1840) target = $region68
      $region67: #{bridge_forward.4} parent=63 // pred_region
        %s1843 = smul.u32 8, %s27
        %p1844 = scmp.lt.s32.totalorder %s26, 1
        %s1845 = scalar_select %p1844, %s26, 1
        %p1846 = scmp.lt.s32.totalorder %s1843, 15
        %s1847 = scalar_select %p1846, %s1843, 15
        %s1848 = smul.addr %s1847, 2
        %s1849 = smul.addr %s1845, 32
        %s1850 = sadd.s32 %s1848, %s1849
        %s1851 = smul.addr %s1850, 8
        %s1852 = scalar_lea.vmem %s6, %s1851
      $region68: #{bridge_forward.4} parent=63 // pred_fallthru
        _
      // Predicated region
      $region69: #{bridge_forward.4} parent=63 // pred_check
        %p1853 = pneg %p228
      $region70: #{bridge_forward.4} parent=63 // pred_check_branch
        %1855 = sbr.rel (%p1853) target = $region72
      $region71: #{bridge_forward.4} parent=63 // pred_region
        %p1856 = scmp.lt.s32.totalorder %s26, 1
        %s1857 = scalar_select %p1856, %s26, 1
        %s1858 = scalar_lea.vmem %s7, %s1857
      $region72: #{bridge_forward.4} parent=63 // pred_fallthru
        _
      // Predicated region
      $region73: #{bridge_forward.4} parent=63 // pred_check
        %p1859 = pneg %p254
      $region74: #{bridge_forward.4} parent=63 // pred_check_branch
        %1861 = sbr.rel (%p1859) target = $region76
      $region75: #{bridge_forward.4} parent=63 // pred_region
        %p1862 = scmp.lt.s32.totalorder %s26, 1
        %s1863 = scalar_select %p1862, %s26, 1
        %s1864 = scalar_lea.vmem %s8, %s1863
      $region76: #{bridge_forward.4} parent=63 // pred_fallthru
        _
    $region64: #{bridge_forward.4} parent=5 // pred_fallthru
      _
  $region6: #{bridge_forward.4} parent=0 // loop_footer
    %s19 = sadd.s32 1, %s15
  $region7: #{bridge_forward.4} parent=0 // loop_footer_branch
    %14 = sbr.rel target = $region3
  $region8: #{bridge_forward.4} parent=0 // loop_exit
    _

</llo_original>
